<compile_context>
chip_gen: v6e
topology: v6e:2x2x1
jax: 0.10.0
libtpu: 0.0.40
codegen_flags: <defaults>
</compile_context>

<pallas_src>
import functools

import numpy as np
import jax
import jax.numpy as jnp
from jax.experimental import pallas as pl
from jax.experimental.pallas import tpu as pltpu

EPS = 1e-5
NUM_HIDDEN = 3      # AutoregressiveTransfrom default
BASE_FILTERS = 32   # MADE default hidden width

_VMEM = pl.BlockSpec(memory_space=pltpu.MemorySpace.VMEM)
_SMEM = pl.BlockSpec(memory_space=pltpu.MemorySpace.SMEM)


# ----------------------------------------------------------------------------
# Fused Pallas kernel (feature-major: activations are (features, B_pad))
# ----------------------------------------------------------------------------

def maf_fused_kernel(b_real,
                     z_ref, waug_ref, whid_ref, whead_ref, bhead_ref,
                     g_ref, be_ref, slsb_ref,
                     zo_ref, ldo_ref):
    d, b_pad = z_ref.shape
    n_layers = waug_ref.shape[0]
    inv_n = 1.0 / float(b_real)

    # Lane-validity mask only when the batch had to be padded to a multiple of 128.
    if b_real != b_pad:
        lane = jax.lax.broadcasted_iota(jnp.int32, (1, b_pad), 1)
        valid = lane < b_real

        def masked(x):
            return jnp.where(valid, x, 0.0)
    else:
        def masked(x):
            return x

    def stats(h):
        # single subtract reused for variance and normalization; masked sums when padded
        mu = jnp.sum(masked(h), axis=-1, keepdims=True) * inv_n
        xc = h - mu
        var = jnp.sum(masked(xc * xc), axis=-1, keepdims=True) * inv_n
        return xc, var

    def bn_relu(h, g, be):
        xc, var = stats(h)
        return jnp.maximum(xc * jax.lax.rsqrt(var + EPS) * g + be, 0.0)

    z = z_ref[...]                                    # (D, B_pad)
    ld = jnp.zeros((1, b_pad), jnp.float32)

    for layer in range(n_layers):                     # static unroll; weights VMEM-resident
        # ---- flow BatchNorm (affine=False, batch statistics) + log-det update ----
        xc, var = stats(z)
        z = xc * jax.lax.rsqrt(var + EPS)
        ld = ld - 0.5 * jnp.sum(jnp.log(var + EPS))

        # ---- permutation + merged layer-0 masked linear fused into ONE matmul ----
        fused0 = jnp.dot(waug_ref[layer], z, preferred_element_type=jnp.float32)  # (D+2H, B)
        zp = fused0[:d]                               # permuted input (needed for combine)
        # hidden-layer linear biases cancel under training-mode BN -> dropped host-side
        h = bn_relu(fused0[d:], g_ref[layer, 0], be_ref[layer, 0])

        # ---- hidden masked linears (block-diagonal merged s/t branches) ----
        h = bn_relu(jnp.dot(whid_ref[layer, 0], h, preferred_element_type=jnp.float32),
                    g_ref[layer, 1], be_ref[layer, 1])
        h = bn_relu(jnp.dot(whid_ref[layer, 1], h, preferred_element_type=jnp.float32),
                    g_ref[layer, 2], be_ref[layer, 2])

        # ---- merged s/t heads: one (2D, 2H) matmul, then static row slices ----
        st = jnp.dot(whead_ref[layer], h, preferred_element_type=jnp.float32) + bhead_ref[layer]
        s = jnp.tanh(st[:d]) * slsb_ref[2 * layer] + slsb_ref[2 * layer + 1]
        t = st[d:]

        # ---- autoregressive affine combine + log-det ----
        z = zp * jnp.exp(s) + t
        ld = ld + jnp.sum(s, axis=0, keepdims=True)

    zo_ref[...] = z                                   # (D, B_pad): lane-dense store
    ldo_ref[...] = ld                                 # (1, B_pad): lane-dense store


# ----------------------------------------------------------------------------
# Wrapper (single pallas_call; whole arrays in VMEM, scalars in SMEM)
# ----------------------------------------------------------------------------

def _vmem_estimate_bytes(vmem_args, b_pad, d, h2):
    def padded(shape):
        s = (1,) * max(0, 2 - len(shape)) + tuple(shape)
        lead = int(np.prod(s[:-2])) if len(s) > 2 else 1
        return lead * (-(-s[-2] // 8) * 8) * (-(-s[-1] // 128) * 128) * 4
    total = sum(padded(a.shape) for a in vmem_args)
    total += 2 * padded((d, b_pad)) + padded((1, b_pad))      # outputs
    total += 10 * padded((d + h2, b_pad))                     # live activation headroom
    return 2 * total                                          # compiler / buffering slack


def maf_forward(z, params):
    """z: (B, D) row-major like the PyTorch module. Returns (z_out (B, D), log_df_dz (B,))."""
    z = jnp.asarray(z, jnp.float32)
    B, D = z.shape
    H2 = params['whid'].shape[-1]                     # 2 * base_filters
    B_pad = max(128, ((B + 127) // 128) * 128)

    zT = z.T                                          # feature-major (D, B)
    if B_pad != B:
        zT = jnp.pad(zT, ((0, 0), (0, B_pad - B)))    # zero-pad lanes; stats are masked

    vmem_args = (zT, params['waug'], params['whid'], params['whead'], params['bhead'],
                 params['g'], params['be'])
    est = _vmem_estimate_bytes(vmem_args, B_pad, D, H2)
    compiler_params = None
    if est > 12 * 1024 * 1024:                        # only raise the scoped-VMEM cap if needed
        compiler_params = pltpu.CompilerParams(
            vmem_limit_bytes=int(min(2 * est, 64 * 1024 * 1024)))

    z_out_t, ld = pl.pallas_call(
        functools.partial(maf_fused_kernel, B),
        out_shape=(jax.ShapeDtypeStruct((D, B_pad), jnp.float32),
                   jax.ShapeDtypeStruct((1, B_pad), jnp.float32)),
        in_specs=[_VMEM] * 7 + [_SMEM],
        out_specs=(_VMEM, _VMEM),
        compiler_params=compiler_params,
    )(*vmem_args, params['slsb'])
    return z_out_t[:, :B].T, ld[0, :B]


# ----------------------------------------------------------------------------
# Deterministic parameter construction (mirrors MADE.__init__ / _create_masks),
# then host-side folding: mask-multiply, s/t merge, permutation fold, bias drop.
# ----------------------------------------------------------------------------

def _raw_made_params(rng, D, H=BASE_FILTERS, num_hidden=NUM_HIDDEN):
    hidden_dims = [D] + [H] * num_hidden
    Ws, bs, gs, bes, Ms = [], [], [], [], []
    for in_d, out_d in zip(hidden_dims[:-1], hidden_dims[1:]):
        xs = np.sqrt(2.0 / (out_d + in_d))
        Ws.append(rng.standard_normal((out_d, in_d)).astype(np.float32) * xs)
        bs.append(rng.standard_normal((out_d,)).astype(np.float32) * 0.01)
        gs.append(np.ones((out_d,), np.float32))      # BatchNorm1d weight init
        bes.append(np.zeros((out_d,), np.float32))    # BatchNorm1d bias init
    xs = np.sqrt(2.0 / (D + hidden_dims[-1]))
    Ws.append(rng.standard_normal((D, hidden_dims[-1])).astype(np.float32) * xs)
    bs.append(rng.standard_normal((D,)).astype(np.float32) * 0.01)
    # masks: generated once deterministically (PyTorch regenerates per forward)
    m_prev = np.arange(D)
    for in_d, out_d in zip(hidden_dims[:-1], hidden_dims[1:]):
        min_k = min(int(m_prev.min()), D - 2)
        m = rng.integers(min_k, D - 1, size=out_d)
        Ms.append((m_prev[None, :] <= m[:, None]).astype(np.float32))
        m_prev = m
    M_last = np.zeros((D, hidden_dims[-1]), np.float32)
    for k in range(hidden_dims[-1]):
        M_last[m_prev[k] + 1:, k] = 1.0
    Ms.append(M_last)
    return Ws, bs, gs, bes, Ms


def _blockdiag(a, b):
    out = np.zeros((a.shape[0] + b.shape[0], a.shape[1] + b.shape[1]), np.float32)
    out[:a.shape[0], :a.shape[1]] = a
    out[a.shape[0]:, a.shape[1]:] = b
    return out


def make_maf_params(rng, D, n_layers, H=BASE_FILTERS):
    waug_l, whid_l, whead_l, bhead_l, g_l, be_l, slsb_l = [], [], [], [], [], [], []
    for _ in range(n_layers):
        perm = np.eye(D, dtype=np.float32)[:, rng.permutation(D)]
        sW, sb_, sg, sbe, sM = _raw_made_params(rng, D, H)
        tW, tb_, tg, tbe, tM = _raw_made_params(rng, D, H)
        s_log_scale = float(rng.standard_normal() * 0.01)
        s_bias = float(rng.standard_normal() * 0.01)

        # layer 0 (merged s|t) with the permutation folded in: one (D+2H, D) matmul
        W0 = np.vstack([sW[0] * sM[0], tW[0] * tM[0]])                   # (2H, D)
        waug_l.append(np.vstack([perm.T, W0 @ perm.T]).astype(np.float32))
        # hidden layers 1,2: block-diagonal so s/t branches stay independent
        whid_l.append(np.stack([_blockdiag(sW[1] * sM[1], tW[1] * tM[1]),
                                _blockdiag(sW[2] * sM[2], tW[2] * tM[2])]))   # (2, 2H, 2H)
        # merged heads: rows 0:D = s head (reads s branch), rows D:2D = t head
        Wh = np.zeros((2 * D, 2 * H), np.float32)
        Wh[:D, :H] = sW[3] * sM[3]
        Wh[D:, H:] = tW[3] * tM[3]
        whead_l.append(Wh)
        bhead_l.append(np.concatenate([sb_[3], tb_[3]])[:, None])        # (2D, 1)
        # hidden linear biases omitted: exactly cancelled by the following training-mode BN
        g_l.append(np.stack([np.concatenate([sg[i], tg[i]]) for i in range(3)])[..., None])
        be_l.append(np.stack([np.concatenate([sbe[i], tbe[i]]) for i in range(3)])[..., None])
        slsb_l += [s_log_scale, s_bias]

    return dict(
        waug=jnp.asarray(np.stack(waug_l)),      # (L, D+2H, D)
        whid=jnp.asarray(np.stack(whid_l)),      # (L, 2, 2H, 2H)
        whead=jnp.asarray(np.stack(whead_l)),    # (L, 2D, 2H)
        bhead=jnp.asarray(np.stack(bhead_l)),    # (L, 2D, 1)
        g=jnp.asarray(np.stack(g_l)),            # (L, 3, 2H, 1)
        be=jnp.asarray(np.stack(be_l)),          # (L, 3, 2H, 1)
        slsb=jnp.asarray(np.array(slsb_l, np.float32)),  # (2L,)  -> SMEM
    )


# ----------------------------------------------------------------------------
# Pure-JAX reference (row-major) using the same folded parameters, for validation
# ----------------------------------------------------------------------------

def maf_reference(z, params):
    B, D = z.shape
    L = params['waug'].shape[0]
    ld = jnp.zeros((B,), jnp.float32)
    x = jnp.asarray(z, jnp.float32)
    for l in range(L):
        mu = jnp.mean(x, 0)
        var = jnp.mean((x - mu) ** 2, 0)
        x = (x - mu) / jnp.sqrt(var + EPS)
        ld = ld - 0.5 * jnp.sum(jnp.log(var + EPS))
        out = x @ params['waug'][l].T
        zp, h = out[:, :D], out[:, D:]
        for k in range(3):
            if k > 0:
                h = h @ params['whid'][l, k - 1].T
            mu = jnp.mean(h, 0)
            var = jnp.mean((h - mu) ** 2, 0)
            h = jnp.maximum((h - mu) / jnp.sqrt(var + EPS) * params['g'][l, k, :, 0]
                            + params['be'][l, k, :, 0], 0.0)
        st = h @ params['whead'][l].T + params['bhead'][l][:, 0]
        s = jnp.tanh(st[:, :D]) * params['slsb'][2 * l] + params['slsb'][2 * l + 1]
        t = st[:, D:]
        x = zp * jnp.exp(s) + t
        ld = ld + jnp.sum(s, 1)
    return x, ld


# ----------------------------------------------------------------------------
# MAF forward = Compose([BatchNorm(affine=False), AutoregressiveTransfrom] * n_layers)
# ----------------------------------------------------------------------------

if __name__ == "__main__":
    B, D = 256, 8        # batch (one full 128-lane tile x2), feature dims  (dims = (D,))
    N_LAYERS = 2         # cfg.layers

    rng = np.random.default_rng(0)
    params = make_maf_params(rng, D, N_LAYERS)

    z = jax.random.normal(jax.random.PRNGKey(0), (B, D), dtype=jnp.float32)

    z_out, log_df_dz = maf_forward(z, params)
    jax.block_until_ready((z_out, log_df_dz))
    assert z_out.shape == (B, D) and log_df_dz.shape == (B,)

    # validate against a pure-JAX reference built from the same folded parameters
    z_ref, ld_ref = maf_reference(z, params)
    np.testing.assert_allclose(np.asarray(z_out), np.asarray(z_ref), rtol=2e-3, atol=2e-3)
    np.testing.assert_allclose(np.asarray(log_df_dz), np.asarray(ld_ref), rtol=2e-3, atol=2e-3)

    print("KERNEL_OK")
</pallas_src>

<mosaic_0001>
module attributes {stable_mosaic.version = 11 : i64} {
  func.func @maf_fused_kernel(%arg0: memref<8x256xf32, #tpu.memory_space<vmem>>, %arg1: memref<2x72x8xf32, #tpu.memory_space<vmem>>, %arg2: memref<2x2x64x64xf32, #tpu.memory_space<vmem>>, %arg3: memref<2x16x64xf32, #tpu.memory_space<vmem>>, %arg4: memref<2x16x1xf32, #tpu.memory_space<vmem>>, %arg5: memref<2x3x64x1xf32, #tpu.memory_space<vmem>>, %arg6: memref<2x3x64x1xf32, #tpu.memory_space<vmem>>, %arg7: memref<4xf32, #tpu.memory_space<smem>>, %arg8: memref<8x256xf32, #tpu.memory_space<vmem>>, %arg9: memref<1x256xf32, #tpu.memory_space<vmem>>) attributes {dimension_semantics = [], scalar_prefetch = 0 : i64, scratch_operands = 0 : i64, tpu.core_type = #tpu.core_type<tc>} {
    %c0 = arith.constant 0 : index
    %c0_0 = arith.constant 0 : index
    %0 = vector.load %arg0[%c0, %c0_0] : memref<8x256xf32, #tpu.memory_space<vmem>>, vector<8x256xf32>
    %cst = arith.constant 0.000000e+00 : f32
    %1 = vector.broadcast %cst : f32 to vector<1x256xf32>
    %cst_1 = arith.constant dense<0.000000e+00> : vector<8xf32>
    %2 = vector.multi_reduction <add>, %0, %cst_1 [1] : vector<8x256xf32> to vector<8xf32>
    %3 = vector.shape_cast %2 : vector<8xf32> to vector<8x1xf32>
    %cst_2 = arith.constant 3.906250e-03 : f32
    %4 = vector.broadcast %cst_2 : f32 to vector<8x1xf32>
    %5 = arith.mulf %3, %4 : vector<8x1xf32>
    %6 = vector.broadcast %5 : vector<8x1xf32> to vector<8x256xf32>
    %7 = arith.subf %0, %6 : vector<8x256xf32>
    %8 = arith.mulf %7, %7 : vector<8x256xf32>
    %cst_3 = arith.constant dense<0.000000e+00> : vector<8xf32>
    %9 = vector.multi_reduction <add>, %8, %cst_3 [1] : vector<8x256xf32> to vector<8xf32>
    %10 = vector.shape_cast %9 : vector<8xf32> to vector<8x1xf32>
    %cst_4 = arith.constant 3.906250e-03 : f32
    %11 = vector.broadcast %cst_4 : f32 to vector<8x1xf32>
    %12 = arith.mulf %10, %11 : vector<8x1xf32>
    %cst_5 = arith.constant 9.99999974E-6 : f32
    %13 = vector.broadcast %cst_5 : f32 to vector<8x1xf32>
    %14 = arith.addf %12, %13 : vector<8x1xf32>
    %15 = math.rsqrt %14 : vector<8x1xf32>
    %16 = vector.broadcast %15 : vector<8x1xf32> to vector<8x256xf32>
    %17 = arith.mulf %7, %16 : vector<8x256xf32>
    %cst_6 = arith.constant 9.99999974E-6 : f32
    %18 = vector.broadcast %cst_6 : f32 to vector<8x1xf32>
    %19 = arith.addf %12, %18 : vector<8x1xf32>
    %20 = math.log %19 : vector<8x1xf32>
    %21 = vector.shape_cast %20 : vector<8x1xf32> to vector<1x8x1xf32>
    %cst_7 = arith.constant dense<0.000000e+00> : vector<1xf32>
    %22 = vector.multi_reduction <add>, %21, %cst_7 [1, 2] : vector<1x8x1xf32> to vector<1xf32>
    %23 = vector.shape_cast %22 : vector<1xf32> to vector<1x1x1xf32>
    %24 = vector.extract %23[0, 0, 0] : f32 from vector<1x1x1xf32>
    %cst_8 = arith.constant 5.000000e-01 : f32
    %25 = arith.mulf %cst_8, %24 : f32
    %26 = vector.broadcast %25 : f32 to vector<1x256xf32>
    %27 = arith.subf %1, %26 : vector<1x256xf32>
    %c0_9 = arith.constant 0 : index
    %c0_10 = arith.constant 0 : index
    %c0_11 = arith.constant 0 : index
    %28 = vector.load %arg1[%c0_9, %c0_10, %c0_11] : memref<2x72x8xf32, #tpu.memory_space<vmem>>, vector<1x72x8xf32>
    %29 = vector.shape_cast %28 : vector<1x72x8xf32> to vector<72x8xf32>
    %cst_12 = arith.constant dense<0.000000e+00> : vector<72x256xf32>
    %30 = tpu.matmul %29, %17, %cst_12 {dimension_numbers = #tpu.dot_dimension_numbers<[1], [0], [0], [1], [0, 0, 1, 1], [], []>} : vector<72x8xf32>, vector<8x256xf32>, vector<72x256xf32> -> vector<72x256xf32>
    %31 = vector.extract_strided_slice %30 {offsets = [0, 0], sizes = [8, 256], strides = [1, 1]} : vector<72x256xf32> to vector<8x256xf32>
    %32 = vector.extract_strided_slice %30 {offsets = [8, 0], sizes = [64, 256], strides = [1, 1]} : vector<72x256xf32> to vector<64x256xf32>
    %c0_13 = arith.constant 0 : index
    %c0_14 = arith.constant 0 : index
    %c0_15 = arith.constant 0 : index
    %c0_16 = arith.constant 0 : index
    %33 = vector.load %arg5[%c0_13, %c0_14, %c0_15, %c0_16] : memref<2x3x64x1xf32, #tpu.memory_space<vmem>>, vector<1x1x64x1xf32>
    %34 = vector.shape_cast %33 : vector<1x1x64x1xf32> to vector<64x1xf32>
    %c0_17 = arith.constant 0 : index
    %c0_18 = arith.constant 0 : index
    %c0_19 = arith.constant 0 : index
    %c0_20 = arith.constant 0 : index
    %35 = vector.load %arg6[%c0_17, %c0_18, %c0_19, %c0_20] : memref<2x3x64x1xf32, #tpu.memory_space<vmem>>, vector<1x1x64x1xf32>
    %36 = vector.shape_cast %35 : vector<1x1x64x1xf32> to vector<64x1xf32>
    %cst_21 = arith.constant dense<0.000000e+00> : vector<64xf32>
    %37 = vector.multi_reduction <add>, %32, %cst_21 [1] : vector<64x256xf32> to vector<64xf32>
    %38 = vector.shape_cast %37 : vector<64xf32> to vector<64x1xf32>
    %cst_22 = arith.constant 3.906250e-03 : f32
    %39 = vector.broadcast %cst_22 : f32 to vector<64x1xf32>
    %40 = arith.mulf %38, %39 : vector<64x1xf32>
    %41 = vector.broadcast %40 : vector<64x1xf32> to vector<64x256xf32>
    %42 = arith.subf %32, %41 : vector<64x256xf32>
    %43 = arith.mulf %42, %42 : vector<64x256xf32>
    %cst_23 = arith.constant dense<0.000000e+00> : vector<64xf32>
    %44 = vector.multi_reduction <add>, %43, %cst_23 [1] : vector<64x256xf32> to vector<64xf32>
    %45 = vector.shape_cast %44 : vector<64xf32> to vector<64x1xf32>
    %cst_24 = arith.constant 3.906250e-03 : f32
    %46 = vector.broadcast %cst_24 : f32 to vector<64x1xf32>
    %47 = arith.mulf %45, %46 : vector<64x1xf32>
    %cst_25 = arith.constant 9.99999974E-6 : f32
    %48 = vector.broadcast %cst_25 : f32 to vector<64x1xf32>
    %49 = arith.addf %47, %48 : vector<64x1xf32>
    %50 = math.rsqrt %49 : vector<64x1xf32>
    %51 = vector.broadcast %50 : vector<64x1xf32> to vector<64x256xf32>
    %52 = arith.mulf %42, %51 : vector<64x256xf32>
    %53 = vector.broadcast %34 : vector<64x1xf32> to vector<64x256xf32>
    %54 = arith.mulf %52, %53 : vector<64x256xf32>
    %55 = vector.broadcast %36 : vector<64x1xf32> to vector<64x256xf32>
    %56 = arith.addf %54, %55 : vector<64x256xf32>
    %cst_26 = arith.constant 0.000000e+00 : f32
    %57 = vector.broadcast %cst_26 : f32 to vector<64x256xf32>
    %58 = arith.maximumf %56, %57 : vector<64x256xf32>
    %c0_27 = arith.constant 0 : index
    %c0_28 = arith.constant 0 : index
    %c0_29 = arith.constant 0 : index
    %c0_30 = arith.constant 0 : index
    %59 = vector.load %arg2[%c0_27, %c0_28, %c0_29, %c0_30] : memref<2x2x64x64xf32, #tpu.memory_space<vmem>>, vector<1x1x64x64xf32>
    %60 = vector.shape_cast %59 : vector<1x1x64x64xf32> to vector<64x64xf32>
    %cst_31 = arith.constant dense<0.000000e+00> : vector<64x256xf32>
    %61 = tpu.matmul %60, %58, %cst_31 {dimension_numbers = #tpu.dot_dimension_numbers<[1], [0], [0], [1], [0, 0, 1, 1], [], []>} : vector<64x64xf32>, vector<64x256xf32>, vector<64x256xf32> -> vector<64x256xf32>
    %c0_32 = arith.constant 0 : index
    %c1 = arith.constant 1 : index
    %c0_33 = arith.constant 0 : index
    %c0_34 = arith.constant 0 : index
    %62 = vector.load %arg5[%c0_32, %c1, %c0_33, %c0_34] : memref<2x3x64x1xf32, #tpu.memory_space<vmem>>, vector<1x1x64x1xf32>
    %63 = vector.shape_cast %62 : vector<1x1x64x1xf32> to vector<64x1xf32>
    %c0_35 = arith.constant 0 : index
    %c1_36 = arith.constant 1 : index
    %c0_37 = arith.constant 0 : index
    %c0_38 = arith.constant 0 : index
    %64 = vector.load %arg6[%c0_35, %c1_36, %c0_37, %c0_38] : memref<2x3x64x1xf32, #tpu.memory_space<vmem>>, vector<1x1x64x1xf32>
    %65 = vector.shape_cast %64 : vector<1x1x64x1xf32> to vector<64x1xf32>
    %cst_39 = arith.constant dense<0.000000e+00> : vector<64xf32>
    %66 = vector.multi_reduction <add>, %61, %cst_39 [1] : vector<64x256xf32> to vector<64xf32>
    %67 = vector.shape_cast %66 : vector<64xf32> to vector<64x1xf32>
    %cst_40 = arith.constant 3.906250e-03 : f32
    %68 = vector.broadcast %cst_40 : f32 to vector<64x1xf32>
    %69 = arith.mulf %67, %68 : vector<64x1xf32>
    %70 = vector.broadcast %69 : vector<64x1xf32> to vector<64x256xf32>
    %71 = arith.subf %61, %70 : vector<64x256xf32>
    %72 = arith.mulf %71, %71 : vector<64x256xf32>
    %cst_41 = arith.constant dense<0.000000e+00> : vector<64xf32>
    %73 = vector.multi_reduction <add>, %72, %cst_41 [1] : vector<64x256xf32> to vector<64xf32>
    %74 = vector.shape_cast %73 : vector<64xf32> to vector<64x1xf32>
    %cst_42 = arith.constant 3.906250e-03 : f32
    %75 = vector.broadcast %cst_42 : f32 to vector<64x1xf32>
    %76 = arith.mulf %74, %75 : vector<64x1xf32>
    %cst_43 = arith.constant 9.99999974E-6 : f32
    %77 = vector.broadcast %cst_43 : f32 to vector<64x1xf32>
    %78 = arith.addf %76, %77 : vector<64x1xf32>
    %79 = math.rsqrt %78 : vector<64x1xf32>
    %80 = vector.broadcast %79 : vector<64x1xf32> to vector<64x256xf32>
    %81 = arith.mulf %71, %80 : vector<64x256xf32>
    %82 = vector.broadcast %63 : vector<64x1xf32> to vector<64x256xf32>
    %83 = arith.mulf %81, %82 : vector<64x256xf32>
    %84 = vector.broadcast %65 : vector<64x1xf32> to vector<64x256xf32>
    %85 = arith.addf %83, %84 : vector<64x256xf32>
    %cst_44 = arith.constant 0.000000e+00 : f32
    %86 = vector.broadcast %cst_44 : f32 to vector<64x256xf32>
    %87 = arith.maximumf %85, %86 : vector<64x256xf32>
    %c0_45 = arith.constant 0 : index
    %c1_46 = arith.constant 1 : index
    %c0_47 = arith.constant 0 : index
    %c0_48 = arith.constant 0 : index
    %88 = vector.load %arg2[%c0_45, %c1_46, %c0_47, %c0_48] : memref<2x2x64x64xf32, #tpu.memory_space<vmem>>, vector<1x1x64x64xf32>
    %89 = vector.shape_cast %88 : vector<1x1x64x64xf32> to vector<64x64xf32>
    %cst_49 = arith.constant dense<0.000000e+00> : vector<64x256xf32>
    %90 = tpu.matmul %89, %87, %cst_49 {dimension_numbers = #tpu.dot_dimension_numbers<[1], [0], [0], [1], [0, 0, 1, 1], [], []>} : vector<64x64xf32>, vector<64x256xf32>, vector<64x256xf32> -> vector<64x256xf32>
    %c0_50 = arith.constant 0 : index
    %c2 = arith.constant 2 : index
    %c0_51 = arith.constant 0 : index
    %c0_52 = arith.constant 0 : index
    %91 = vector.load %arg5[%c0_50, %c2, %c0_51, %c0_52] : memref<2x3x64x1xf32, #tpu.memory_space<vmem>>, vector<1x1x64x1xf32>
    %92 = vector.shape_cast %91 : vector<1x1x64x1xf32> to vector<64x1xf32>
    %c0_53 = arith.constant 0 : index
    %c2_54 = arith.constant 2 : index
    %c0_55 = arith.constant 0 : index
    %c0_56 = arith.constant 0 : index
    %93 = vector.load %arg6[%c0_53, %c2_54, %c0_55, %c0_56] : memref<2x3x64x1xf32, #tpu.memory_space<vmem>>, vector<1x1x64x1xf32>
    %94 = vector.shape_cast %93 : vector<1x1x64x1xf32> to vector<64x1xf32>
    %cst_57 = arith.constant dense<0.000000e+00> : vector<64xf32>
    %95 = vector.multi_reduction <add>, %90, %cst_57 [1] : vector<64x256xf32> to vector<64xf32>
    %96 = vector.shape_cast %95 : vector<64xf32> to vector<64x1xf32>
    %cst_58 = arith.constant 3.906250e-03 : f32
    %97 = vector.broadcast %cst_58 : f32 to vector<64x1xf32>
    %98 = arith.mulf %96, %97 : vector<64x1xf32>
    %99 = vector.broadcast %98 : vector<64x1xf32> to vector<64x256xf32>
    %100 = arith.subf %90, %99 : vector<64x256xf32>
    %101 = arith.mulf %100, %100 : vector<64x256xf32>
    %cst_59 = arith.constant dense<0.000000e+00> : vector<64xf32>
    %102 = vector.multi_reduction <add>, %101, %cst_59 [1] : vector<64x256xf32> to vector<64xf32>
    %103 = vector.shape_cast %102 : vector<64xf32> to vector<64x1xf32>
    %cst_60 = arith.constant 3.906250e-03 : f32
    %104 = vector.broadcast %cst_60 : f32 to vector<64x1xf32>
    %105 = arith.mulf %103, %104 : vector<64x1xf32>
    %cst_61 = arith.constant 9.99999974E-6 : f32
    %106 = vector.broadcast %cst_61 : f32 to vector<64x1xf32>
    %107 = arith.addf %105, %106 : vector<64x1xf32>
    %108 = math.rsqrt %107 : vector<64x1xf32>
    %109 = vector.broadcast %108 : vector<64x1xf32> to vector<64x256xf32>
    %110 = arith.mulf %100, %109 : vector<64x256xf32>
    %111 = vector.broadcast %92 : vector<64x1xf32> to vector<64x256xf32>
    %112 = arith.mulf %110, %111 : vector<64x256xf32>
    %113 = vector.broadcast %94 : vector<64x1xf32> to vector<64x256xf32>
    %114 = arith.addf %112, %113 : vector<64x256xf32>
    %cst_62 = arith.constant 0.000000e+00 : f32
    %115 = vector.broadcast %cst_62 : f32 to vector<64x256xf32>
    %116 = arith.maximumf %114, %115 : vector<64x256xf32>
    %c0_63 = arith.constant 0 : index
    %c0_64 = arith.constant 0 : index
    %c0_65 = arith.constant 0 : index
    %117 = vector.load %arg3[%c0_63, %c0_64, %c0_65] : memref<2x16x64xf32, #tpu.memory_space<vmem>>, vector<1x16x64xf32>
    %118 = vector.shape_cast %117 : vector<1x16x64xf32> to vector<16x64xf32>
    %cst_66 = arith.constant dense<0.000000e+00> : vector<16x256xf32>
    %119 = tpu.matmul %118, %116, %cst_66 {dimension_numbers = #tpu.dot_dimension_numbers<[1], [0], [0], [1], [0, 0, 1, 1], [], []>} : vector<16x64xf32>, vector<64x256xf32>, vector<16x256xf32> -> vector<16x256xf32>
    %c0_67 = arith.constant 0 : index
    %c0_68 = arith.constant 0 : index
    %c0_69 = arith.constant 0 : index
    %120 = vector.load %arg4[%c0_67, %c0_68, %c0_69] : memref<2x16x1xf32, #tpu.memory_space<vmem>>, vector<1x16x1xf32>
    %121 = vector.shape_cast %120 : vector<1x16x1xf32> to vector<16x1xf32>
    %122 = vector.broadcast %121 : vector<16x1xf32> to vector<16x256xf32>
    %123 = arith.addf %119, %122 : vector<16x256xf32>
    %124 = vector.extract_strided_slice %123 {offsets = [0, 0], sizes = [8, 256], strides = [1, 1]} : vector<16x256xf32> to vector<8x256xf32>
    %125 = math.tanh %124 : vector<8x256xf32>
    %c0_70 = arith.constant 0 : index
    %126 = memref.load %arg7[%c0_70] : memref<4xf32, #tpu.memory_space<smem>>
    %127 = vector.broadcast %126 : f32 to vector<8x256xf32>
    %128 = arith.mulf %125, %127 : vector<8x256xf32>
    %c1_71 = arith.constant 1 : index
    %129 = memref.load %arg7[%c1_71] : memref<4xf32, #tpu.memory_space<smem>>
    %130 = vector.broadcast %129 : f32 to vector<8x256xf32>
    %131 = arith.addf %128, %130 : vector<8x256xf32>
    %132 = vector.extract_strided_slice %123 {offsets = [8, 0], sizes = [8, 256], strides = [1, 1]} : vector<16x256xf32> to vector<8x256xf32>
    %133 = math.exp %131 : vector<8x256xf32>
    %134 = arith.mulf %31, %133 : vector<8x256xf32>
    %135 = arith.addf %134, %132 : vector<8x256xf32>
    %cst_72 = arith.constant dense<0.000000e+00> : vector<256xf32>
    %136 = vector.multi_reduction <add>, %131, %cst_72 [0] : vector<8x256xf32> to vector<256xf32>
    %137 = vector.shape_cast %136 : vector<256xf32> to vector<1x256xf32>
    %138 = arith.addf %27, %137 : vector<1x256xf32>
    %cst_73 = arith.constant dense<0.000000e+00> : vector<8xf32>
    %139 = vector.multi_reduction <add>, %135, %cst_73 [1] : vector<8x256xf32> to vector<8xf32>
    %140 = vector.shape_cast %139 : vector<8xf32> to vector<8x1xf32>
    %cst_74 = arith.constant 3.906250e-03 : f32
    %141 = vector.broadcast %cst_74 : f32 to vector<8x1xf32>
    %142 = arith.mulf %140, %141 : vector<8x1xf32>
    %143 = vector.broadcast %142 : vector<8x1xf32> to vector<8x256xf32>
    %144 = arith.subf %135, %143 : vector<8x256xf32>
    %145 = arith.mulf %144, %144 : vector<8x256xf32>
    %cst_75 = arith.constant dense<0.000000e+00> : vector<8xf32>
    %146 = vector.multi_reduction <add>, %145, %cst_75 [1] : vector<8x256xf32> to vector<8xf32>
    %147 = vector.shape_cast %146 : vector<8xf32> to vector<8x1xf32>
    %cst_76 = arith.constant 3.906250e-03 : f32
    %148 = vector.broadcast %cst_76 : f32 to vector<8x1xf32>
    %149 = arith.mulf %147, %148 : vector<8x1xf32>
    %cst_77 = arith.constant 9.99999974E-6 : f32
    %150 = vector.broadcast %cst_77 : f32 to vector<8x1xf32>
    %151 = arith.addf %149, %150 : vector<8x1xf32>
    %152 = math.rsqrt %151 : vector<8x1xf32>
    %153 = vector.broadcast %152 : vector<8x1xf32> to vector<8x256xf32>
    %154 = arith.mulf %144, %153 : vector<8x256xf32>
    %cst_78 = arith.constant 9.99999974E-6 : f32
    %155 = vector.broadcast %cst_78 : f32 to vector<8x1xf32>
    %156 = arith.addf %149, %155 : vector<8x1xf32>
    %157 = math.log %156 : vector<8x1xf32>
    %158 = vector.shape_cast %157 : vector<8x1xf32> to vector<1x8x1xf32>
    %cst_79 = arith.constant dense<0.000000e+00> : vector<1xf32>
    %159 = vector.multi_reduction <add>, %158, %cst_79 [1, 2] : vector<1x8x1xf32> to vector<1xf32>
    %160 = vector.shape_cast %159 : vector<1xf32> to vector<1x1x1xf32>
    %161 = vector.extract %160[0, 0, 0] : f32 from vector<1x1x1xf32>
    %cst_80 = arith.constant 5.000000e-01 : f32
    %162 = arith.mulf %cst_80, %161 : f32
    %163 = vector.broadcast %162 : f32 to vector<1x256xf32>
    %164 = arith.subf %138, %163 : vector<1x256xf32>
    %c1_81 = arith.constant 1 : index
    %c0_82 = arith.constant 0 : index
    %c0_83 = arith.constant 0 : index
    %165 = vector.load %arg1[%c1_81, %c0_82, %c0_83] : memref<2x72x8xf32, #tpu.memory_space<vmem>>, vector<1x72x8xf32>
    %166 = vector.shape_cast %165 : vector<1x72x8xf32> to vector<72x8xf32>
    %cst_84 = arith.constant dense<0.000000e+00> : vector<72x256xf32>
    %167 = tpu.matmul %166, %154, %cst_84 {dimension_numbers = #tpu.dot_dimension_numbers<[1], [0], [0], [1], [0, 0, 1, 1], [], []>} : vector<72x8xf32>, vector<8x256xf32>, vector<72x256xf32> -> vector<72x256xf32>
    %168 = vector.extract_strided_slice %167 {offsets = [0, 0], sizes = [8, 256], strides = [1, 1]} : vector<72x256xf32> to vector<8x256xf32>
    %169 = vector.extract_strided_slice %167 {offsets = [8, 0], sizes = [64, 256], strides = [1, 1]} : vector<72x256xf32> to vector<64x256xf32>
    %c1_85 = arith.constant 1 : index
    %c0_86 = arith.constant 0 : index
    %c0_87 = arith.constant 0 : index
    %c0_88 = arith.constant 0 : index
    %170 = vector.load %arg5[%c1_85, %c0_86, %c0_87, %c0_88] : memref<2x3x64x1xf32, #tpu.memory_space<vmem>>, vector<1x1x64x1xf32>
    %171 = vector.shape_cast %170 : vector<1x1x64x1xf32> to vector<64x1xf32>
    %c1_89 = arith.constant 1 : index
    %c0_90 = arith.constant 0 : index
    %c0_91 = arith.constant 0 : index
    %c0_92 = arith.constant 0 : index
    %172 = vector.load %arg6[%c1_89, %c0_90, %c0_91, %c0_92] : memref<2x3x64x1xf32, #tpu.memory_space<vmem>>, vector<1x1x64x1xf32>
    %173 = vector.shape_cast %172 : vector<1x1x64x1xf32> to vector<64x1xf32>
    %cst_93 = arith.constant dense<0.000000e+00> : vector<64xf32>
    %174 = vector.multi_reduction <add>, %169, %cst_93 [1] : vector<64x256xf32> to vector<64xf32>
    %175 = vector.shape_cast %174 : vector<64xf32> to vector<64x1xf32>
    %cst_94 = arith.constant 3.906250e-03 : f32
    %176 = vector.broadcast %cst_94 : f32 to vector<64x1xf32>
    %177 = arith.mulf %175, %176 : vector<64x1xf32>
    %178 = vector.broadcast %177 : vector<64x1xf32> to vector<64x256xf32>
    %179 = arith.subf %169, %178 : vector<64x256xf32>
    %180 = arith.mulf %179, %179 : vector<64x256xf32>
    %cst_95 = arith.constant dense<0.000000e+00> : vector<64xf32>
    %181 = vector.multi_reduction <add>, %180, %cst_95 [1] : vector<64x256xf32> to vector<64xf32>
    %182 = vector.shape_cast %181 : vector<64xf32> to vector<64x1xf32>
    %cst_96 = arith.constant 3.906250e-03 : f32
    %183 = vector.broadcast %cst_96 : f32 to vector<64x1xf32>
    %184 = arith.mulf %182, %183 : vector<64x1xf32>
    %cst_97 = arith.constant 9.99999974E-6 : f32
    %185 = vector.broadcast %cst_97 : f32 to vector<64x1xf32>
    %186 = arith.addf %184, %185 : vector<64x1xf32>
    %187 = math.rsqrt %186 : vector<64x1xf32>
    %188 = vector.broadcast %187 : vector<64x1xf32> to vector<64x256xf32>
    %189 = arith.mulf %179, %188 : vector<64x256xf32>
    %190 = vector.broadcast %171 : vector<64x1xf32> to vector<64x256xf32>
    %191 = arith.mulf %189, %190 : vector<64x256xf32>
    %192 = vector.broadcast %173 : vector<64x1xf32> to vector<64x256xf32>
    %193 = arith.addf %191, %192 : vector<64x256xf32>
    %cst_98 = arith.constant 0.000000e+00 : f32
    %194 = vector.broadcast %cst_98 : f32 to vector<64x256xf32>
    %195 = arith.maximumf %193, %194 : vector<64x256xf32>
    %c1_99 = arith.constant 1 : index
    %c0_100 = arith.constant 0 : index
    %c0_101 = arith.constant 0 : index
    %c0_102 = arith.constant 0 : index
    %196 = vector.load %arg2[%c1_99, %c0_100, %c0_101, %c0_102] : memref<2x2x64x64xf32, #tpu.memory_space<vmem>>, vector<1x1x64x64xf32>
    %197 = vector.shape_cast %196 : vector<1x1x64x64xf32> to vector<64x64xf32>
    %cst_103 = arith.constant dense<0.000000e+00> : vector<64x256xf32>
    %198 = tpu.matmul %197, %195, %cst_103 {dimension_numbers = #tpu.dot_dimension_numbers<[1], [0], [0], [1], [0, 0, 1, 1], [], []>} : vector<64x64xf32>, vector<64x256xf32>, vector<64x256xf32> -> vector<64x256xf32>
    %c1_104 = arith.constant 1 : index
    %c1_105 = arith.constant 1 : index
    %c0_106 = arith.constant 0 : index
    %c0_107 = arith.constant 0 : index
    %199 = vector.load %arg5[%c1_104, %c1_105, %c0_106, %c0_107] : memref<2x3x64x1xf32, #tpu.memory_space<vmem>>, vector<1x1x64x1xf32>
    %200 = vector.shape_cast %199 : vector<1x1x64x1xf32> to vector<64x1xf32>
    %c1_108 = arith.constant 1 : index
    %c1_109 = arith.constant 1 : index
    %c0_110 = arith.constant 0 : index
    %c0_111 = arith.constant 0 : index
    %201 = vector.load %arg6[%c1_108, %c1_109, %c0_110, %c0_111] : memref<2x3x64x1xf32, #tpu.memory_space<vmem>>, vector<1x1x64x1xf32>
    %202 = vector.shape_cast %201 : vector<1x1x64x1xf32> to vector<64x1xf32>
    %cst_112 = arith.constant dense<0.000000e+00> : vector<64xf32>
    %203 = vector.multi_reduction <add>, %198, %cst_112 [1] : vector<64x256xf32> to vector<64xf32>
    %204 = vector.shape_cast %203 : vector<64xf32> to vector<64x1xf32>
    %cst_113 = arith.constant 3.906250e-03 : f32
    %205 = vector.broadcast %cst_113 : f32 to vector<64x1xf32>
    %206 = arith.mulf %204, %205 : vector<64x1xf32>
    %207 = vector.broadcast %206 : vector<64x1xf32> to vector<64x256xf32>
    %208 = arith.subf %198, %207 : vector<64x256xf32>
    %209 = arith.mulf %208, %208 : vector<64x256xf32>
    %cst_114 = arith.constant dense<0.000000e+00> : vector<64xf32>
    %210 = vector.multi_reduction <add>, %209, %cst_114 [1] : vector<64x256xf32> to vector<64xf32>
    %211 = vector.shape_cast %210 : vector<64xf32> to vector<64x1xf32>
    %cst_115 = arith.constant 3.906250e-03 : f32
    %212 = vector.broadcast %cst_115 : f32 to vector<64x1xf32>
    %213 = arith.mulf %211, %212 : vector<64x1xf32>
    %cst_116 = arith.constant 9.99999974E-6 : f32
    %214 = vector.broadcast %cst_116 : f32 to vector<64x1xf32>
    %215 = arith.addf %213, %214 : vector<64x1xf32>
    %216 = math.rsqrt %215 : vector<64x1xf32>
    %217 = vector.broadcast %216 : vector<64x1xf32> to vector<64x256xf32>
    %218 = arith.mulf %208, %217 : vector<64x256xf32>
    %219 = vector.broadcast %200 : vector<64x1xf32> to vector<64x256xf32>
    %220 = arith.mulf %218, %219 : vector<64x256xf32>
    %221 = vector.broadcast %202 : vector<64x1xf32> to vector<64x256xf32>
    %222 = arith.addf %220, %221 : vector<64x256xf32>
    %cst_117 = arith.constant 0.000000e+00 : f32
    %223 = vector.broadcast %cst_117 : f32 to vector<64x256xf32>
    %224 = arith.maximumf %222, %223 : vector<64x256xf32>
    %c1_118 = arith.constant 1 : index
    %c1_119 = arith.constant 1 : index
    %c0_120 = arith.constant 0 : index
    %c0_121 = arith.constant 0 : index
    %225 = vector.load %arg2[%c1_118, %c1_119, %c0_120, %c0_121] : memref<2x2x64x64xf32, #tpu.memory_space<vmem>>, vector<1x1x64x64xf32>
    %226 = vector.shape_cast %225 : vector<1x1x64x64xf32> to vector<64x64xf32>
    %cst_122 = arith.constant dense<0.000000e+00> : vector<64x256xf32>
    %227 = tpu.matmul %226, %224, %cst_122 {dimension_numbers = #tpu.dot_dimension_numbers<[1], [0], [0], [1], [0, 0, 1, 1], [], []>} : vector<64x64xf32>, vector<64x256xf32>, vector<64x256xf32> -> vector<64x256xf32>
    %c1_123 = arith.constant 1 : index
    %c2_124 = arith.constant 2 : index
    %c0_125 = arith.constant 0 : index
    %c0_126 = arith.constant 0 : index
    %228 = vector.load %arg5[%c1_123, %c2_124, %c0_125, %c0_126] : memref<2x3x64x1xf32, #tpu.memory_space<vmem>>, vector<1x1x64x1xf32>
    %229 = vector.shape_cast %228 : vector<1x1x64x1xf32> to vector<64x1xf32>
    %c1_127 = arith.constant 1 : index
    %c2_128 = arith.constant 2 : index
    %c0_129 = arith.constant 0 : index
    %c0_130 = arith.constant 0 : index
    %230 = vector.load %arg6[%c1_127, %c2_128, %c0_129, %c0_130] : memref<2x3x64x1xf32, #tpu.memory_space<vmem>>, vector<1x1x64x1xf32>
    %231 = vector.shape_cast %230 : vector<1x1x64x1xf32> to vector<64x1xf32>
    %cst_131 = arith.constant dense<0.000000e+00> : vector<64xf32>
    %232 = vector.multi_reduction <add>, %227, %cst_131 [1] : vector<64x256xf32> to vector<64xf32>
    %233 = vector.shape_cast %232 : vector<64xf32> to vector<64x1xf32>
    %cst_132 = arith.constant 3.906250e-03 : f32
    %234 = vector.broadcast %cst_132 : f32 to vector<64x1xf32>
    %235 = arith.mulf %233, %234 : vector<64x1xf32>
    %236 = vector.broadcast %235 : vector<64x1xf32> to vector<64x256xf32>
    %237 = arith.subf %227, %236 : vector<64x256xf32>
    %238 = arith.mulf %237, %237 : vector<64x256xf32>
    %cst_133 = arith.constant dense<0.000000e+00> : vector<64xf32>
    %239 = vector.multi_reduction <add>, %238, %cst_133 [1] : vector<64x256xf32> to vector<64xf32>
    %240 = vector.shape_cast %239 : vector<64xf32> to vector<64x1xf32>
    %cst_134 = arith.constant 3.906250e-03 : f32
    %241 = vector.broadcast %cst_134 : f32 to vector<64x1xf32>
    %242 = arith.mulf %240, %241 : vector<64x1xf32>
    %cst_135 = arith.constant 9.99999974E-6 : f32
    %243 = vector.broadcast %cst_135 : f32 to vector<64x1xf32>
    %244 = arith.addf %242, %243 : vector<64x1xf32>
    %245 = math.rsqrt %244 : vector<64x1xf32>
    %246 = vector.broadcast %245 : vector<64x1xf32> to vector<64x256xf32>
    %247 = arith.mulf %237, %246 : vector<64x256xf32>
    %248 = vector.broadcast %229 : vector<64x1xf32> to vector<64x256xf32>
    %249 = arith.mulf %247, %248 : vector<64x256xf32>
    %250 = vector.broadcast %231 : vector<64x1xf32> to vector<64x256xf32>
    %251 = arith.addf %249, %250 : vector<64x256xf32>
    %cst_136 = arith.constant 0.000000e+00 : f32
    %252 = vector.broadcast %cst_136 : f32 to vector<64x256xf32>
    %253 = arith.maximumf %251, %252 : vector<64x256xf32>
    %c1_137 = arith.constant 1 : index
    %c0_138 = arith.constant 0 : index
    %c0_139 = arith.constant 0 : index
    %254 = vector.load %arg3[%c1_137, %c0_138, %c0_139] : memref<2x16x64xf32, #tpu.memory_space<vmem>>, vector<1x16x64xf32>
    %255 = vector.shape_cast %254 : vector<1x16x64xf32> to vector<16x64xf32>
    %cst_140 = arith.constant dense<0.000000e+00> : vector<16x256xf32>
    %256 = tpu.matmul %255, %253, %cst_140 {dimension_numbers = #tpu.dot_dimension_numbers<[1], [0], [0], [1], [0, 0, 1, 1], [], []>} : vector<16x64xf32>, vector<64x256xf32>, vector<16x256xf32> -> vector<16x256xf32>
    %c1_141 = arith.constant 1 : index
    %c0_142 = arith.constant 0 : index
    %c0_143 = arith.constant 0 : index
    %257 = vector.load %arg4[%c1_141, %c0_142, %c0_143] : memref<2x16x1xf32, #tpu.memory_space<vmem>>, vector<1x16x1xf32>
    %258 = vector.shape_cast %257 : vector<1x16x1xf32> to vector<16x1xf32>
    %259 = vector.broadcast %258 : vector<16x1xf32> to vector<16x256xf32>
    %260 = arith.addf %256, %259 : vector<16x256xf32>
    %261 = vector.extract_strided_slice %260 {offsets = [0, 0], sizes = [8, 256], strides = [1, 1]} : vector<16x256xf32> to vector<8x256xf32>
    %262 = math.tanh %261 : vector<8x256xf32>
    %c2_144 = arith.constant 2 : index
    %263 = memref.load %arg7[%c2_144] : memref<4xf32, #tpu.memory_space<smem>>
    %264 = vector.broadcast %263 : f32 to vector<8x256xf32>
    %265 = arith.mulf %262, %264 : vector<8x256xf32>
    %c3 = arith.constant 3 : index
    %266 = memref.load %arg7[%c3] : memref<4xf32, #tpu.memory_space<smem>>
    %267 = vector.broadcast %266 : f32 to vector<8x256xf32>
    %268 = arith.addf %265, %267 : vector<8x256xf32>
    %269 = vector.extract_strided_slice %260 {offsets = [8, 0], sizes = [8, 256], strides = [1, 1]} : vector<16x256xf32> to vector<8x256xf32>
    %270 = math.exp %268 : vector<8x256xf32>
    %271 = arith.mulf %168, %270 : vector<8x256xf32>
    %272 = arith.addf %271, %269 : vector<8x256xf32>
    %cst_145 = arith.constant dense<0.000000e+00> : vector<256xf32>
    %273 = vector.multi_reduction <add>, %268, %cst_145 [0] : vector<8x256xf32> to vector<256xf32>
    %274 = vector.shape_cast %273 : vector<256xf32> to vector<1x256xf32>
    %275 = arith.addf %164, %274 : vector<1x256xf32>
    %c0_146 = arith.constant 0 : index
    %c0_147 = arith.constant 0 : index
    %276 = vector.load %arg8[%c0_146, %c0_147] : memref<8x256xf32, #tpu.memory_space<vmem>>, vector<8x256xf32>
    tpu.vector_store %arg8[%c0_146, %c0_147], %272 {strides = array<i32>} : memref<8x256xf32, #tpu.memory_space<vmem>>, vector<8x256xf32>,
    %c0_148 = arith.constant 0 : index
    %c0_149 = arith.constant 0 : index
    %277 = vector.load %arg9[%c0_148, %c0_149] : memref<1x256xf32, #tpu.memory_space<vmem>>, vector<1x256xf32>
    tpu.vector_store %arg9[%c0_148, %c0_149], %275 {strides = array<i32>} : memref<1x256xf32, #tpu.memory_space<vmem>>, vector<1x256xf32>,
    return
  }
}

</mosaic_0001>

<llo_original>
// kernel: tpu_custom_call.1
$region0: #{tpu_custom_call.1}
  #allocation0 [shape = 'u32[]', space=smem, size = 0x4, offset = 0x4, fixed_abs, tag = 'smem constant byte address 0x4 - core index']
  #allocation1 [shape = 'u32[144,128]{1,0:T(1,128)}', space=vmem, size = 0x12000, scoped, tag = 'internal scratch']
  %s0 = inlined_call_operand.vmem [shape: f32[8,256], index: 0, kind: input, shape index: {}]
  %s1 = inlined_call_operand.vmem [shape: f32[2,72,8], index: 1, kind: input, shape index: {}]
  %s2 = inlined_call_operand.vmem [shape: f32[2,2,64,64], index: 2, kind: input, shape index: {}]
  %s3 = inlined_call_operand.vmem [shape: f32[2,16,64], index: 3, kind: input, shape index: {}]
  %s4 = inlined_call_operand.vmem [shape: f32[2,16,1], index: 4, kind: input, shape index: {}]
  %s5 = inlined_call_operand.vmem [shape: f32[2,3,64,1], index: 5, kind: input, shape index: {}]
  %s6 = inlined_call_operand.vmem [shape: f32[2,3,64,1], index: 6, kind: input, shape index: {}]
  %s7 = inlined_call_operand.vmem [shape: f32[4], index: 7, kind: input, shape index: {}]
  %s8 = inlined_call_operand.hbm [shape: f32[8,256], index: 8, kind: output, shape index: {0}]
  %s9 = inlined_call_operand.hbm [shape: f32[1,256], index: 9, kind: output, shape index: {1}]
  %10 = xla_tuple %s8, %s9
  %s11 = sld [smem:[#allocation0]]
  $region54: #{tpu_custom_call.1} parent=0
    _
  %s13 = ssub.s32 1, %s11
  %s14 = scalar_select 0, %s13, %s11
  $region1: #{tpu_custom_call.1} parent=0
    #allocation2 [shape = 'u8[512]{0}', space=smem, size = 0x200, scoped, tag = 'input window, operand 7, single buffered']
    #allocation3 [shape = 's32[1]{0}', space=sflag, size = 0x4, scoped, tag = 'scoped memory for tpu_custom_call.1']
    #allocation4 [shape = 's32[1]{0}', space=sflag, size = 0x4, scoped, tag = 'scoped memory for tpu_custom_call.1']
    #allocation5 [shape = 'u8[8192]{0}', space=vmem, size = 0x2000, scoped, tag = 'output window, operand 0, single buffered']
    #allocation6 [shape = 'u8[1024]{0}', space=vmem, size = 0x400, scoped, tag = 'output window, operand 1, single buffered']
    #allocation7 [shape = 's32[1]{0}', space=sflag, size = 0x4, scoped, tag = 'scoped memory for tpu_custom_call.1']
    %15 = vsyncpa [#allocation4], 0
    %16 = vsyncpa [#allocation3], 0
    %17 = vsyncpa [#allocation7], 0
    // Predicated region
    $region2: #{tpu_custom_call.1} parent=1 // pred_check
      _
    $region3: #{tpu_custom_call.1} parent=1 // pred_check_branch
      %19 = sbr.rel (0) target = $region5
    $region4: #{tpu_custom_call.1} parent=1 // pred_region
      _
    $region5: #{tpu_custom_call.1} parent=1 // pred_fallthru
      _
    // Predicated region
    $region6: #{tpu_custom_call.1} parent=1 // pred_check
      _
    $region7: #{tpu_custom_call.1} parent=1 // pred_check_branch
      %21 = sbr.rel (0) target = $region9
    $region8: #{tpu_custom_call.1} parent=1 // pred_region
      _
    $region9: #{tpu_custom_call.1} parent=1 // pred_fallthru
      _
    // Predicated region
    $region10: #{tpu_custom_call.1} parent=1 // pred_check
      _
    $region11: #{tpu_custom_call.1} parent=1 // pred_check_branch
      %23 = sbr.rel (0) target = $region13
    $region12: #{tpu_custom_call.1} parent=1 // pred_region
      _
    $region13: #{tpu_custom_call.1} parent=1 // pred_fallthru
      _
    // Predicated region
    $region14: #{tpu_custom_call.1} parent=1 // pred_check
      _
    $region15: #{tpu_custom_call.1} parent=1 // pred_check_branch
      %25 = sbr.rel (0) target = $region17
    $region16: #{tpu_custom_call.1} parent=1 // pred_region
      _
    $region17: #{tpu_custom_call.1} parent=1 // pred_fallthru
      _
    // Predicated region
    $region18: #{tpu_custom_call.1} parent=1 // pred_check
      _
    $region19: #{tpu_custom_call.1} parent=1 // pred_check_branch
      %27 = sbr.rel (0) target = $region21
    $region20: #{tpu_custom_call.1} parent=1 // pred_region
      _
    $region21: #{tpu_custom_call.1} parent=1 // pred_fallthru
      _
    // Predicated region
    $region22: #{tpu_custom_call.1} parent=1 // pred_check
      _
    $region23: #{tpu_custom_call.1} parent=1 // pred_check_branch
      %29 = sbr.rel (0) target = $region25
    $region24: #{tpu_custom_call.1} parent=1 // pred_region
      _
    $region25: #{tpu_custom_call.1} parent=1 // pred_fallthru
      _
    // Predicated region
    $region26: #{tpu_custom_call.1} parent=1 // pred_check
      _
    $region27: #{tpu_custom_call.1} parent=1 // pred_check_branch
      %31 = sbr.rel (0) target = $region29
    $region28: #{tpu_custom_call.1} parent=1 // pred_region
      _
    $region29: #{tpu_custom_call.1} parent=1 // pred_fallthru
      _
    // Predicated region
    $region30: #{tpu_custom_call.1} parent=1 // pred_check
      _
    $region31: #{tpu_custom_call.1} parent=1 // pred_check_branch
      %33 = sbr.rel (0) target = $region33
    $region32: #{tpu_custom_call.1} parent=1 // pred_region
      %s35 = ssub.s32 16, 16
      %36 = vsyncadd [#allocation4], %s35
      %s38 = sshll.u32 %s7, 4
      %s39 = int_to_ptr.vmem [resolvable:$true] %s38
      %41 = dma.vmem_to_smem %s39, 16, [#allocation2], [#allocation4]
    $region33: #{tpu_custom_call.1} parent=1 // pred_fallthru
      _
    // Predicated region
    $region34: #{tpu_custom_call.1} parent=1 // pred_check
      _
    $region35: #{tpu_custom_call.1} parent=1 // pred_check_branch
      %43 = sbr.rel (0) target = $region37
    $region36: #{tpu_custom_call.1} parent=1 // pred_region
      %44 = dma.done [#allocation4], 16
    $region37: #{tpu_custom_call.1} parent=1 // pred_fallthru
      _
    %45 = sfence
    %v46 = vld [vmem:[%s0] sm:$0xff]
    %v47 = vld [vmem:[%s0 + $0x8] sm:$0xff]
    %v48 = vadd.f32 %v46, %v47
    %49 = vadd.xlane.f32.xlu0 %v48
    %v50 = vpop.xlane.xlu0 %49
    %v51 = vmul.f32 %v50, 0.00390625
    %v52 = vsub.f32 %v46, %v51
    %v53 = vsub.f32 %v47, %v51
    %v54 = vmul.f32 %v52, %v52
    %v55 = vmul.f32 %v53, %v53
    %v56 = vadd.f32 %v54, %v55
    %57 = vadd.xlane.f32.xlu0 %v56
    %v58 = vpop.xlane.xlu0 %57
    %v59 = vmul.f32 %v58, 0.00390625
    %v60 = vadd.f32 %v59, 1e-05
    %v61 = vrsqrt.pop %v60
    %v62 = vmul.f32 %v52, %v61
    %v63 = vmul.f32 %v53, %v61
    %v64 = vlog2.pop %v60
    %v65 = vmul.f32 %v64, 0.6931472
    %vm66 = vcmask 7168
    %v67 = vsel %vm66, %v65, 0.0
    %68 = vadd.xlane.f32.xlu0 %v67
    %v69 = vpop.xlane.xlu0 %68
    %v70 = vrot.slane %v69, 4
    %v71 = vadd.f32 %v69, %v70
    %v72 = vrot.slane %v71, 2
    %v73 = vadd.f32 %v71, %v72
    %v74 = vrot.slane %v73, 1
    %v75 = vadd.f32 %v73, %v74
    %s76 = vtos %v75
    %s77 = smul.f32 %s76, 0.5
    %v78 = vstv %s77
    %v79 = vsub.f32 0.0, %v78
    %v80 = vld [vmem:[%s1] sm:$0xff]
    %v81 = vld [vmem:[%s1 + $0x8] sm:$0xff]
    %v82 = vld [vmem:[%s1 + $0x10] sm:$0xff]
    %v83 = vld [vmem:[%s1 + $0x18] sm:$0xff]
    %v84 = vld [vmem:[%s1 + $0x20] sm:$0xff]
    %v85 = vld [vmem:[%s1 + $0x28] sm:$0xff]
    %v86 = vld [vmem:[%s1 + $0x30] sm:$0xff]
    %v87 = vld [vmem:[%s1 + $0x38] sm:$0xff]
    %v88 = vld [vmem:[%s1 + $0x40] sm:$0xff]
    %vm89 = vcmask 64512
    %v91 = vsel %vm89, %v80, 0
    %v94 = vsel %vm89, %v81, 0
    %v97 = vsel %vm89, %v82, 0
    %v100 = vsel %vm89, %v83, 0
    %v103 = vsel %vm89, %v84, 0
    %v106 = vsel %vm89, %v85, 0
    %v109 = vsel %vm89, %v86, 0
    %v112 = vsel %vm89, %v87, 0
    %v115 = vsel %vm89, %v88, 0
    %117 = vmatprep.subr.mxu0 0.0
    %118 = vmatpush1.msra.mxu0 0.0
    %119 = vmatprep.subr.mxu0 0.0
    %120 = vmatpush1.msra.mxu0 0.0
    %121 = vmatprep.subr.mxu0 0.0
    %122 = vmatpush1.msra.mxu0 0.0
    %123 = vmatprep.subr.mxu0 0.0
    %124 = vmatpush1.msra.mxu0 0.0
    %125 = vmatprep.subr.mxu0 0.0
    %126 = vmatpush1.msra.mxu0 0.0
    %127 = vmatprep.subr.mxu0 0.0
    %128 = vmatpush1.msra.mxu0 0.0
    %129 = vmatprep.subr.mxu0 0.0
    %130 = vmatpush1.msra.mxu0 0.0
    %131 = vmatprep.subr.mxu0 0.0
    %132 = vmatpush1.msra.mxu0 0.0
    %133 = vmatprep.subr.mxu0 0.0
    %134 = vmatpush1.msra.mxu0 0.0
    %135 = vmatprep.subr.mxu0 0.0
    %136 = vmatpush1.msra.mxu0 0.0
    %137 = vmatprep.subr.mxu0 0.0
    %138 = vmatpush1.msra.mxu0 0.0
    %139 = vmatprep.subr.mxu0 0.0
    %140 = vmatpush1.msra.mxu0 0.0
    %141 = vmatprep.subr.mxu0 0.0
    %142 = vmatpush1.msra.mxu0 0.0
    %143 = vmatprep.subr.mxu0 0.0
    %144 = vmatpush1.msra.mxu0 0.0
    %145 = vmatprep.subr.mxu0 0.0
    %146 = vmatpush1.msra.mxu0 0.0
    %147 = vmatprep.subr.mxu0 %v63
    %148 = vmatpush1.msra.mxu0 %v62
    %149 = vmatprep.subr.mxu0 0.0
    %150 = vmatpush2.msra.mxu0 0.0
    %151 = vmatprep.subr.mxu0 0.0
    %152 = vmatpush2.msra.mxu0 0.0
    %153 = vmatprep.subr.mxu0 0.0
    %154 = vmatpush2.msra.mxu0 0.0
    %155 = vmatprep.subr.mxu0 0.0
    %156 = vmatpush2.msra.mxu0 0.0
    %157 = vmatprep.subr.mxu0 0.0
    %158 = vmatpush2.msra.mxu0 0.0
    %159 = vmatprep.subr.mxu0 0.0
    %160 = vmatpush2.msra.mxu0 0.0
    %161 = vmatprep.subr.mxu0 0.0
    %162 = vmatpush2.msra.mxu0 0.0
    %163 = vmatprep.subr.mxu0 0.0
    %164 = vmatpush2.msra.mxu0 0.0
    %165 = vmatprep.subr.mxu0 0.0
    %166 = vmatpush2.msra.mxu0 0.0
    %167 = vmatprep.subr.mxu0 0.0
    %168 = vmatpush2.msra.mxu0 0.0
    %169 = vmatprep.subr.mxu0 0.0
    %170 = vmatpush2.msra.mxu0 0.0
    %171 = vmatprep.subr.mxu0 0.0
    %172 = vmatpush2.msra.mxu0 0.0
    %173 = vmatprep.subr.mxu0 0.0
    %174 = vmatpush2.msra.mxu0 0.0
    %175 = vmatprep.subr.mxu0 0.0
    %176 = vmatpush2.msra.mxu0 0.0
    %177 = vmatprep.subr.mxu0 0.0
    %178 = vmatpush2.msra.mxu0 0.0
    %179 = vmatprep.subr.mxu0 0.0
    %180 = vmatpush2.msra.mxu0 0.0
    %181 = vmatprep.mubr.f32.mxu0 0.0
    %182 = vmatmul.mubr.f32.gmra.mxu0 %v91
    %v183 = vpop.f32.mrf.mxu0
    %v184 = vadd.f32 0.0, %v183
    %v185 = vpop.f32.mrf.mxu0
    %v186 = vadd.f32 0.0, %v185
    %187 = vmatprep.mubr.f32.mxu0 0.0
    %188 = vmatmul.mubr.f32.gmra.mxu0 %v94
    %v189 = vpop.f32.mrf.mxu0
    %v190 = vadd.f32 0.0, %v189
    %v191 = vpop.f32.mrf.mxu0
    %v192 = vadd.f32 0.0, %v191
    %193 = vmatprep.mubr.f32.mxu0 0.0
    %194 = vmatmul.mubr.f32.gmra.mxu0 %v97
    %v195 = vpop.f32.mrf.mxu0
    %v196 = vadd.f32 0.0, %v195
    %v197 = vpop.f32.mrf.mxu0
    %v198 = vadd.f32 0.0, %v197
    %199 = vmatprep.mubr.f32.mxu0 0.0
    %200 = vmatmul.mubr.f32.gmra.mxu0 %v100
    %v201 = vpop.f32.mrf.mxu0
    %v202 = vadd.f32 0.0, %v201
    %v203 = vpop.f32.mrf.mxu0
    %v204 = vadd.f32 0.0, %v203
    %205 = vmatprep.mubr.f32.mxu0 0.0
    %206 = vmatmul.mubr.f32.gmra.mxu0 %v103
    %v207 = vpop.f32.mrf.mxu0
    %v208 = vadd.f32 0.0, %v207
    %v209 = vpop.f32.mrf.mxu0
    %v210 = vadd.f32 0.0, %v209
    %211 = vmatprep.mubr.f32.mxu0 0.0
    %212 = vmatmul.mubr.f32.gmra.mxu0 %v106
    %v213 = vpop.f32.mrf.mxu0
    %v214 = vadd.f32 0.0, %v213
    %v215 = vpop.f32.mrf.mxu0
    %v216 = vadd.f32 0.0, %v215
    %217 = vmatprep.mubr.f32.mxu0 0.0
    %218 = vmatmul.mubr.f32.gmra.mxu0 %v109
    %v219 = vpop.f32.mrf.mxu0
    %v220 = vadd.f32 0.0, %v219
    %v221 = vpop.f32.mrf.mxu0
    %v222 = vadd.f32 0.0, %v221
    %223 = vmatprep.mubr.f32.mxu0 0.0
    %224 = vmatmul.mubr.f32.gmra.mxu0 %v112
    %v225 = vpop.f32.mrf.mxu0
    %v226 = vadd.f32 0.0, %v225
    %v227 = vpop.f32.mrf.mxu0
    %v228 = vadd.f32 0.0, %v227
    %229 = vmatprep.mubr.f32.mxu0 0.0
    %230 = vmatmul.mubr.f32.gmra.mxu0 %v115
    %v231 = vpop.f32.mrf.mxu0
    %v232 = vadd.f32 0.0, %v231
    %v233 = vpop.f32.mrf.mxu0
    %v234 = vadd.f32 0.0, %v233
    %235 = vdwg.mxu0
    %v236 = vld [vmem:[%s5] sm:$0xff]
    %v237 = vld [vmem:[%s5 + $0x8] sm:$0xff]
    %v238 = vld [vmem:[%s5 + $0x10] sm:$0xff]
    %v239 = vld [vmem:[%s5 + $0x18] sm:$0xff]
    %v240 = vld [vmem:[%s5 + $0x20] sm:$0xff]
    %v241 = vld [vmem:[%s5 + $0x28] sm:$0xff]
    %v242 = vld [vmem:[%s5 + $0x30] sm:$0xff]
    %v243 = vld [vmem:[%s5 + $0x38] sm:$0xff]
    %v244 = vld [vmem:[%s6] sm:$0xff]
    %v245 = vld [vmem:[%s6 + $0x8] sm:$0xff]
    %v246 = vld [vmem:[%s6 + $0x10] sm:$0xff]
    %v247 = vld [vmem:[%s6 + $0x18] sm:$0xff]
    %v248 = vld [vmem:[%s6 + $0x20] sm:$0xff]
    %v249 = vld [vmem:[%s6 + $0x28] sm:$0xff]
    %v250 = vld [vmem:[%s6 + $0x30] sm:$0xff]
    %v251 = vld [vmem:[%s6 + $0x38] sm:$0xff]
    %v252 = vadd.f32 %v190, %v192
    %253 = vadd.xlane.f32.xlu0 %v252
    %v254 = vpop.xlane.xlu0 %253
    %v255 = vadd.f32 %v196, %v198
    %256 = vadd.xlane.f32.xlu0 %v255
    %v257 = vpop.xlane.xlu0 %256
    %v258 = vadd.f32 %v202, %v204
    %259 = vadd.xlane.f32.xlu0 %v258
    %v260 = vpop.xlane.xlu0 %259
    %v261 = vadd.f32 %v208, %v210
    %262 = vadd.xlane.f32.xlu0 %v261
    %v263 = vpop.xlane.xlu0 %262
    %v264 = vadd.f32 %v214, %v216
    %265 = vadd.xlane.f32.xlu0 %v264
    %v266 = vpop.xlane.xlu0 %265
    %v267 = vadd.f32 %v220, %v222
    %268 = vadd.xlane.f32.xlu0 %v267
    %v269 = vpop.xlane.xlu0 %268
    %v270 = vadd.f32 %v226, %v228
    %271 = vadd.xlane.f32.xlu0 %v270
    %v272 = vpop.xlane.xlu0 %271
    %v273 = vadd.f32 %v232, %v234
    %274 = vadd.xlane.f32.xlu0 %v273
    %v275 = vpop.xlane.xlu0 %274
    %v276 = vmul.f32 %v254, 0.00390625
    %v277 = vmul.f32 %v257, 0.00390625
    %v278 = vmul.f32 %v260, 0.00390625
    %v279 = vmul.f32 %v263, 0.00390625
    %v280 = vmul.f32 %v266, 0.00390625
    %v281 = vmul.f32 %v269, 0.00390625
    %v282 = vmul.f32 %v272, 0.00390625
    %v283 = vmul.f32 %v275, 0.00390625
    %v284 = vsub.f32 %v190, %v276
    %v285 = vsub.f32 %v192, %v276
    %v286 = vsub.f32 %v196, %v277
    %v287 = vsub.f32 %v198, %v277
    %v288 = vsub.f32 %v202, %v278
    %v289 = vsub.f32 %v204, %v278
    %v290 = vsub.f32 %v208, %v279
    %v291 = vsub.f32 %v210, %v279
    %v292 = vsub.f32 %v214, %v280
    %v293 = vsub.f32 %v216, %v280
    %v294 = vsub.f32 %v220, %v281
    %v295 = vsub.f32 %v222, %v281
    %v296 = vsub.f32 %v226, %v282
    %v297 = vsub.f32 %v228, %v282
    %v298 = vsub.f32 %v232, %v283
    %v299 = vsub.f32 %v234, %v283
    %v300 = vmul.f32 %v284, %v284
    %v301 = vmul.f32 %v285, %v285
    %v302 = vmul.f32 %v286, %v286
    %v303 = vmul.f32 %v287, %v287
    %v304 = vmul.f32 %v288, %v288
    %v305 = vmul.f32 %v289, %v289
    %v306 = vmul.f32 %v290, %v290
    %v307 = vmul.f32 %v291, %v291
    %v308 = vmul.f32 %v292, %v292
    %v309 = vmul.f32 %v293, %v293
    %v310 = vmul.f32 %v294, %v294
    %v311 = vmul.f32 %v295, %v295
    %v312 = vmul.f32 %v296, %v296
    %v313 = vmul.f32 %v297, %v297
    %v314 = vmul.f32 %v298, %v298
    %v315 = vmul.f32 %v299, %v299
    %v316 = vadd.f32 %v300, %v301
    %317 = vadd.xlane.f32.xlu0 %v316
    %v318 = vpop.xlane.xlu0 %317
    %v319 = vadd.f32 %v302, %v303
    %320 = vadd.xlane.f32.xlu0 %v319
    %v321 = vpop.xlane.xlu0 %320
    %v322 = vadd.f32 %v304, %v305
    %323 = vadd.xlane.f32.xlu0 %v322
    %v324 = vpop.xlane.xlu0 %323
    %v325 = vadd.f32 %v306, %v307
    %326 = vadd.xlane.f32.xlu0 %v325
    %v327 = vpop.xlane.xlu0 %326
    %v328 = vadd.f32 %v308, %v309
    %329 = vadd.xlane.f32.xlu0 %v328
    %v330 = vpop.xlane.xlu0 %329
    %v331 = vadd.f32 %v310, %v311
    %332 = vadd.xlane.f32.xlu0 %v331
    %v333 = vpop.xlane.xlu0 %332
    %v334 = vadd.f32 %v312, %v313
    %335 = vadd.xlane.f32.xlu0 %v334
    %v336 = vpop.xlane.xlu0 %335
    %v337 = vadd.f32 %v314, %v315
    %338 = vadd.xlane.f32.xlu0 %v337
    %v339 = vpop.xlane.xlu0 %338
    %v340 = vmul.f32 %v318, 0.00390625
    %v341 = vmul.f32 %v321, 0.00390625
    %v342 = vmul.f32 %v324, 0.00390625
    %v343 = vmul.f32 %v327, 0.00390625
    %v344 = vmul.f32 %v330, 0.00390625
    %v345 = vmul.f32 %v333, 0.00390625
    %v346 = vmul.f32 %v336, 0.00390625
    %v347 = vmul.f32 %v339, 0.00390625
    %v348 = vadd.f32 %v340, 1e-05
    %v349 = vadd.f32 %v341, 1e-05
    %v350 = vadd.f32 %v342, 1e-05
    %v351 = vadd.f32 %v343, 1e-05
    %v352 = vadd.f32 %v344, 1e-05
    %v353 = vadd.f32 %v345, 1e-05
    %v354 = vadd.f32 %v346, 1e-05
    %v355 = vadd.f32 %v347, 1e-05
    %v356 = vrsqrt.pop %v348
    %v357 = vrsqrt.pop %v349
    %v358 = vrsqrt.pop %v350
    %v359 = vrsqrt.pop %v351
    %v360 = vrsqrt.pop %v352
    %v361 = vrsqrt.pop %v353
    %v362 = vrsqrt.pop %v354
    %v363 = vrsqrt.pop %v355
    %v364 = vmul.f32 %v284, %v356
    %v365 = vmul.f32 %v285, %v356
    %v366 = vmul.f32 %v286, %v357
    %v367 = vmul.f32 %v287, %v357
    %v368 = vmul.f32 %v288, %v358
    %v369 = vmul.f32 %v289, %v358
    %v370 = vmul.f32 %v290, %v359
    %v371 = vmul.f32 %v291, %v359
    %v372 = vmul.f32 %v292, %v360
    %v373 = vmul.f32 %v293, %v360
    %v374 = vmul.f32 %v294, %v361
    %v375 = vmul.f32 %v295, %v361
    %v376 = vmul.f32 %v296, %v362
    %v377 = vmul.f32 %v297, %v362
    %v378 = vmul.f32 %v298, %v363
    %v379 = vmul.f32 %v299, %v363
    %381 = vset.pattern.permute.xlu0 0
    %382 = vperm.xlu0 %381, %v236
    %v383 = vpop.permute.xlu0 %382
    %386 = vset.pattern.permute.xlu0 0
    %387 = vperm.xlu0 %386, %v237
    %v388 = vpop.permute.xlu0 %387
    %391 = vset.pattern.permute.xlu0 0
    %392 = vperm.xlu0 %391, %v238
    %v393 = vpop.permute.xlu0 %392
    %396 = vset.pattern.permute.xlu0 0
    %397 = vperm.xlu0 %396, %v239
    %v398 = vpop.permute.xlu0 %397
    %401 = vset.pattern.permute.xlu0 0
    %402 = vperm.xlu0 %401, %v240
    %v403 = vpop.permute.xlu0 %402
    %406 = vset.pattern.permute.xlu0 0
    %407 = vperm.xlu0 %406, %v241
    %v408 = vpop.permute.xlu0 %407
    %411 = vset.pattern.permute.xlu0 0
    %412 = vperm.xlu0 %411, %v242
    %v413 = vpop.permute.xlu0 %412
    %416 = vset.pattern.permute.xlu0 0
    %417 = vperm.xlu0 %416, %v243
    %v418 = vpop.permute.xlu0 %417
    %v420 = vmul.f32 %v364, %v383
    %v421 = vmul.f32 %v365, %v383
    %v422 = vmul.f32 %v366, %v388
    %v423 = vmul.f32 %v367, %v388
    %v424 = vmul.f32 %v368, %v393
    %v425 = vmul.f32 %v369, %v393
    %v426 = vmul.f32 %v370, %v398
    %v427 = vmul.f32 %v371, %v398
    %v428 = vmul.f32 %v372, %v403
    %v429 = vmul.f32 %v373, %v403
    %v430 = vmul.f32 %v374, %v408
    %v431 = vmul.f32 %v375, %v408
    %v432 = vmul.f32 %v376, %v413
    %v433 = vmul.f32 %v377, %v413
    %v434 = vmul.f32 %v378, %v418
    %v435 = vmul.f32 %v379, %v418
    %437 = vset.pattern.permute.xlu0 0
    %438 = vperm.xlu0 %437, %v244
    %v439 = vpop.permute.xlu0 %438
    %442 = vset.pattern.permute.xlu0 0
    %443 = vperm.xlu0 %442, %v245
    %v444 = vpop.permute.xlu0 %443
    %447 = vset.pattern.permute.xlu0 0
    %448 = vperm.xlu0 %447, %v246
    %v449 = vpop.permute.xlu0 %448
    %452 = vset.pattern.permute.xlu0 0
    %453 = vperm.xlu0 %452, %v247
    %v454 = vpop.permute.xlu0 %453
    %457 = vset.pattern.permute.xlu0 0
    %458 = vperm.xlu0 %457, %v248
    %v459 = vpop.permute.xlu0 %458
    %462 = vset.pattern.permute.xlu0 0
    %463 = vperm.xlu0 %462, %v249
    %v464 = vpop.permute.xlu0 %463
    %467 = vset.pattern.permute.xlu0 0
    %468 = vperm.xlu0 %467, %v250
    %v469 = vpop.permute.xlu0 %468
    %472 = vset.pattern.permute.xlu0 0
    %473 = vperm.xlu0 %472, %v251
    %v474 = vpop.permute.xlu0 %473
    %v476 = vadd.f32 %v420, %v439
    %v477 = vadd.f32 %v421, %v439
    %v478 = vadd.f32 %v422, %v444
    %v479 = vadd.f32 %v423, %v444
    %v480 = vadd.f32 %v424, %v449
    %v481 = vadd.f32 %v425, %v449
    %v482 = vadd.f32 %v426, %v454
    %v483 = vadd.f32 %v427, %v454
    %v484 = vadd.f32 %v428, %v459
    %v485 = vadd.f32 %v429, %v459
    %v486 = vadd.f32 %v430, %v464
    %v487 = vadd.f32 %v431, %v464
    %v488 = vadd.f32 %v432, %v469
    %v489 = vadd.f32 %v433, %v469
    %v490 = vadd.f32 %v434, %v474
    %v491 = vadd.f32 %v435, %v474
    %v492 = vmax.f32 %v476, 0.0
    %v493 = vmax.f32 %v477, 0.0
    %v494 = vmax.f32 %v478, 0.0
    %v495 = vmax.f32 %v479, 0.0
    %v496 = vmax.f32 %v480, 0.0
    %v497 = vmax.f32 %v481, 0.0
    %v498 = vmax.f32 %v482, 0.0
    %v499 = vmax.f32 %v483, 0.0
    %v500 = vmax.f32 %v484, 0.0
    %v501 = vmax.f32 %v485, 0.0
    %v502 = vmax.f32 %v486, 0.0
    %v503 = vmax.f32 %v487, 0.0
    %v504 = vmax.f32 %v488, 0.0
    %v505 = vmax.f32 %v489, 0.0
    %v506 = vmax.f32 %v490, 0.0
    %v507 = vmax.f32 %v491, 0.0
    %v508 = vld [vmem:[%s2] sm:$0xff]
    %v509 = vld [vmem:[%s2 + $0x8] sm:$0xff]
    %v510 = vld [vmem:[%s2 + $0x10] sm:$0xff]
    %v511 = vld [vmem:[%s2 + $0x18] sm:$0xff]
    %v512 = vld [vmem:[%s2 + $0x20] sm:$0xff]
    %v513 = vld [vmem:[%s2 + $0x28] sm:$0xff]
    %v514 = vld [vmem:[%s2 + $0x30] sm:$0xff]
    %v515 = vld [vmem:[%s2 + $0x38] sm:$0xff]
    %vm516 = vcmask 523264
    %v518 = vsel %vm516, %v508, 0
    %v521 = vsel %vm516, %v509, 0
    %v524 = vsel %vm516, %v510, 0
    %v527 = vsel %vm516, %v511, 0
    %v530 = vsel %vm516, %v512, 0
    %v533 = vsel %vm516, %v513, 0
    %v536 = vsel %vm516, %v514, 0
    %v539 = vsel %vm516, %v515, 0
    %541 = vmatprep.subr.mxu0 0.0
    %542 = vmatpush1.msra.mxu0 0.0
    %543 = vmatprep.subr.mxu0 0.0
    %544 = vmatpush1.msra.mxu0 0.0
    %545 = vmatprep.subr.mxu0 0.0
    %546 = vmatpush1.msra.mxu0 0.0
    %547 = vmatprep.subr.mxu0 0.0
    %548 = vmatpush1.msra.mxu0 0.0
    %549 = vmatprep.subr.mxu0 0.0
    %550 = vmatpush1.msra.mxu0 0.0
    %551 = vmatprep.subr.mxu0 0.0
    %552 = vmatpush1.msra.mxu0 0.0
    %553 = vmatprep.subr.mxu0 0.0
    %554 = vmatpush1.msra.mxu0 0.0
    %555 = vmatprep.subr.mxu0 0.0
    %556 = vmatpush1.msra.mxu0 0.0
    %557 = vmatprep.subr.mxu0 %v507
    %558 = vmatpush1.msra.mxu0 %v506
    %559 = vmatprep.subr.mxu0 %v505
    %560 = vmatpush1.msra.mxu0 %v504
    %561 = vmatprep.subr.mxu0 %v503
    %562 = vmatpush1.msra.mxu0 %v502
    %563 = vmatprep.subr.mxu0 %v501
    %564 = vmatpush1.msra.mxu0 %v500
    %565 = vmatprep.subr.mxu0 %v499
    %566 = vmatpush1.msra.mxu0 %v498
    %567 = vmatprep.subr.mxu0 %v497
    %568 = vmatpush1.msra.mxu0 %v496
    %569 = vmatprep.subr.mxu0 %v495
    %570 = vmatpush1.msra.mxu0 %v494
    %571 = vmatprep.subr.mxu0 %v493
    %572 = vmatpush1.msra.mxu0 %v492
    %573 = vmatprep.subr.mxu0 0.0
    %574 = vmatpush2.msra.mxu0 0.0
    %575 = vmatprep.subr.mxu0 0.0
    %576 = vmatpush2.msra.mxu0 0.0
    %577 = vmatprep.subr.mxu0 0.0
    %578 = vmatpush2.msra.mxu0 0.0
    %579 = vmatprep.subr.mxu0 0.0
    %580 = vmatpush2.msra.mxu0 0.0
    %581 = vmatprep.subr.mxu0 0.0
    %582 = vmatpush2.msra.mxu0 0.0
    %583 = vmatprep.subr.mxu0 0.0
    %584 = vmatpush2.msra.mxu0 0.0
    %585 = vmatprep.subr.mxu0 0.0
    %586 = vmatpush2.msra.mxu0 0.0
    %587 = vmatprep.subr.mxu0 0.0
    %588 = vmatpush2.msra.mxu0 0.0
    %589 = vmatprep.subr.mxu0 0.0
    %590 = vmatpush2.msra.mxu0 0.0
    %591 = vmatprep.subr.mxu0 0.0
    %592 = vmatpush2.msra.mxu0 0.0
    %593 = vmatprep.subr.mxu0 0.0
    %594 = vmatpush2.msra.mxu0 0.0
    %595 = vmatprep.subr.mxu0 0.0
    %596 = vmatpush2.msra.mxu0 0.0
    %597 = vmatprep.subr.mxu0 0.0
    %598 = vmatpush2.msra.mxu0 0.0
    %599 = vmatprep.subr.mxu0 0.0
    %600 = vmatpush2.msra.mxu0 0.0
    %601 = vmatprep.subr.mxu0 0.0
    %602 = vmatpush2.msra.mxu0 0.0
    %603 = vmatprep.subr.mxu0 0.0
    %604 = vmatpush2.msra.mxu0 0.0
    %605 = vmatprep.mubr.f32.mxu0 0.0
    %606 = vmatmul.mubr.f32.gmra.mxu0 %v518
    %v607 = vpop.f32.mrf.mxu0
    %v608 = vadd.f32 0.0, %v607
    %v609 = vpop.f32.mrf.mxu0
    %v610 = vadd.f32 0.0, %v609
    %611 = vmatprep.mubr.f32.mxu0 0.0
    %612 = vmatmul.mubr.f32.gmra.mxu0 %v521
    %v613 = vpop.f32.mrf.mxu0
    %v614 = vadd.f32 0.0, %v613
    %v615 = vpop.f32.mrf.mxu0
    %v616 = vadd.f32 0.0, %v615
    %617 = vmatprep.mubr.f32.mxu0 0.0
    %618 = vmatmul.mubr.f32.gmra.mxu0 %v524
    %v619 = vpop.f32.mrf.mxu0
    %v620 = vadd.f32 0.0, %v619
    %v621 = vpop.f32.mrf.mxu0
    %v622 = vadd.f32 0.0, %v621
    %623 = vmatprep.mubr.f32.mxu0 0.0
    %624 = vmatmul.mubr.f32.gmra.mxu0 %v527
    %v625 = vpop.f32.mrf.mxu0
    %v626 = vadd.f32 0.0, %v625
    %v627 = vpop.f32.mrf.mxu0
    %v628 = vadd.f32 0.0, %v627
    %629 = vmatprep.mubr.f32.mxu0 0.0
    %630 = vmatmul.mubr.f32.gmra.mxu0 %v530
    %v631 = vpop.f32.mrf.mxu0
    %v632 = vadd.f32 0.0, %v631
    %v633 = vpop.f32.mrf.mxu0
    %v634 = vadd.f32 0.0, %v633
    %635 = vmatprep.mubr.f32.mxu0 0.0
    %636 = vmatmul.mubr.f32.gmra.mxu0 %v533
    %v637 = vpop.f32.mrf.mxu0
    %v638 = vadd.f32 0.0, %v637
    %v639 = vpop.f32.mrf.mxu0
    %v640 = vadd.f32 0.0, %v639
    %641 = vmatprep.mubr.f32.mxu0 0.0
    %642 = vmatmul.mubr.f32.gmra.mxu0 %v536
    %v643 = vpop.f32.mrf.mxu0
    %v644 = vadd.f32 0.0, %v643
    %v645 = vpop.f32.mrf.mxu0
    %v646 = vadd.f32 0.0, %v645
    %647 = vmatprep.mubr.f32.mxu0 0.0
    %648 = vmatmul.mubr.f32.gmra.mxu0 %v539
    %v649 = vpop.f32.mrf.mxu0
    %v650 = vadd.f32 0.0, %v649
    %v651 = vpop.f32.mrf.mxu0
    %v652 = vadd.f32 0.0, %v651
    %653 = vdwg.mxu0
    %s654 = scalar_lea.vmem %s5, 64
    %v655 = vld [vmem:[%s654] sm:$0xff]
    %v656 = vld [vmem:[%s654 + $0x8] sm:$0xff]
    %v657 = vld [vmem:[%s654 + $0x10] sm:$0xff]
    %v658 = vld [vmem:[%s654 + $0x18] sm:$0xff]
    %v659 = vld [vmem:[%s654 + $0x20] sm:$0xff]
    %v660 = vld [vmem:[%s654 + $0x28] sm:$0xff]
    %v661 = vld [vmem:[%s654 + $0x30] sm:$0xff]
    %v662 = vld [vmem:[%s654 + $0x38] sm:$0xff]
    %s663 = scalar_lea.vmem %s6, 64
    %v664 = vld [vmem:[%s663] sm:$0xff]
    %v665 = vld [vmem:[%s663 + $0x8] sm:$0xff]
    %v666 = vld [vmem:[%s663 + $0x10] sm:$0xff]
    %v667 = vld [vmem:[%s663 + $0x18] sm:$0xff]
    %v668 = vld [vmem:[%s663 + $0x20] sm:$0xff]
    %v669 = vld [vmem:[%s663 + $0x28] sm:$0xff]
    %v670 = vld [vmem:[%s663 + $0x30] sm:$0xff]
    %v671 = vld [vmem:[%s663 + $0x38] sm:$0xff]
    %v672 = vadd.f32 %v608, %v610
    %673 = vadd.xlane.f32.xlu0 %v672
    %v674 = vpop.xlane.xlu0 %673
    %v675 = vadd.f32 %v614, %v616
    %676 = vadd.xlane.f32.xlu0 %v675
    %v677 = vpop.xlane.xlu0 %676
    %v678 = vadd.f32 %v620, %v622
    %679 = vadd.xlane.f32.xlu0 %v678
    %v680 = vpop.xlane.xlu0 %679
    %v681 = vadd.f32 %v626, %v628
    %682 = vadd.xlane.f32.xlu0 %v681
    %v683 = vpop.xlane.xlu0 %682
    %v684 = vadd.f32 %v632, %v634
    %685 = vadd.xlane.f32.xlu0 %v684
    %v686 = vpop.xlane.xlu0 %685
    %v687 = vadd.f32 %v638, %v640
    %688 = vadd.xlane.f32.xlu0 %v687
    %v689 = vpop.xlane.xlu0 %688
    %v690 = vadd.f32 %v644, %v646
    %691 = vadd.xlane.f32.xlu0 %v690
    %v692 = vpop.xlane.xlu0 %691
    %v693 = vadd.f32 %v650, %v652
    %694 = vadd.xlane.f32.xlu0 %v693
    %v695 = vpop.xlane.xlu0 %694
    %v696 = vmul.f32 %v674, 0.00390625
    %v697 = vmul.f32 %v677, 0.00390625
    %v698 = vmul.f32 %v680, 0.00390625
    %v699 = vmul.f32 %v683, 0.00390625
    %v700 = vmul.f32 %v686, 0.00390625
    %v701 = vmul.f32 %v689, 0.00390625
    %v702 = vmul.f32 %v692, 0.00390625
    %v703 = vmul.f32 %v695, 0.00390625
    %v704 = vsub.f32 %v608, %v696
    %v705 = vsub.f32 %v610, %v696
    %v706 = vsub.f32 %v614, %v697
    %v707 = vsub.f32 %v616, %v697
    %v708 = vsub.f32 %v620, %v698
    %v709 = vsub.f32 %v622, %v698
    %v710 = vsub.f32 %v626, %v699
    %v711 = vsub.f32 %v628, %v699
    %v712 = vsub.f32 %v632, %v700
    %v713 = vsub.f32 %v634, %v700
    %v714 = vsub.f32 %v638, %v701
    %v715 = vsub.f32 %v640, %v701
    %v716 = vsub.f32 %v644, %v702
    %v717 = vsub.f32 %v646, %v702
    %v718 = vsub.f32 %v650, %v703
    %v719 = vsub.f32 %v652, %v703
    %v720 = vmul.f32 %v704, %v704
    %v721 = vmul.f32 %v705, %v705
    %v722 = vmul.f32 %v706, %v706
    %v723 = vmul.f32 %v707, %v707
    %v724 = vmul.f32 %v708, %v708
    %v725 = vmul.f32 %v709, %v709
    %v726 = vmul.f32 %v710, %v710
    %v727 = vmul.f32 %v711, %v711
    %v728 = vmul.f32 %v712, %v712
    %v729 = vmul.f32 %v713, %v713
    %v730 = vmul.f32 %v714, %v714
    %v731 = vmul.f32 %v715, %v715
    %v732 = vmul.f32 %v716, %v716
    %v733 = vmul.f32 %v717, %v717
    %v734 = vmul.f32 %v718, %v718
    %v735 = vmul.f32 %v719, %v719
    %v736 = vadd.f32 %v720, %v721
    %737 = vadd.xlane.f32.xlu0 %v736
    %v738 = vpop.xlane.xlu0 %737
    %v739 = vadd.f32 %v722, %v723
    %740 = vadd.xlane.f32.xlu0 %v739
    %v741 = vpop.xlane.xlu0 %740
    %v742 = vadd.f32 %v724, %v725
    %743 = vadd.xlane.f32.xlu0 %v742
    %v744 = vpop.xlane.xlu0 %743
    %v745 = vadd.f32 %v726, %v727
    %746 = vadd.xlane.f32.xlu0 %v745
    %v747 = vpop.xlane.xlu0 %746
    %v748 = vadd.f32 %v728, %v729
    %749 = vadd.xlane.f32.xlu0 %v748
    %v750 = vpop.xlane.xlu0 %749
    %v751 = vadd.f32 %v730, %v731
    %752 = vadd.xlane.f32.xlu0 %v751
    %v753 = vpop.xlane.xlu0 %752
    %v754 = vadd.f32 %v732, %v733
    %755 = vadd.xlane.f32.xlu0 %v754
    %v756 = vpop.xlane.xlu0 %755
    %v757 = vadd.f32 %v734, %v735
    %758 = vadd.xlane.f32.xlu0 %v757
    %v759 = vpop.xlane.xlu0 %758
    %v760 = vmul.f32 %v738, 0.00390625
    %v761 = vmul.f32 %v741, 0.00390625
    %v762 = vmul.f32 %v744, 0.00390625
    %v763 = vmul.f32 %v747, 0.00390625
    %v764 = vmul.f32 %v750, 0.00390625
    %v765 = vmul.f32 %v753, 0.00390625
    %v766 = vmul.f32 %v756, 0.00390625
    %v767 = vmul.f32 %v759, 0.00390625
    %v768 = vadd.f32 %v760, 1e-05
    %v769 = vadd.f32 %v761, 1e-05
    %v770 = vadd.f32 %v762, 1e-05
    %v771 = vadd.f32 %v763, 1e-05
    %v772 = vadd.f32 %v764, 1e-05
    %v773 = vadd.f32 %v765, 1e-05
    %v774 = vadd.f32 %v766, 1e-05
    %v775 = vadd.f32 %v767, 1e-05
    %v776 = vrsqrt.pop %v768
    %v777 = vrsqrt.pop %v769
    %v778 = vrsqrt.pop %v770
    %v779 = vrsqrt.pop %v771
    %v780 = vrsqrt.pop %v772
    %v781 = vrsqrt.pop %v773
    %v782 = vrsqrt.pop %v774
    %v783 = vrsqrt.pop %v775
    %v784 = vmul.f32 %v704, %v776
    %v785 = vmul.f32 %v705, %v776
    %v786 = vmul.f32 %v706, %v777
    %v787 = vmul.f32 %v707, %v777
    %v788 = vmul.f32 %v708, %v778
    %v789 = vmul.f32 %v709, %v778
    %v790 = vmul.f32 %v710, %v779
    %v791 = vmul.f32 %v711, %v779
    %v792 = vmul.f32 %v712, %v780
    %v793 = vmul.f32 %v713, %v780
    %v794 = vmul.f32 %v714, %v781
    %v795 = vmul.f32 %v715, %v781
    %v796 = vmul.f32 %v716, %v782
    %v797 = vmul.f32 %v717, %v782
    %v798 = vmul.f32 %v718, %v783
    %v799 = vmul.f32 %v719, %v783
    %801 = vset.pattern.permute.xlu0 0
    %802 = vperm.xlu0 %801, %v655
    %v803 = vpop.permute.xlu0 %802
    %806 = vset.pattern.permute.xlu0 0
    %807 = vperm.xlu0 %806, %v656
    %v808 = vpop.permute.xlu0 %807
    %811 = vset.pattern.permute.xlu0 0
    %812 = vperm.xlu0 %811, %v657
    %v813 = vpop.permute.xlu0 %812
    %816 = vset.pattern.permute.xlu0 0
    %817 = vperm.xlu0 %816, %v658
    %v818 = vpop.permute.xlu0 %817
    %821 = vset.pattern.permute.xlu0 0
    %822 = vperm.xlu0 %821, %v659
    %v823 = vpop.permute.xlu0 %822
    %826 = vset.pattern.permute.xlu0 0
    %827 = vperm.xlu0 %826, %v660
    %v828 = vpop.permute.xlu0 %827
    %831 = vset.pattern.permute.xlu0 0
    %832 = vperm.xlu0 %831, %v661
    %v833 = vpop.permute.xlu0 %832
    %836 = vset.pattern.permute.xlu0 0
    %837 = vperm.xlu0 %836, %v662
    %v838 = vpop.permute.xlu0 %837
    %v840 = vmul.f32 %v784, %v803
    %v841 = vmul.f32 %v785, %v803
    %v842 = vmul.f32 %v786, %v808
    %v843 = vmul.f32 %v787, %v808
    %v844 = vmul.f32 %v788, %v813
    %v845 = vmul.f32 %v789, %v813
    %v846 = vmul.f32 %v790, %v818
    %v847 = vmul.f32 %v791, %v818
    %v848 = vmul.f32 %v792, %v823
    %v849 = vmul.f32 %v793, %v823
    %v850 = vmul.f32 %v794, %v828
    %v851 = vmul.f32 %v795, %v828
    %v852 = vmul.f32 %v796, %v833
    %v853 = vmul.f32 %v797, %v833
    %v854 = vmul.f32 %v798, %v838
    %v855 = vmul.f32 %v799, %v838
    %857 = vset.pattern.permute.xlu0 0
    %858 = vperm.xlu0 %857, %v664
    %v859 = vpop.permute.xlu0 %858
    %862 = vset.pattern.permute.xlu0 0
    %863 = vperm.xlu0 %862, %v665
    %v864 = vpop.permute.xlu0 %863
    %867 = vset.pattern.permute.xlu0 0
    %868 = vperm.xlu0 %867, %v666
    %v869 = vpop.permute.xlu0 %868
    %872 = vset.pattern.permute.xlu0 0
    %873 = vperm.xlu0 %872, %v667
    %v874 = vpop.permute.xlu0 %873
    %877 = vset.pattern.permute.xlu0 0
    %878 = vperm.xlu0 %877, %v668
    %v879 = vpop.permute.xlu0 %878
    %882 = vset.pattern.permute.xlu0 0
    %883 = vperm.xlu0 %882, %v669
    %v884 = vpop.permute.xlu0 %883
    %887 = vset.pattern.permute.xlu0 0
    %888 = vperm.xlu0 %887, %v670
    %v889 = vpop.permute.xlu0 %888
    %892 = vset.pattern.permute.xlu0 0
    %893 = vperm.xlu0 %892, %v671
    %v894 = vpop.permute.xlu0 %893
    %v896 = vadd.f32 %v840, %v859
    %v897 = vadd.f32 %v841, %v859
    %v898 = vadd.f32 %v842, %v864
    %v899 = vadd.f32 %v843, %v864
    %v900 = vadd.f32 %v844, %v869
    %v901 = vadd.f32 %v845, %v869
    %v902 = vadd.f32 %v846, %v874
    %v903 = vadd.f32 %v847, %v874
    %v904 = vadd.f32 %v848, %v879
    %v905 = vadd.f32 %v849, %v879
    %v906 = vadd.f32 %v850, %v884
    %v907 = vadd.f32 %v851, %v884
    %v908 = vadd.f32 %v852, %v889
    %v909 = vadd.f32 %v853, %v889
    %v910 = vadd.f32 %v854, %v894
    %v911 = vadd.f32 %v855, %v894
    %v912 = vmax.f32 %v896, 0.0
    %v913 = vmax.f32 %v897, 0.0
    %v914 = vmax.f32 %v898, 0.0
    %v915 = vmax.f32 %v899, 0.0
    %v916 = vmax.f32 %v900, 0.0
    %v917 = vmax.f32 %v901, 0.0
    %v918 = vmax.f32 %v902, 0.0
    %v919 = vmax.f32 %v903, 0.0
    %v920 = vmax.f32 %v904, 0.0
    %v921 = vmax.f32 %v905, 0.0
    %v922 = vmax.f32 %v906, 0.0
    %v923 = vmax.f32 %v907, 0.0
    %v924 = vmax.f32 %v908, 0.0
    %v925 = vmax.f32 %v909, 0.0
    %v926 = vmax.f32 %v910, 0.0
    %v927 = vmax.f32 %v911, 0.0
    %s928 = scalar_lea.vmem %s2, 64
    %v929 = vld [vmem:[%s928] sm:$0xff]
    %v930 = vld [vmem:[%s928 + $0x8] sm:$0xff]
    %v931 = vld [vmem:[%s928 + $0x10] sm:$0xff]
    %v932 = vld [vmem:[%s928 + $0x18] sm:$0xff]
    %v933 = vld [vmem:[%s928 + $0x20] sm:$0xff]
    %v934 = vld [vmem:[%s928 + $0x28] sm:$0xff]
    %v935 = vld [vmem:[%s928 + $0x30] sm:$0xff]
    %v936 = vld [vmem:[%s928 + $0x38] sm:$0xff]
    %v938 = vsel %vm516, %v929, 0
    %v941 = vsel %vm516, %v930, 0
    %v944 = vsel %vm516, %v931, 0
    %v947 = vsel %vm516, %v932, 0
    %v950 = vsel %vm516, %v933, 0
    %v953 = vsel %vm516, %v934, 0
    %v956 = vsel %vm516, %v935, 0
    %v959 = vsel %vm516, %v936, 0
    %961 = vmatprep.subr.mxu0 0.0
    %962 = vmatpush1.msra.mxu0 0.0
    %963 = vmatprep.subr.mxu0 0.0
    %964 = vmatpush1.msra.mxu0 0.0
    %965 = vmatprep.subr.mxu0 0.0
    %966 = vmatpush1.msra.mxu0 0.0
    %967 = vmatprep.subr.mxu0 0.0
    %968 = vmatpush1.msra.mxu0 0.0
    %969 = vmatprep.subr.mxu0 0.0
    %970 = vmatpush1.msra.mxu0 0.0
    %971 = vmatprep.subr.mxu0 0.0
    %972 = vmatpush1.msra.mxu0 0.0
    %973 = vmatprep.subr.mxu0 0.0
    %974 = vmatpush1.msra.mxu0 0.0
    %975 = vmatprep.subr.mxu0 0.0
    %976 = vmatpush1.msra.mxu0 0.0
    %977 = vmatprep.subr.mxu0 %v927
    %978 = vmatpush1.msra.mxu0 %v926
    %979 = vmatprep.subr.mxu0 %v925
    %980 = vmatpush1.msra.mxu0 %v924
    %981 = vmatprep.subr.mxu0 %v923
    %982 = vmatpush1.msra.mxu0 %v922
    %983 = vmatprep.subr.mxu0 %v921
    %984 = vmatpush1.msra.mxu0 %v920
    %985 = vmatprep.subr.mxu0 %v919
    %986 = vmatpush1.msra.mxu0 %v918
    %987 = vmatprep.subr.mxu0 %v917
    %988 = vmatpush1.msra.mxu0 %v916
    %989 = vmatprep.subr.mxu0 %v915
    %990 = vmatpush1.msra.mxu0 %v914
    %991 = vmatprep.subr.mxu0 %v913
    %992 = vmatpush1.msra.mxu0 %v912
    %993 = vmatprep.subr.mxu0 0.0
    %994 = vmatpush2.msra.mxu0 0.0
    %995 = vmatprep.subr.mxu0 0.0
    %996 = vmatpush2.msra.mxu0 0.0
    %997 = vmatprep.subr.mxu0 0.0
    %998 = vmatpush2.msra.mxu0 0.0
    %999 = vmatprep.subr.mxu0 0.0
    %1000 = vmatpush2.msra.mxu0 0.0
    %1001 = vmatprep.subr.mxu0 0.0
    %1002 = vmatpush2.msra.mxu0 0.0
    %1003 = vmatprep.subr.mxu0 0.0
    %1004 = vmatpush2.msra.mxu0 0.0
    %1005 = vmatprep.subr.mxu0 0.0
    %1006 = vmatpush2.msra.mxu0 0.0
    %1007 = vmatprep.subr.mxu0 0.0
    %1008 = vmatpush2.msra.mxu0 0.0
    %1009 = vmatprep.subr.mxu0 0.0
    %1010 = vmatpush2.msra.mxu0 0.0
    %1011 = vmatprep.subr.mxu0 0.0
    %1012 = vmatpush2.msra.mxu0 0.0
    %1013 = vmatprep.subr.mxu0 0.0
    %1014 = vmatpush2.msra.mxu0 0.0
    %1015 = vmatprep.subr.mxu0 0.0
    %1016 = vmatpush2.msra.mxu0 0.0
    %1017 = vmatprep.subr.mxu0 0.0
    %1018 = vmatpush2.msra.mxu0 0.0
    %1019 = vmatprep.subr.mxu0 0.0
    %1020 = vmatpush2.msra.mxu0 0.0
    %1021 = vmatprep.subr.mxu0 0.0
    %1022 = vmatpush2.msra.mxu0 0.0
    %1023 = vmatprep.subr.mxu0 0.0
    %1024 = vmatpush2.msra.mxu0 0.0
    %1025 = vmatprep.mubr.f32.mxu0 0.0
    %1026 = vmatmul.mubr.f32.gmra.mxu0 %v938
    %v1027 = vpop.f32.mrf.mxu0
    %v1028 = vadd.f32 0.0, %v1027
    %v1029 = vpop.f32.mrf.mxu0
    %v1030 = vadd.f32 0.0, %v1029
    %1031 = vmatprep.mubr.f32.mxu0 0.0
    %1032 = vmatmul.mubr.f32.gmra.mxu0 %v941
    %v1033 = vpop.f32.mrf.mxu0
    %v1034 = vadd.f32 0.0, %v1033
    %v1035 = vpop.f32.mrf.mxu0
    %v1036 = vadd.f32 0.0, %v1035
    %1037 = vmatprep.mubr.f32.mxu0 0.0
    %1038 = vmatmul.mubr.f32.gmra.mxu0 %v944
    %v1039 = vpop.f32.mrf.mxu0
    %v1040 = vadd.f32 0.0, %v1039
    %v1041 = vpop.f32.mrf.mxu0
    %v1042 = vadd.f32 0.0, %v1041
    %1043 = vmatprep.mubr.f32.mxu0 0.0
    %1044 = vmatmul.mubr.f32.gmra.mxu0 %v947
    %v1045 = vpop.f32.mrf.mxu0
    %v1046 = vadd.f32 0.0, %v1045
    %v1047 = vpop.f32.mrf.mxu0
    %v1048 = vadd.f32 0.0, %v1047
    %1049 = vmatprep.mubr.f32.mxu0 0.0
    %1050 = vmatmul.mubr.f32.gmra.mxu0 %v950
    %v1051 = vpop.f32.mrf.mxu0
    %v1052 = vadd.f32 0.0, %v1051
    %v1053 = vpop.f32.mrf.mxu0
    %v1054 = vadd.f32 0.0, %v1053
    %1055 = vmatprep.mubr.f32.mxu0 0.0
    %1056 = vmatmul.mubr.f32.gmra.mxu0 %v953
    %v1057 = vpop.f32.mrf.mxu0
    %v1058 = vadd.f32 0.0, %v1057
    %v1059 = vpop.f32.mrf.mxu0
    %v1060 = vadd.f32 0.0, %v1059
    %1061 = vmatprep.mubr.f32.mxu0 0.0
    %1062 = vmatmul.mubr.f32.gmra.mxu0 %v956
    %v1063 = vpop.f32.mrf.mxu0
    %v1064 = vadd.f32 0.0, %v1063
    %v1065 = vpop.f32.mrf.mxu0
    %v1066 = vadd.f32 0.0, %v1065
    %1067 = vmatprep.mubr.f32.mxu0 0.0
    %1068 = vmatmul.mubr.f32.gmra.mxu0 %v959
    %v1069 = vpop.f32.mrf.mxu0
    %v1070 = vadd.f32 0.0, %v1069
    %v1071 = vpop.f32.mrf.mxu0
    %v1072 = vadd.f32 0.0, %v1071
    %1073 = vdwg.mxu0
    %s1074 = scalar_lea.vmem %s5, 128
    %v1075 = vld [vmem:[%s1074] sm:$0xff]
    %v1076 = vld [vmem:[%s1074 + $0x8] sm:$0xff]
    %v1077 = vld [vmem:[%s1074 + $0x10] sm:$0xff]
    %v1078 = vld [vmem:[%s1074 + $0x18] sm:$0xff]
    %v1079 = vld [vmem:[%s1074 + $0x20] sm:$0xff]
    %v1080 = vld [vmem:[%s1074 + $0x28] sm:$0xff]
    %v1081 = vld [vmem:[%s1074 + $0x30] sm:$0xff]
    %v1082 = vld [vmem:[%s1074 + $0x38] sm:$0xff]
    %s1083 = scalar_lea.vmem %s6, 128
    %v1084 = vld [vmem:[%s1083] sm:$0xff]
    %v1085 = vld [vmem:[%s1083 + $0x8] sm:$0xff]
    %v1086 = vld [vmem:[%s1083 + $0x10] sm:$0xff]
    %v1087 = vld [vmem:[%s1083 + $0x18] sm:$0xff]
    %v1088 = vld [vmem:[%s1083 + $0x20] sm:$0xff]
    %v1089 = vld [vmem:[%s1083 + $0x28] sm:$0xff]
    %v1090 = vld [vmem:[%s1083 + $0x30] sm:$0xff]
    %v1091 = vld [vmem:[%s1083 + $0x38] sm:$0xff]
    %v1092 = vadd.f32 %v1028, %v1030
    %1093 = vadd.xlane.f32.xlu0 %v1092
    %v1094 = vpop.xlane.xlu0 %1093
    %v1095 = vadd.f32 %v1034, %v1036
    %1096 = vadd.xlane.f32.xlu0 %v1095
    %v1097 = vpop.xlane.xlu0 %1096
    %v1098 = vadd.f32 %v1040, %v1042
    %1099 = vadd.xlane.f32.xlu0 %v1098
    %v1100 = vpop.xlane.xlu0 %1099
    %v1101 = vadd.f32 %v1046, %v1048
    %1102 = vadd.xlane.f32.xlu0 %v1101
    %v1103 = vpop.xlane.xlu0 %1102
    %v1104 = vadd.f32 %v1052, %v1054
    %1105 = vadd.xlane.f32.xlu0 %v1104
    %v1106 = vpop.xlane.xlu0 %1105
    %v1107 = vadd.f32 %v1058, %v1060
    %1108 = vadd.xlane.f32.xlu0 %v1107
    %v1109 = vpop.xlane.xlu0 %1108
    %v1110 = vadd.f32 %v1064, %v1066
    %1111 = vadd.xlane.f32.xlu0 %v1110
    %v1112 = vpop.xlane.xlu0 %1111
    %v1113 = vadd.f32 %v1070, %v1072
    %1114 = vadd.xlane.f32.xlu0 %v1113
    %v1115 = vpop.xlane.xlu0 %1114
    %v1116 = vmul.f32 %v1094, 0.00390625
    %v1117 = vmul.f32 %v1097, 0.00390625
    %v1118 = vmul.f32 %v1100, 0.00390625
    %v1119 = vmul.f32 %v1103, 0.00390625
    %v1120 = vmul.f32 %v1106, 0.00390625
    %v1121 = vmul.f32 %v1109, 0.00390625
    %v1122 = vmul.f32 %v1112, 0.00390625
    %v1123 = vmul.f32 %v1115, 0.00390625
    %v1124 = vsub.f32 %v1028, %v1116
    %v1125 = vsub.f32 %v1030, %v1116
    %v1126 = vsub.f32 %v1034, %v1117
    %v1127 = vsub.f32 %v1036, %v1117
    %v1128 = vsub.f32 %v1040, %v1118
    %v1129 = vsub.f32 %v1042, %v1118
    %v1130 = vsub.f32 %v1046, %v1119
    %v1131 = vsub.f32 %v1048, %v1119
    %v1132 = vsub.f32 %v1052, %v1120
    %v1133 = vsub.f32 %v1054, %v1120
    %v1134 = vsub.f32 %v1058, %v1121
    %v1135 = vsub.f32 %v1060, %v1121
    %v1136 = vsub.f32 %v1064, %v1122
    %v1137 = vsub.f32 %v1066, %v1122
    %v1138 = vsub.f32 %v1070, %v1123
    %v1139 = vsub.f32 %v1072, %v1123
    %v1140 = vmul.f32 %v1124, %v1124
    %v1141 = vmul.f32 %v1125, %v1125
    %v1142 = vmul.f32 %v1126, %v1126
    %v1143 = vmul.f32 %v1127, %v1127
    %v1144 = vmul.f32 %v1128, %v1128
    %v1145 = vmul.f32 %v1129, %v1129
    %v1146 = vmul.f32 %v1130, %v1130
    %v1147 = vmul.f32 %v1131, %v1131
    %v1148 = vmul.f32 %v1132, %v1132
    %v1149 = vmul.f32 %v1133, %v1133
    %v1150 = vmul.f32 %v1134, %v1134
    %v1151 = vmul.f32 %v1135, %v1135
    %v1152 = vmul.f32 %v1136, %v1136
    %v1153 = vmul.f32 %v1137, %v1137
    %v1154 = vmul.f32 %v1138, %v1138
    %v1155 = vmul.f32 %v1139, %v1139
    %v1156 = vadd.f32 %v1140, %v1141
    %1157 = vadd.xlane.f32.xlu0 %v1156
    %v1158 = vpop.xlane.xlu0 %1157
    %v1159 = vadd.f32 %v1142, %v1143
    %1160 = vadd.xlane.f32.xlu0 %v1159
    %v1161 = vpop.xlane.xlu0 %1160
    %v1162 = vadd.f32 %v1144, %v1145
    %1163 = vadd.xlane.f32.xlu0 %v1162
    %v1164 = vpop.xlane.xlu0 %1163
    %v1165 = vadd.f32 %v1146, %v1147
    %1166 = vadd.xlane.f32.xlu0 %v1165
    %v1167 = vpop.xlane.xlu0 %1166
    %v1168 = vadd.f32 %v1148, %v1149
    %1169 = vadd.xlane.f32.xlu0 %v1168
    %v1170 = vpop.xlane.xlu0 %1169
    %v1171 = vadd.f32 %v1150, %v1151
    %1172 = vadd.xlane.f32.xlu0 %v1171
    %v1173 = vpop.xlane.xlu0 %1172
    %v1174 = vadd.f32 %v1152, %v1153
    %1175 = vadd.xlane.f32.xlu0 %v1174
    %v1176 = vpop.xlane.xlu0 %1175
    %v1177 = vadd.f32 %v1154, %v1155
    %1178 = vadd.xlane.f32.xlu0 %v1177
    %v1179 = vpop.xlane.xlu0 %1178
    %v1180 = vmul.f32 %v1158, 0.00390625
    %v1181 = vmul.f32 %v1161, 0.00390625
    %v1182 = vmul.f32 %v1164, 0.00390625
    %v1183 = vmul.f32 %v1167, 0.00390625
    %v1184 = vmul.f32 %v1170, 0.00390625
    %v1185 = vmul.f32 %v1173, 0.00390625
    %v1186 = vmul.f32 %v1176, 0.00390625
    %v1187 = vmul.f32 %v1179, 0.00390625
    %v1188 = vadd.f32 %v1180, 1e-05
    %v1189 = vadd.f32 %v1181, 1e-05
    %v1190 = vadd.f32 %v1182, 1e-05
    %v1191 = vadd.f32 %v1183, 1e-05
    %v1192 = vadd.f32 %v1184, 1e-05
    %v1193 = vadd.f32 %v1185, 1e-05
    %v1194 = vadd.f32 %v1186, 1e-05
    %v1195 = vadd.f32 %v1187, 1e-05
    %v1196 = vrsqrt.pop %v1188
    %v1197 = vrsqrt.pop %v1189
    %v1198 = vrsqrt.pop %v1190
    %v1199 = vrsqrt.pop %v1191
    %v1200 = vrsqrt.pop %v1192
    %v1201 = vrsqrt.pop %v1193
    %v1202 = vrsqrt.pop %v1194
    %v1203 = vrsqrt.pop %v1195
    %v1204 = vmul.f32 %v1124, %v1196
    %v1205 = vmul.f32 %v1125, %v1196
    %v1206 = vmul.f32 %v1126, %v1197
    %v1207 = vmul.f32 %v1127, %v1197
    %v1208 = vmul.f32 %v1128, %v1198
    %v1209 = vmul.f32 %v1129, %v1198
    %v1210 = vmul.f32 %v1130, %v1199
    %v1211 = vmul.f32 %v1131, %v1199
    %v1212 = vmul.f32 %v1132, %v1200
    %v1213 = vmul.f32 %v1133, %v1200
    %v1214 = vmul.f32 %v1134, %v1201
    %v1215 = vmul.f32 %v1135, %v1201
    %v1216 = vmul.f32 %v1136, %v1202
    %v1217 = vmul.f32 %v1137, %v1202
    %v1218 = vmul.f32 %v1138, %v1203
    %v1219 = vmul.f32 %v1139, %v1203
    %1221 = vset.pattern.permute.xlu0 0
    %1222 = vperm.xlu0 %1221, %v1075
    %v1223 = vpop.permute.xlu0 %1222
    %1226 = vset.pattern.permute.xlu0 0
    %1227 = vperm.xlu0 %1226, %v1076
    %v1228 = vpop.permute.xlu0 %1227
    %1231 = vset.pattern.permute.xlu0 0
    %1232 = vperm.xlu0 %1231, %v1077
    %v1233 = vpop.permute.xlu0 %1232
    %1236 = vset.pattern.permute.xlu0 0
    %1237 = vperm.xlu0 %1236, %v1078
    %v1238 = vpop.permute.xlu0 %1237
    %1241 = vset.pattern.permute.xlu0 0
    %1242 = vperm.xlu0 %1241, %v1079
    %v1243 = vpop.permute.xlu0 %1242
    %1246 = vset.pattern.permute.xlu0 0
    %1247 = vperm.xlu0 %1246, %v1080
    %v1248 = vpop.permute.xlu0 %1247
    %1251 = vset.pattern.permute.xlu0 0
    %1252 = vperm.xlu0 %1251, %v1081
    %v1253 = vpop.permute.xlu0 %1252
    %1256 = vset.pattern.permute.xlu0 0
    %1257 = vperm.xlu0 %1256, %v1082
    %v1258 = vpop.permute.xlu0 %1257
    %v1260 = vmul.f32 %v1204, %v1223
    %v1261 = vmul.f32 %v1205, %v1223
    %v1262 = vmul.f32 %v1206, %v1228
    %v1263 = vmul.f32 %v1207, %v1228
    %v1264 = vmul.f32 %v1208, %v1233
    %v1265 = vmul.f32 %v1209, %v1233
    %v1266 = vmul.f32 %v1210, %v1238
    %v1267 = vmul.f32 %v1211, %v1238
    %v1268 = vmul.f32 %v1212, %v1243
    %v1269 = vmul.f32 %v1213, %v1243
    %v1270 = vmul.f32 %v1214, %v1248
    %v1271 = vmul.f32 %v1215, %v1248
    %v1272 = vmul.f32 %v1216, %v1253
    %v1273 = vmul.f32 %v1217, %v1253
    %v1274 = vmul.f32 %v1218, %v1258
    %v1275 = vmul.f32 %v1219, %v1258
    %1277 = vset.pattern.permute.xlu0 0
    %1278 = vperm.xlu0 %1277, %v1084
    %v1279 = vpop.permute.xlu0 %1278
    %1282 = vset.pattern.permute.xlu0 0
    %1283 = vperm.xlu0 %1282, %v1085
    %v1284 = vpop.permute.xlu0 %1283
    %1287 = vset.pattern.permute.xlu0 0
    %1288 = vperm.xlu0 %1287, %v1086
    %v1289 = vpop.permute.xlu0 %1288
    %1292 = vset.pattern.permute.xlu0 0
    %1293 = vperm.xlu0 %1292, %v1087
    %v1294 = vpop.permute.xlu0 %1293
    %1297 = vset.pattern.permute.xlu0 0
    %1298 = vperm.xlu0 %1297, %v1088
    %v1299 = vpop.permute.xlu0 %1298
    %1302 = vset.pattern.permute.xlu0 0
    %1303 = vperm.xlu0 %1302, %v1089
    %v1304 = vpop.permute.xlu0 %1303
    %1307 = vset.pattern.permute.xlu0 0
    %1308 = vperm.xlu0 %1307, %v1090
    %v1309 = vpop.permute.xlu0 %1308
    %1312 = vset.pattern.permute.xlu0 0
    %1313 = vperm.xlu0 %1312, %v1091
    %v1314 = vpop.permute.xlu0 %1313
    %v1316 = vadd.f32 %v1260, %v1279
    %v1317 = vadd.f32 %v1261, %v1279
    %v1318 = vadd.f32 %v1262, %v1284
    %v1319 = vadd.f32 %v1263, %v1284
    %v1320 = vadd.f32 %v1264, %v1289
    %v1321 = vadd.f32 %v1265, %v1289
    %v1322 = vadd.f32 %v1266, %v1294
    %v1323 = vadd.f32 %v1267, %v1294
    %v1324 = vadd.f32 %v1268, %v1299
    %v1325 = vadd.f32 %v1269, %v1299
    %v1326 = vadd.f32 %v1270, %v1304
    %v1327 = vadd.f32 %v1271, %v1304
    %v1328 = vadd.f32 %v1272, %v1309
    %v1329 = vadd.f32 %v1273, %v1309
    %v1330 = vadd.f32 %v1274, %v1314
    %v1331 = vadd.f32 %v1275, %v1314
    %v1332 = vmax.f32 %v1316, 0.0
    %v1333 = vmax.f32 %v1317, 0.0
    %v1334 = vmax.f32 %v1318, 0.0
    %v1335 = vmax.f32 %v1319, 0.0
    %v1336 = vmax.f32 %v1320, 0.0
    %v1337 = vmax.f32 %v1321, 0.0
    %v1338 = vmax.f32 %v1322, 0.0
    %v1339 = vmax.f32 %v1323, 0.0
    %v1340 = vmax.f32 %v1324, 0.0
    %v1341 = vmax.f32 %v1325, 0.0
    %v1342 = vmax.f32 %v1326, 0.0
    %v1343 = vmax.f32 %v1327, 0.0
    %v1344 = vmax.f32 %v1328, 0.0
    %v1345 = vmax.f32 %v1329, 0.0
    %v1346 = vmax.f32 %v1330, 0.0
    %v1347 = vmax.f32 %v1331, 0.0
    %v1348 = vld [vmem:[%s3] sm:$0xff]
    %v1349 = vld [vmem:[%s3 + $0x8] sm:$0xff]
    %v1350 = vld [vmem:[%s4] sm:$0xff]
    %v1351 = vld [vmem:[%s4 + $0x8] sm:$0xff]
    %1353 = vset.pattern.permute.xlu0 0
    %1354 = vperm.xlu0 %1353, %v1350
    %v1355 = vpop.permute.xlu0 %1354
    %1358 = vset.pattern.permute.xlu0 0
    %1359 = vperm.xlu0 %1358, %v1351
    %v1360 = vpop.permute.xlu0 %1359
    %v1363 = vsel %vm516, %v1348, 0
    %v1366 = vsel %vm516, %v1349, 0
    %1368 = vmatprep.subr.mxu0 0.0
    %1369 = vmatpush1.msra.mxu0 0.0
    %1370 = vmatprep.subr.mxu0 0.0
    %1371 = vmatpush1.msra.mxu0 0.0
    %1372 = vmatprep.subr.mxu0 0.0
    %1373 = vmatpush1.msra.mxu0 0.0
    %1374 = vmatprep.subr.mxu0 0.0
    %1375 = vmatpush1.msra.mxu0 0.0
    %1376 = vmatprep.subr.mxu0 0.0
    %1377 = vmatpush1.msra.mxu0 0.0
    %1378 = vmatprep.subr.mxu0 0.0
    %1379 = vmatpush1.msra.mxu0 0.0
    %1380 = vmatprep.subr.mxu0 0.0
    %1381 = vmatpush1.msra.mxu0 0.0
    %1382 = vmatprep.subr.mxu0 0.0
    %1383 = vmatpush1.msra.mxu0 0.0
    %1384 = vmatprep.subr.mxu0 %v1347
    %1385 = vmatpush1.msra.mxu0 %v1346
    %1386 = vmatprep.subr.mxu0 %v1345
    %1387 = vmatpush1.msra.mxu0 %v1344
    %1388 = vmatprep.subr.mxu0 %v1343
    %1389 = vmatpush1.msra.mxu0 %v1342
    %1390 = vmatprep.subr.mxu0 %v1341
    %1391 = vmatpush1.msra.mxu0 %v1340
    %1392 = vmatprep.subr.mxu0 %v1339
    %1393 = vmatpush1.msra.mxu0 %v1338
    %1394 = vmatprep.subr.mxu0 %v1337
    %1395 = vmatpush1.msra.mxu0 %v1336
    %1396 = vmatprep.subr.mxu0 %v1335
    %1397 = vmatpush1.msra.mxu0 %v1334
    %1398 = vmatprep.subr.mxu0 %v1333
    %1399 = vmatpush1.msra.mxu0 %v1332
    %1400 = vmatprep.subr.mxu0 0.0
    %1401 = vmatpush2.msra.mxu0 0.0
    %1402 = vmatprep.subr.mxu0 0.0
    %1403 = vmatpush2.msra.mxu0 0.0
    %1404 = vmatprep.subr.mxu0 0.0
    %1405 = vmatpush2.msra.mxu0 0.0
    %1406 = vmatprep.subr.mxu0 0.0
    %1407 = vmatpush2.msra.mxu0 0.0
    %1408 = vmatprep.subr.mxu0 0.0
    %1409 = vmatpush2.msra.mxu0 0.0
    %1410 = vmatprep.subr.mxu0 0.0
    %1411 = vmatpush2.msra.mxu0 0.0
    %1412 = vmatprep.subr.mxu0 0.0
    %1413 = vmatpush2.msra.mxu0 0.0
    %1414 = vmatprep.subr.mxu0 0.0
    %1415 = vmatpush2.msra.mxu0 0.0
    %1416 = vmatprep.subr.mxu0 0.0
    %1417 = vmatpush2.msra.mxu0 0.0
    %1418 = vmatprep.subr.mxu0 0.0
    %1419 = vmatpush2.msra.mxu0 0.0
    %1420 = vmatprep.subr.mxu0 0.0
    %1421 = vmatpush2.msra.mxu0 0.0
    %1422 = vmatprep.subr.mxu0 0.0
    %1423 = vmatpush2.msra.mxu0 0.0
    %1424 = vmatprep.subr.mxu0 0.0
    %1425 = vmatpush2.msra.mxu0 0.0
    %1426 = vmatprep.subr.mxu0 0.0
    %1427 = vmatpush2.msra.mxu0 0.0
    %1428 = vmatprep.subr.mxu0 0.0
    %1429 = vmatpush2.msra.mxu0 0.0
    %1430 = vmatprep.subr.mxu0 0.0
    %1431 = vmatpush2.msra.mxu0 0.0
    %1432 = vmatprep.mubr.f32.mxu0 0.0
    %1433 = vmatmul.mubr.f32.gmra.mxu0 %v1363
    %v1434 = vpop.f32.mrf.mxu0
    %v1435 = vadd.f32 %v1355, %v1434
    %v1436 = vpop.f32.mrf.mxu0
    %v1437 = vadd.f32 %v1355, %v1436
    %1438 = vmatprep.mubr.f32.mxu0 0.0
    %1439 = vmatmul.mubr.f32.gmra.mxu0 %v1366
    %v1440 = vpop.f32.mrf.mxu0
    %v1441 = vadd.f32 %v1360, %v1440
    %v1442 = vpop.f32.mrf.mxu0
    %v1443 = vadd.f32 %v1360, %v1442
    %1444 = vdwg.mxu0
    %v1445 = vtanh.pop %v1435
    %v1446 = vtanh.pop %v1437
    %s1447 = sld [smem:[#allocation2]]
    %v1448 = vstv %s1447
    %v1449 = vmul.f32 %v1445, %v1448
    %v1450 = vmul.f32 %v1446, %v1448
    %s1451 = sld [smem:[#allocation2 + $0x1]]
    %v1452 = vstv %s1451
    %v1453 = vadd.f32 %v1449, %v1452
    %v1454 = vadd.f32 %v1450, %v1452
    %v1455 = vmul.f32 %v1453, 1.442695
    %v1456 = vpow.pop %v1455
    %v1457 = vmul.f32 %v1454, 1.442695
    %v1458 = vpow.pop %v1457
    %v1459 = vmul.f32 %v184, %v1456
    %v1460 = vmul.f32 %v186, %v1458
    %v1461 = vadd.f32 %v1459, %v1441
    %v1462 = vadd.f32 %v1460, %v1443
    %v1463 = vrot.slane %v1453, 4
    %v1464 = vadd.f32 %v1453, %v1463
    %v1465 = vrot.slane %v1464, 2
    %v1466 = vadd.f32 %v1464, %v1465
    %v1467 = vrot.slane %v1466, 1
    %v1468 = vadd.f32 %v1466, %v1467
    %v1469 = vrot.slane %v1454, 4
    %v1470 = vadd.f32 %v1454, %v1469
    %v1471 = vrot.slane %v1470, 2
    %v1472 = vadd.f32 %v1470, %v1471
    %v1473 = vrot.slane %v1472, 1
    %v1474 = vadd.f32 %v1472, %v1473
    %v1475 = vadd.f32 %v79, %v1468
    %v1476 = vadd.f32 %v79, %v1474
    %v1477 = vadd.f32 %v1461, %v1462
    %1478 = vadd.xlane.f32.xlu0 %v1477
    %v1479 = vpop.xlane.xlu0 %1478
    %v1480 = vmul.f32 %v1479, 0.00390625
    %v1481 = vsub.f32 %v1461, %v1480
    %v1482 = vsub.f32 %v1462, %v1480
    %v1483 = vmul.f32 %v1481, %v1481
    %v1484 = vmul.f32 %v1482, %v1482
    %v1485 = vadd.f32 %v1483, %v1484
    %1486 = vadd.xlane.f32.xlu0 %v1485
    %v1487 = vpop.xlane.xlu0 %1486
    %v1488 = vmul.f32 %v1487, 0.00390625
    %v1489 = vadd.f32 %v1488, 1e-05
    %v1490 = vrsqrt.pop %v1489
    %v1491 = vmul.f32 %v1481, %v1490
    %v1492 = vmul.f32 %v1482, %v1490
    %v1493 = vlog2.pop %v1489
    %v1494 = vmul.f32 %v1493, 0.6931472
    %v1495 = vsel %vm66, %v1494, 0.0
    %1496 = vadd.xlane.f32.xlu0 %v1495
    %v1497 = vpop.xlane.xlu0 %1496
    %v1498 = vrot.slane %v1497, 4
    %v1499 = vadd.f32 %v1497, %v1498
    %v1500 = vrot.slane %v1499, 2
    %v1501 = vadd.f32 %v1499, %v1500
    %v1502 = vrot.slane %v1501, 1
    %v1503 = vadd.f32 %v1501, %v1502
    %s1504 = vtos %v1503
    %s1505 = smul.f32 %s1504, 0.5
    %v1506 = vstv %s1505
    %v1507 = vsub.f32 %v1475, %v1506
    %v1508 = vsub.f32 %v1476, %v1506
    %s1509 = scalar_lea.vmem %s1, 72
    %v1510 = vld [vmem:[%s1509] sm:$0xff]
    %v1511 = vld [vmem:[%s1509 + $0x8] sm:$0xff]
    %v1512 = vld [vmem:[%s1509 + $0x10] sm:$0xff]
    %v1513 = vld [vmem:[%s1509 + $0x18] sm:$0xff]
    %v1514 = vld [vmem:[%s1509 + $0x20] sm:$0xff]
    %v1515 = vld [vmem:[%s1509 + $0x28] sm:$0xff]
    %v1516 = vld [vmem:[%s1509 + $0x30] sm:$0xff]
    %v1517 = vld [vmem:[%s1509 + $0x38] sm:$0xff]
    %v1518 = vld [vmem:[%s1509 + $0x40] sm:$0xff]
    %v1520 = vsel %vm89, %v1510, 0
    %v1523 = vsel %vm89, %v1511, 0
    %v1526 = vsel %vm89, %v1512, 0
    %v1529 = vsel %vm89, %v1513, 0
    %v1532 = vsel %vm89, %v1514, 0
    %v1535 = vsel %vm89, %v1515, 0
    %v1538 = vsel %vm89, %v1516, 0
    %v1541 = vsel %vm89, %v1517, 0
    %v1544 = vsel %vm89, %v1518, 0
    %1546 = vmatprep.subr.mxu0 0.0
    %1547 = vmatpush1.msra.mxu0 0.0
    %1548 = vmatprep.subr.mxu0 0.0
    %1549 = vmatpush1.msra.mxu0 0.0
    %1550 = vmatprep.subr.mxu0 0.0
    %1551 = vmatpush1.msra.mxu0 0.0
    %1552 = vmatprep.subr.mxu0 0.0
    %1553 = vmatpush1.msra.mxu0 0.0
    %1554 = vmatprep.subr.mxu0 0.0
    %1555 = vmatpush1.msra.mxu0 0.0
    %1556 = vmatprep.subr.mxu0 0.0
    %1557 = vmatpush1.msra.mxu0 0.0
    %1558 = vmatprep.subr.mxu0 0.0
    %1559 = vmatpush1.msra.mxu0 0.0
    %1560 = vmatprep.subr.mxu0 0.0
    %1561 = vmatpush1.msra.mxu0 0.0
    %1562 = vmatprep.subr.mxu0 0.0
    %1563 = vmatpush1.msra.mxu0 0.0
    %1564 = vmatprep.subr.mxu0 0.0
    %1565 = vmatpush1.msra.mxu0 0.0
    %1566 = vmatprep.subr.mxu0 0.0
    %1567 = vmatpush1.msra.mxu0 0.0
    %1568 = vmatprep.subr.mxu0 0.0
    %1569 = vmatpush1.msra.mxu0 0.0
    %1570 = vmatprep.subr.mxu0 0.0
    %1571 = vmatpush1.msra.mxu0 0.0
    %1572 = vmatprep.subr.mxu0 0.0
    %1573 = vmatpush1.msra.mxu0 0.0
    %1574 = vmatprep.subr.mxu0 0.0
    %1575 = vmatpush1.msra.mxu0 0.0
    %1576 = vmatprep.subr.mxu0 %v1492
    %1577 = vmatpush1.msra.mxu0 %v1491
    %1578 = vmatprep.subr.mxu0 0.0
    %1579 = vmatpush2.msra.mxu0 0.0
    %1580 = vmatprep.subr.mxu0 0.0
    %1581 = vmatpush2.msra.mxu0 0.0
    %1582 = vmatprep.subr.mxu0 0.0
    %1583 = vmatpush2.msra.mxu0 0.0
    %1584 = vmatprep.subr.mxu0 0.0
    %1585 = vmatpush2.msra.mxu0 0.0
    %1586 = vmatprep.subr.mxu0 0.0
    %1587 = vmatpush2.msra.mxu0 0.0
    %1588 = vmatprep.subr.mxu0 0.0
    %1589 = vmatpush2.msra.mxu0 0.0
    %1590 = vmatprep.subr.mxu0 0.0
    %1591 = vmatpush2.msra.mxu0 0.0
    %1592 = vmatprep.subr.mxu0 0.0
    %1593 = vmatpush2.msra.mxu0 0.0
    %1594 = vmatprep.subr.mxu0 0.0
    %1595 = vmatpush2.msra.mxu0 0.0
    %1596 = vmatprep.subr.mxu0 0.0
    %1597 = vmatpush2.msra.mxu0 0.0
    %1598 = vmatprep.subr.mxu0 0.0
    %1599 = vmatpush2.msra.mxu0 0.0
    %1600 = vmatprep.subr.mxu0 0.0
    %1601 = vmatpush2.msra.mxu0 0.0
    %1602 = vmatprep.subr.mxu0 0.0
    %1603 = vmatpush2.msra.mxu0 0.0
    %1604 = vmatprep.subr.mxu0 0.0
    %1605 = vmatpush2.msra.mxu0 0.0
    %1606 = vmatprep.subr.mxu0 0.0
    %1607 = vmatpush2.msra.mxu0 0.0
    %1608 = vmatprep.subr.mxu0 0.0
    %1609 = vmatpush2.msra.mxu0 0.0
    %1610 = vmatprep.mubr.f32.mxu0 0.0
    %1611 = vmatmul.mubr.f32.gmra.mxu0 %v1520
    %v1612 = vpop.f32.mrf.mxu0
    %v1613 = vadd.f32 0.0, %v1612
    %v1614 = vpop.f32.mrf.mxu0
    %v1615 = vadd.f32 0.0, %v1614
    %1616 = vmatprep.mubr.f32.mxu0 0.0
    %1617 = vmatmul.mubr.f32.gmra.mxu0 %v1523
    %v1618 = vpop.f32.mrf.mxu0
    %v1619 = vadd.f32 0.0, %v1618
    %v1620 = vpop.f32.mrf.mxu0
    %v1621 = vadd.f32 0.0, %v1620
    %1622 = vmatprep.mubr.f32.mxu0 0.0
    %1623 = vmatmul.mubr.f32.gmra.mxu0 %v1526
    %v1624 = vpop.f32.mrf.mxu0
    %v1625 = vadd.f32 0.0, %v1624
    %v1626 = vpop.f32.mrf.mxu0
    %v1627 = vadd.f32 0.0, %v1626
    %1628 = vmatprep.mubr.f32.mxu0 0.0
    %1629 = vmatmul.mubr.f32.gmra.mxu0 %v1529
    %v1630 = vpop.f32.mrf.mxu0
    %v1631 = vadd.f32 0.0, %v1630
    %v1632 = vpop.f32.mrf.mxu0
    %v1633 = vadd.f32 0.0, %v1632
    %1634 = vmatprep.mubr.f32.mxu0 0.0
    %1635 = vmatmul.mubr.f32.gmra.mxu0 %v1532
    %v1636 = vpop.f32.mrf.mxu0
    %v1637 = vadd.f32 0.0, %v1636
    %v1638 = vpop.f32.mrf.mxu0
    %v1639 = vadd.f32 0.0, %v1638
    %1640 = vmatprep.mubr.f32.mxu0 0.0
    %1641 = vmatmul.mubr.f32.gmra.mxu0 %v1535
    %v1642 = vpop.f32.mrf.mxu0
    %v1643 = vadd.f32 0.0, %v1642
    %v1644 = vpop.f32.mrf.mxu0
    %v1645 = vadd.f32 0.0, %v1644
    %1646 = vmatprep.mubr.f32.mxu0 0.0
    %1647 = vmatmul.mubr.f32.gmra.mxu0 %v1538
    %v1648 = vpop.f32.mrf.mxu0
    %v1649 = vadd.f32 0.0, %v1648
    %v1650 = vpop.f32.mrf.mxu0
    %v1651 = vadd.f32 0.0, %v1650
    %1652 = vmatprep.mubr.f32.mxu0 0.0
    %1653 = vmatmul.mubr.f32.gmra.mxu0 %v1541
    %v1654 = vpop.f32.mrf.mxu0
    %v1655 = vadd.f32 0.0, %v1654
    %v1656 = vpop.f32.mrf.mxu0
    %v1657 = vadd.f32 0.0, %v1656
    %1658 = vmatprep.mubr.f32.mxu0 0.0
    %1659 = vmatmul.mubr.f32.gmra.mxu0 %v1544
    %v1660 = vpop.f32.mrf.mxu0
    %v1661 = vadd.f32 0.0, %v1660
    %v1662 = vpop.f32.mrf.mxu0
    %v1663 = vadd.f32 0.0, %v1662
    %1664 = vdwg.mxu0
    %s1665 = scalar_lea.vmem %s5, 192
    %v1666 = vld [vmem:[%s1665] sm:$0xff]
    %v1667 = vld [vmem:[%s1665 + $0x8] sm:$0xff]
    %v1668 = vld [vmem:[%s1665 + $0x10] sm:$0xff]
    %v1669 = vld [vmem:[%s1665 + $0x18] sm:$0xff]
    %v1670 = vld [vmem:[%s1665 + $0x20] sm:$0xff]
    %v1671 = vld [vmem:[%s1665 + $0x28] sm:$0xff]
    %v1672 = vld [vmem:[%s1665 + $0x30] sm:$0xff]
    %v1673 = vld [vmem:[%s1665 + $0x38] sm:$0xff]
    %s1674 = scalar_lea.vmem %s6, 192
    %v1675 = vld [vmem:[%s1674] sm:$0xff]
    %v1676 = vld [vmem:[%s1674 + $0x8] sm:$0xff]
    %v1677 = vld [vmem:[%s1674 + $0x10] sm:$0xff]
    %v1678 = vld [vmem:[%s1674 + $0x18] sm:$0xff]
    %v1679 = vld [vmem:[%s1674 + $0x20] sm:$0xff]
    %v1680 = vld [vmem:[%s1674 + $0x28] sm:$0xff]
    %v1681 = vld [vmem:[%s1674 + $0x30] sm:$0xff]
    %v1682 = vld [vmem:[%s1674 + $0x38] sm:$0xff]
    %v1683 = vadd.f32 %v1619, %v1621
    %1684 = vadd.xlane.f32.xlu0 %v1683
    %v1685 = vpop.xlane.xlu0 %1684
    %v1686 = vadd.f32 %v1625, %v1627
    %1687 = vadd.xlane.f32.xlu0 %v1686
    %v1688 = vpop.xlane.xlu0 %1687
    %v1689 = vadd.f32 %v1631, %v1633
    %1690 = vadd.xlane.f32.xlu0 %v1689
    %v1691 = vpop.xlane.xlu0 %1690
    %v1692 = vadd.f32 %v1637, %v1639
    %1693 = vadd.xlane.f32.xlu0 %v1692
    %v1694 = vpop.xlane.xlu0 %1693
    %v1695 = vadd.f32 %v1643, %v1645
    %1696 = vadd.xlane.f32.xlu0 %v1695
    %v1697 = vpop.xlane.xlu0 %1696
    %v1698 = vadd.f32 %v1649, %v1651
    %1699 = vadd.xlane.f32.xlu0 %v1698
    %v1700 = vpop.xlane.xlu0 %1699
    %v1701 = vadd.f32 %v1655, %v1657
    %1702 = vadd.xlane.f32.xlu0 %v1701
    %v1703 = vpop.xlane.xlu0 %1702
    %v1704 = vadd.f32 %v1661, %v1663
    %1705 = vadd.xlane.f32.xlu0 %v1704
    %v1706 = vpop.xlane.xlu0 %1705
    %v1707 = vmul.f32 %v1685, 0.00390625
    %v1708 = vmul.f32 %v1688, 0.00390625
    %v1709 = vmul.f32 %v1691, 0.00390625
    %v1710 = vmul.f32 %v1694, 0.00390625
    %v1711 = vmul.f32 %v1697, 0.00390625
    %v1712 = vmul.f32 %v1700, 0.00390625
    %v1713 = vmul.f32 %v1703, 0.00390625
    %v1714 = vmul.f32 %v1706, 0.00390625
    %v1715 = vsub.f32 %v1619, %v1707
    %v1716 = vsub.f32 %v1621, %v1707
    %v1717 = vsub.f32 %v1625, %v1708
    %v1718 = vsub.f32 %v1627, %v1708
    %v1719 = vsub.f32 %v1631, %v1709
    %v1720 = vsub.f32 %v1633, %v1709
    %v1721 = vsub.f32 %v1637, %v1710
    %v1722 = vsub.f32 %v1639, %v1710
    %v1723 = vsub.f32 %v1643, %v1711
    %v1724 = vsub.f32 %v1645, %v1711
    %v1725 = vsub.f32 %v1649, %v1712
    %v1726 = vsub.f32 %v1651, %v1712
    %v1727 = vsub.f32 %v1655, %v1713
    %v1728 = vsub.f32 %v1657, %v1713
    %v1729 = vsub.f32 %v1661, %v1714
    %v1730 = vsub.f32 %v1663, %v1714
    %v1731 = vmul.f32 %v1715, %v1715
    %v1732 = vmul.f32 %v1716, %v1716
    %v1733 = vmul.f32 %v1717, %v1717
    %v1734 = vmul.f32 %v1718, %v1718
    %v1735 = vmul.f32 %v1719, %v1719
    %v1736 = vmul.f32 %v1720, %v1720
    %v1737 = vmul.f32 %v1721, %v1721
    %v1738 = vmul.f32 %v1722, %v1722
    %v1739 = vmul.f32 %v1723, %v1723
    %v1740 = vmul.f32 %v1724, %v1724
    %v1741 = vmul.f32 %v1725, %v1725
    %v1742 = vmul.f32 %v1726, %v1726
    %v1743 = vmul.f32 %v1727, %v1727
    %v1744 = vmul.f32 %v1728, %v1728
    %v1745 = vmul.f32 %v1729, %v1729
    %v1746 = vmul.f32 %v1730, %v1730
    %v1747 = vadd.f32 %v1731, %v1732
    %1748 = vadd.xlane.f32.xlu0 %v1747
    %v1749 = vpop.xlane.xlu0 %1748
    %v1750 = vadd.f32 %v1733, %v1734
    %1751 = vadd.xlane.f32.xlu0 %v1750
    %v1752 = vpop.xlane.xlu0 %1751
    %v1753 = vadd.f32 %v1735, %v1736
    %1754 = vadd.xlane.f32.xlu0 %v1753
    %v1755 = vpop.xlane.xlu0 %1754
    %v1756 = vadd.f32 %v1737, %v1738
    %1757 = vadd.xlane.f32.xlu0 %v1756
    %v1758 = vpop.xlane.xlu0 %1757
    %v1759 = vadd.f32 %v1739, %v1740
    %1760 = vadd.xlane.f32.xlu0 %v1759
    %v1761 = vpop.xlane.xlu0 %1760
    %v1762 = vadd.f32 %v1741, %v1742
    %1763 = vadd.xlane.f32.xlu0 %v1762
    %v1764 = vpop.xlane.xlu0 %1763
    %v1765 = vadd.f32 %v1743, %v1744
    %1766 = vadd.xlane.f32.xlu0 %v1765
    %v1767 = vpop.xlane.xlu0 %1766
    %v1768 = vadd.f32 %v1745, %v1746
    %1769 = vadd.xlane.f32.xlu0 %v1768
    %v1770 = vpop.xlane.xlu0 %1769
    %v1771 = vmul.f32 %v1749, 0.00390625
    %v1772 = vmul.f32 %v1752, 0.00390625
    %v1773 = vmul.f32 %v1755, 0.00390625
    %v1774 = vmul.f32 %v1758, 0.00390625
    %v1775 = vmul.f32 %v1761, 0.00390625
    %v1776 = vmul.f32 %v1764, 0.00390625
    %v1777 = vmul.f32 %v1767, 0.00390625
    %v1778 = vmul.f32 %v1770, 0.00390625
    %v1779 = vadd.f32 %v1771, 1e-05
    %v1780 = vadd.f32 %v1772, 1e-05
    %v1781 = vadd.f32 %v1773, 1e-05
    %v1782 = vadd.f32 %v1774, 1e-05
    %v1783 = vadd.f32 %v1775, 1e-05
    %v1784 = vadd.f32 %v1776, 1e-05
    %v1785 = vadd.f32 %v1777, 1e-05
    %v1786 = vadd.f32 %v1778, 1e-05
    %v1787 = vrsqrt.pop %v1779
    %v1788 = vrsqrt.pop %v1780
    %v1789 = vrsqrt.pop %v1781
    %v1790 = vrsqrt.pop %v1782
    %v1791 = vrsqrt.pop %v1783
    %v1792 = vrsqrt.pop %v1784
    %v1793 = vrsqrt.pop %v1785
    %v1794 = vrsqrt.pop %v1786
    %v1795 = vmul.f32 %v1715, %v1787
    %v1796 = vmul.f32 %v1716, %v1787
    %v1797 = vmul.f32 %v1717, %v1788
    %v1798 = vmul.f32 %v1718, %v1788
    %v1799 = vmul.f32 %v1719, %v1789
    %v1800 = vmul.f32 %v1720, %v1789
    %v1801 = vmul.f32 %v1721, %v1790
    %v1802 = vmul.f32 %v1722, %v1790
    %v1803 = vmul.f32 %v1723, %v1791
    %v1804 = vmul.f32 %v1724, %v1791
    %v1805 = vmul.f32 %v1725, %v1792
    %v1806 = vmul.f32 %v1726, %v1792
    %v1807 = vmul.f32 %v1727, %v1793
    %v1808 = vmul.f32 %v1728, %v1793
    %v1809 = vmul.f32 %v1729, %v1794
    %v1810 = vmul.f32 %v1730, %v1794
    %1812 = vset.pattern.permute.xlu0 0
    %1813 = vperm.xlu0 %1812, %v1666
    %v1814 = vpop.permute.xlu0 %1813
    %1817 = vset.pattern.permute.xlu0 0
    %1818 = vperm.xlu0 %1817, %v1667
    %v1819 = vpop.permute.xlu0 %1818
    %1822 = vset.pattern.permute.xlu0 0
    %1823 = vperm.xlu0 %1822, %v1668
    %v1824 = vpop.permute.xlu0 %1823
    %1827 = vset.pattern.permute.xlu0 0
    %1828 = vperm.xlu0 %1827, %v1669
    %v1829 = vpop.permute.xlu0 %1828
    %1832 = vset.pattern.permute.xlu0 0
    %1833 = vperm.xlu0 %1832, %v1670
    %v1834 = vpop.permute.xlu0 %1833
    %1837 = vset.pattern.permute.xlu0 0
    %1838 = vperm.xlu0 %1837, %v1671
    %v1839 = vpop.permute.xlu0 %1838
    %1842 = vset.pattern.permute.xlu0 0
    %1843 = vperm.xlu0 %1842, %v1672
    %v1844 = vpop.permute.xlu0 %1843
    %1847 = vset.pattern.permute.xlu0 0
    %1848 = vperm.xlu0 %1847, %v1673
    %v1849 = vpop.permute.xlu0 %1848
    %v1851 = vmul.f32 %v1795, %v1814
    %v1852 = vmul.f32 %v1796, %v1814
    %v1853 = vmul.f32 %v1797, %v1819
    %v1854 = vmul.f32 %v1798, %v1819
    %v1855 = vmul.f32 %v1799, %v1824
    %v1856 = vmul.f32 %v1800, %v1824
    %v1857 = vmul.f32 %v1801, %v1829
    %v1858 = vmul.f32 %v1802, %v1829
    %v1859 = vmul.f32 %v1803, %v1834
    %v1860 = vmul.f32 %v1804, %v1834
    %v1861 = vmul.f32 %v1805, %v1839
    %v1862 = vmul.f32 %v1806, %v1839
    %v1863 = vmul.f32 %v1807, %v1844
    %v1864 = vmul.f32 %v1808, %v1844
    %v1865 = vmul.f32 %v1809, %v1849
    %v1866 = vmul.f32 %v1810, %v1849
    %1868 = vset.pattern.permute.xlu0 0
    %1869 = vperm.xlu0 %1868, %v1675
    %v1870 = vpop.permute.xlu0 %1869
    %1873 = vset.pattern.permute.xlu0 0
    %1874 = vperm.xlu0 %1873, %v1676
    %v1875 = vpop.permute.xlu0 %1874
    %1878 = vset.pattern.permute.xlu0 0
    %1879 = vperm.xlu0 %1878, %v1677
    %v1880 = vpop.permute.xlu0 %1879
    %1883 = vset.pattern.permute.xlu0 0
    %1884 = vperm.xlu0 %1883, %v1678
    %v1885 = vpop.permute.xlu0 %1884
    %1888 = vset.pattern.permute.xlu0 0
    %1889 = vperm.xlu0 %1888, %v1679
    %v1890 = vpop.permute.xlu0 %1889
    %1893 = vset.pattern.permute.xlu0 0
    %1894 = vperm.xlu0 %1893, %v1680
    %v1895 = vpop.permute.xlu0 %1894
    %1898 = vset.pattern.permute.xlu0 0
    %1899 = vperm.xlu0 %1898, %v1681
    %v1900 = vpop.permute.xlu0 %1899
    %1903 = vset.pattern.permute.xlu0 0
    %1904 = vperm.xlu0 %1903, %v1682
    %v1905 = vpop.permute.xlu0 %1904
    %v1907 = vadd.f32 %v1851, %v1870
    %v1908 = vadd.f32 %v1852, %v1870
    %v1909 = vadd.f32 %v1853, %v1875
    %v1910 = vadd.f32 %v1854, %v1875
    %v1911 = vadd.f32 %v1855, %v1880
    %v1912 = vadd.f32 %v1856, %v1880
    %v1913 = vadd.f32 %v1857, %v1885
    %v1914 = vadd.f32 %v1858, %v1885
    %v1915 = vadd.f32 %v1859, %v1890
    %v1916 = vadd.f32 %v1860, %v1890
    %v1917 = vadd.f32 %v1861, %v1895
    %v1918 = vadd.f32 %v1862, %v1895
    %v1919 = vadd.f32 %v1863, %v1900
    %v1920 = vadd.f32 %v1864, %v1900
    %v1921 = vadd.f32 %v1865, %v1905
    %v1922 = vadd.f32 %v1866, %v1905
    %v1923 = vmax.f32 %v1907, 0.0
    %v1924 = vmax.f32 %v1908, 0.0
    %v1925 = vmax.f32 %v1909, 0.0
    %v1926 = vmax.f32 %v1910, 0.0
    %v1927 = vmax.f32 %v1911, 0.0
    %v1928 = vmax.f32 %v1912, 0.0
    %v1929 = vmax.f32 %v1913, 0.0
    %v1930 = vmax.f32 %v1914, 0.0
    %v1931 = vmax.f32 %v1915, 0.0
    %v1932 = vmax.f32 %v1916, 0.0
    %v1933 = vmax.f32 %v1917, 0.0
    %v1934 = vmax.f32 %v1918, 0.0
    %v1935 = vmax.f32 %v1919, 0.0
    %v1936 = vmax.f32 %v1920, 0.0
    %v1937 = vmax.f32 %v1921, 0.0
    %v1938 = vmax.f32 %v1922, 0.0
    %s1939 = scalar_lea.vmem %s2, 128
    %v1940 = vld [vmem:[%s1939] sm:$0xff]
    %v1941 = vld [vmem:[%s1939 + $0x8] sm:$0xff]
    %v1942 = vld [vmem:[%s1939 + $0x10] sm:$0xff]
    %v1943 = vld [vmem:[%s1939 + $0x18] sm:$0xff]
    %v1944 = vld [vmem:[%s1939 + $0x20] sm:$0xff]
    %v1945 = vld [vmem:[%s1939 + $0x28] sm:$0xff]
    %v1946 = vld [vmem:[%s1939 + $0x30] sm:$0xff]
    %v1947 = vld [vmem:[%s1939 + $0x38] sm:$0xff]
    %v1949 = vsel %vm516, %v1940, 0
    %v1952 = vsel %vm516, %v1941, 0
    %v1955 = vsel %vm516, %v1942, 0
    %v1958 = vsel %vm516, %v1943, 0
    %v1961 = vsel %vm516, %v1944, 0
    %v1964 = vsel %vm516, %v1945, 0
    %v1967 = vsel %vm516, %v1946, 0
    %v1970 = vsel %vm516, %v1947, 0
    %1972 = vmatprep.subr.mxu0 0.0
    %1973 = vmatpush1.msra.mxu0 0.0
    %1974 = vmatprep.subr.mxu0 0.0
    %1975 = vmatpush1.msra.mxu0 0.0
    %1976 = vmatprep.subr.mxu0 0.0
    %1977 = vmatpush1.msra.mxu0 0.0
    %1978 = vmatprep.subr.mxu0 0.0
    %1979 = vmatpush1.msra.mxu0 0.0
    %1980 = vmatprep.subr.mxu0 0.0
    %1981 = vmatpush1.msra.mxu0 0.0
    %1982 = vmatprep.subr.mxu0 0.0
    %1983 = vmatpush1.msra.mxu0 0.0
    %1984 = vmatprep.subr.mxu0 0.0
    %1985 = vmatpush1.msra.mxu0 0.0
    %1986 = vmatprep.subr.mxu0 0.0
    %1987 = vmatpush1.msra.mxu0 0.0
    %1988 = vmatprep.subr.mxu0 %v1938
    %1989 = vmatpush1.msra.mxu0 %v1937
    %1990 = vmatprep.subr.mxu0 %v1936
    %1991 = vmatpush1.msra.mxu0 %v1935
    %1992 = vmatprep.subr.mxu0 %v1934
    %1993 = vmatpush1.msra.mxu0 %v1933
    %1994 = vmatprep.subr.mxu0 %v1932
    %1995 = vmatpush1.msra.mxu0 %v1931
    %1996 = vmatprep.subr.mxu0 %v1930
    %1997 = vmatpush1.msra.mxu0 %v1929
    %1998 = vmatprep.subr.mxu0 %v1928
    %1999 = vmatpush1.msra.mxu0 %v1927
    %2000 = vmatprep.subr.mxu0 %v1926
    %2001 = vmatpush1.msra.mxu0 %v1925
    %2002 = vmatprep.subr.mxu0 %v1924
    %2003 = vmatpush1.msra.mxu0 %v1923
    %2004 = vmatprep.subr.mxu0 0.0
    %2005 = vmatpush2.msra.mxu0 0.0
    %2006 = vmatprep.subr.mxu0 0.0
    %2007 = vmatpush2.msra.mxu0 0.0
    %2008 = vmatprep.subr.mxu0 0.0
    %2009 = vmatpush2.msra.mxu0 0.0
    %2010 = vmatprep.subr.mxu0 0.0
    %2011 = vmatpush2.msra.mxu0 0.0
    %2012 = vmatprep.subr.mxu0 0.0
    %2013 = vmatpush2.msra.mxu0 0.0
    %2014 = vmatprep.subr.mxu0 0.0
    %2015 = vmatpush2.msra.mxu0 0.0
    %2016 = vmatprep.subr.mxu0 0.0
    %2017 = vmatpush2.msra.mxu0 0.0
    %2018 = vmatprep.subr.mxu0 0.0
    %2019 = vmatpush2.msra.mxu0 0.0
    %2020 = vmatprep.subr.mxu0 0.0
    %2021 = vmatpush2.msra.mxu0 0.0
    %2022 = vmatprep.subr.mxu0 0.0
    %2023 = vmatpush2.msra.mxu0 0.0
    %2024 = vmatprep.subr.mxu0 0.0
    %2025 = vmatpush2.msra.mxu0 0.0
    %2026 = vmatprep.subr.mxu0 0.0
    %2027 = vmatpush2.msra.mxu0 0.0
    %2028 = vmatprep.subr.mxu0 0.0
    %2029 = vmatpush2.msra.mxu0 0.0
    %2030 = vmatprep.subr.mxu0 0.0
    %2031 = vmatpush2.msra.mxu0 0.0
    %2032 = vmatprep.subr.mxu0 0.0
    %2033 = vmatpush2.msra.mxu0 0.0
    %2034 = vmatprep.subr.mxu0 0.0
    %2035 = vmatpush2.msra.mxu0 0.0
    %2036 = vmatprep.mubr.f32.mxu0 0.0
    %2037 = vmatmul.mubr.f32.gmra.mxu0 %v1949
    %v2038 = vpop.f32.mrf.mxu0
    %v2039 = vadd.f32 0.0, %v2038
    %v2040 = vpop.f32.mrf.mxu0
    %v2041 = vadd.f32 0.0, %v2040
    %2042 = vmatprep.mubr.f32.mxu0 0.0
    %2043 = vmatmul.mubr.f32.gmra.mxu0 %v1952
    %v2044 = vpop.f32.mrf.mxu0
    %v2045 = vadd.f32 0.0, %v2044
    %v2046 = vpop.f32.mrf.mxu0
    %v2047 = vadd.f32 0.0, %v2046
    %2048 = vmatprep.mubr.f32.mxu0 0.0
    %2049 = vmatmul.mubr.f32.gmra.mxu0 %v1955
    %v2050 = vpop.f32.mrf.mxu0
    %v2051 = vadd.f32 0.0, %v2050
    %v2052 = vpop.f32.mrf.mxu0
    %v2053 = vadd.f32 0.0, %v2052
    %2054 = vmatprep.mubr.f32.mxu0 0.0
    %2055 = vmatmul.mubr.f32.gmra.mxu0 %v1958
    %v2056 = vpop.f32.mrf.mxu0
    %v2057 = vadd.f32 0.0, %v2056
    %v2058 = vpop.f32.mrf.mxu0
    %v2059 = vadd.f32 0.0, %v2058
    %2060 = vmatprep.mubr.f32.mxu0 0.0
    %2061 = vmatmul.mubr.f32.gmra.mxu0 %v1961
    %v2062 = vpop.f32.mrf.mxu0
    %v2063 = vadd.f32 0.0, %v2062
    %v2064 = vpop.f32.mrf.mxu0
    %v2065 = vadd.f32 0.0, %v2064
    %2066 = vmatprep.mubr.f32.mxu0 0.0
    %2067 = vmatmul.mubr.f32.gmra.mxu0 %v1964
    %v2068 = vpop.f32.mrf.mxu0
    %v2069 = vadd.f32 0.0, %v2068
    %v2070 = vpop.f32.mrf.mxu0
    %v2071 = vadd.f32 0.0, %v2070
    %2072 = vmatprep.mubr.f32.mxu0 0.0
    %2073 = vmatmul.mubr.f32.gmra.mxu0 %v1967
    %v2074 = vpop.f32.mrf.mxu0
    %v2075 = vadd.f32 0.0, %v2074
    %v2076 = vpop.f32.mrf.mxu0
    %v2077 = vadd.f32 0.0, %v2076
    %2078 = vmatprep.mubr.f32.mxu0 0.0
    %2079 = vmatmul.mubr.f32.gmra.mxu0 %v1970
    %v2080 = vpop.f32.mrf.mxu0
    %v2081 = vadd.f32 0.0, %v2080
    %v2082 = vpop.f32.mrf.mxu0
    %v2083 = vadd.f32 0.0, %v2082
    %2084 = vdwg.mxu0
    %s2085 = scalar_lea.vmem %s5, 256
    %v2086 = vld [vmem:[%s2085] sm:$0xff]
    %v2087 = vld [vmem:[%s2085 + $0x8] sm:$0xff]
    %v2088 = vld [vmem:[%s2085 + $0x10] sm:$0xff]
    %v2089 = vld [vmem:[%s2085 + $0x18] sm:$0xff]
    %v2090 = vld [vmem:[%s2085 + $0x20] sm:$0xff]
    %v2091 = vld [vmem:[%s2085 + $0x28] sm:$0xff]
    %v2092 = vld [vmem:[%s2085 + $0x30] sm:$0xff]
    %v2093 = vld [vmem:[%s2085 + $0x38] sm:$0xff]
    %s2094 = scalar_lea.vmem %s6, 256
    %v2095 = vld [vmem:[%s2094] sm:$0xff]
    %v2096 = vld [vmem:[%s2094 + $0x8] sm:$0xff]
    %v2097 = vld [vmem:[%s2094 + $0x10] sm:$0xff]
    %v2098 = vld [vmem:[%s2094 + $0x18] sm:$0xff]
    %v2099 = vld [vmem:[%s2094 + $0x20] sm:$0xff]
    %v2100 = vld [vmem:[%s2094 + $0x28] sm:$0xff]
    %v2101 = vld [vmem:[%s2094 + $0x30] sm:$0xff]
    %v2102 = vld [vmem:[%s2094 + $0x38] sm:$0xff]
    %v2103 = vadd.f32 %v2039, %v2041
    %2104 = vadd.xlane.f32.xlu0 %v2103
    %v2105 = vpop.xlane.xlu0 %2104
    %v2106 = vadd.f32 %v2045, %v2047
    %2107 = vadd.xlane.f32.xlu0 %v2106
    %v2108 = vpop.xlane.xlu0 %2107
    %v2109 = vadd.f32 %v2051, %v2053
    %2110 = vadd.xlane.f32.xlu0 %v2109
    %v2111 = vpop.xlane.xlu0 %2110
    %v2112 = vadd.f32 %v2057, %v2059
    %2113 = vadd.xlane.f32.xlu0 %v2112
    %v2114 = vpop.xlane.xlu0 %2113
    %v2115 = vadd.f32 %v2063, %v2065
    %2116 = vadd.xlane.f32.xlu0 %v2115
    %v2117 = vpop.xlane.xlu0 %2116
    %v2118 = vadd.f32 %v2069, %v2071
    %2119 = vadd.xlane.f32.xlu0 %v2118
    %v2120 = vpop.xlane.xlu0 %2119
    %v2121 = vadd.f32 %v2075, %v2077
    %2122 = vadd.xlane.f32.xlu0 %v2121
    %v2123 = vpop.xlane.xlu0 %2122
    %v2124 = vadd.f32 %v2081, %v2083
    %2125 = vadd.xlane.f32.xlu0 %v2124
    %v2126 = vpop.xlane.xlu0 %2125
    %v2127 = vmul.f32 %v2105, 0.00390625
    %v2128 = vmul.f32 %v2108, 0.00390625
    %v2129 = vmul.f32 %v2111, 0.00390625
    %v2130 = vmul.f32 %v2114, 0.00390625
    %v2131 = vmul.f32 %v2117, 0.00390625
    %v2132 = vmul.f32 %v2120, 0.00390625
    %v2133 = vmul.f32 %v2123, 0.00390625
    %v2134 = vmul.f32 %v2126, 0.00390625
    %v2135 = vsub.f32 %v2039, %v2127
    %v2136 = vsub.f32 %v2041, %v2127
    %v2137 = vsub.f32 %v2045, %v2128
    %v2138 = vsub.f32 %v2047, %v2128
    %v2139 = vsub.f32 %v2051, %v2129
    %v2140 = vsub.f32 %v2053, %v2129
    %v2141 = vsub.f32 %v2057, %v2130
    %v2142 = vsub.f32 %v2059, %v2130
    %v2143 = vsub.f32 %v2063, %v2131
    %v2144 = vsub.f32 %v2065, %v2131
    %v2145 = vsub.f32 %v2069, %v2132
    %v2146 = vsub.f32 %v2071, %v2132
    %v2147 = vsub.f32 %v2075, %v2133
    %v2148 = vsub.f32 %v2077, %v2133
    %v2149 = vsub.f32 %v2081, %v2134
    %v2150 = vsub.f32 %v2083, %v2134
    %v2151 = vmul.f32 %v2135, %v2135
    %v2152 = vmul.f32 %v2136, %v2136
    %v2153 = vmul.f32 %v2137, %v2137
    %v2154 = vmul.f32 %v2138, %v2138
    %v2155 = vmul.f32 %v2139, %v2139
    %v2156 = vmul.f32 %v2140, %v2140
    %v2157 = vmul.f32 %v2141, %v2141
    %v2158 = vmul.f32 %v2142, %v2142
    %v2159 = vmul.f32 %v2143, %v2143
    %v2160 = vmul.f32 %v2144, %v2144
    %v2161 = vmul.f32 %v2145, %v2145
    %v2162 = vmul.f32 %v2146, %v2146
    %v2163 = vmul.f32 %v2147, %v2147
    %v2164 = vmul.f32 %v2148, %v2148
    %v2165 = vmul.f32 %v2149, %v2149
    %v2166 = vmul.f32 %v2150, %v2150
    %v2167 = vadd.f32 %v2151, %v2152
    %2168 = vadd.xlane.f32.xlu0 %v2167
    %v2169 = vpop.xlane.xlu0 %2168
    %v2170 = vadd.f32 %v2153, %v2154
    %2171 = vadd.xlane.f32.xlu0 %v2170
    %v2172 = vpop.xlane.xlu0 %2171
    %v2173 = vadd.f32 %v2155, %v2156
    %2174 = vadd.xlane.f32.xlu0 %v2173
    %v2175 = vpop.xlane.xlu0 %2174
    %v2176 = vadd.f32 %v2157, %v2158
    %2177 = vadd.xlane.f32.xlu0 %v2176
    %v2178 = vpop.xlane.xlu0 %2177
    %v2179 = vadd.f32 %v2159, %v2160
    %2180 = vadd.xlane.f32.xlu0 %v2179
    %v2181 = vpop.xlane.xlu0 %2180
    %v2182 = vadd.f32 %v2161, %v2162
    %2183 = vadd.xlane.f32.xlu0 %v2182
    %v2184 = vpop.xlane.xlu0 %2183
    %v2185 = vadd.f32 %v2163, %v2164
    %2186 = vadd.xlane.f32.xlu0 %v2185
    %v2187 = vpop.xlane.xlu0 %2186
    %v2188 = vadd.f32 %v2165, %v2166
    %2189 = vadd.xlane.f32.xlu0 %v2188
    %v2190 = vpop.xlane.xlu0 %2189
    %v2191 = vmul.f32 %v2169, 0.00390625
    %v2192 = vmul.f32 %v2172, 0.00390625
    %v2193 = vmul.f32 %v2175, 0.00390625
    %v2194 = vmul.f32 %v2178, 0.00390625
    %v2195 = vmul.f32 %v2181, 0.00390625
    %v2196 = vmul.f32 %v2184, 0.00390625
    %v2197 = vmul.f32 %v2187, 0.00390625
    %v2198 = vmul.f32 %v2190, 0.00390625
    %v2199 = vadd.f32 %v2191, 1e-05
    %v2200 = vadd.f32 %v2192, 1e-05
    %v2201 = vadd.f32 %v2193, 1e-05
    %v2202 = vadd.f32 %v2194, 1e-05
    %v2203 = vadd.f32 %v2195, 1e-05
    %v2204 = vadd.f32 %v2196, 1e-05
    %v2205 = vadd.f32 %v2197, 1e-05
    %v2206 = vadd.f32 %v2198, 1e-05
    %v2207 = vrsqrt.pop %v2199
    %v2208 = vrsqrt.pop %v2200
    %v2209 = vrsqrt.pop %v2201
    %v2210 = vrsqrt.pop %v2202
    %v2211 = vrsqrt.pop %v2203
    %v2212 = vrsqrt.pop %v2204
    %v2213 = vrsqrt.pop %v2205
    %v2214 = vrsqrt.pop %v2206
    %v2215 = vmul.f32 %v2135, %v2207
    %v2216 = vmul.f32 %v2136, %v2207
    %v2217 = vmul.f32 %v2137, %v2208
    %v2218 = vmul.f32 %v2138, %v2208
    %v2219 = vmul.f32 %v2139, %v2209
    %v2220 = vmul.f32 %v2140, %v2209
    %v2221 = vmul.f32 %v2141, %v2210
    %v2222 = vmul.f32 %v2142, %v2210
    %v2223 = vmul.f32 %v2143, %v2211
    %v2224 = vmul.f32 %v2144, %v2211
    %v2225 = vmul.f32 %v2145, %v2212
    %v2226 = vmul.f32 %v2146, %v2212
    %v2227 = vmul.f32 %v2147, %v2213
    %v2228 = vmul.f32 %v2148, %v2213
    %v2229 = vmul.f32 %v2149, %v2214
    %v2230 = vmul.f32 %v2150, %v2214
    %2232 = vset.pattern.permute.xlu0 0
    %2233 = vperm.xlu0 %2232, %v2086
    %v2234 = vpop.permute.xlu0 %2233
    %2237 = vset.pattern.permute.xlu0 0
    %2238 = vperm.xlu0 %2237, %v2087
    %v2239 = vpop.permute.xlu0 %2238
    %2242 = vset.pattern.permute.xlu0 0
    %2243 = vperm.xlu0 %2242, %v2088
    %v2244 = vpop.permute.xlu0 %2243
    %2247 = vset.pattern.permute.xlu0 0
    %2248 = vperm.xlu0 %2247, %v2089
    %v2249 = vpop.permute.xlu0 %2248
    %2252 = vset.pattern.permute.xlu0 0
    %2253 = vperm.xlu0 %2252, %v2090
    %v2254 = vpop.permute.xlu0 %2253
    %2257 = vset.pattern.permute.xlu0 0
    %2258 = vperm.xlu0 %2257, %v2091
    %v2259 = vpop.permute.xlu0 %2258
    %2262 = vset.pattern.permute.xlu0 0
    %2263 = vperm.xlu0 %2262, %v2092
    %v2264 = vpop.permute.xlu0 %2263
    %2267 = vset.pattern.permute.xlu0 0
    %2268 = vperm.xlu0 %2267, %v2093
    %v2269 = vpop.permute.xlu0 %2268
    %v2271 = vmul.f32 %v2215, %v2234
    %v2272 = vmul.f32 %v2216, %v2234
    %v2273 = vmul.f32 %v2217, %v2239
    %v2274 = vmul.f32 %v2218, %v2239
    %v2275 = vmul.f32 %v2219, %v2244
    %v2276 = vmul.f32 %v2220, %v2244
    %v2277 = vmul.f32 %v2221, %v2249
    %v2278 = vmul.f32 %v2222, %v2249
    %v2279 = vmul.f32 %v2223, %v2254
    %v2280 = vmul.f32 %v2224, %v2254
    %v2281 = vmul.f32 %v2225, %v2259
    %v2282 = vmul.f32 %v2226, %v2259
    %v2283 = vmul.f32 %v2227, %v2264
    %v2284 = vmul.f32 %v2228, %v2264
    %v2285 = vmul.f32 %v2229, %v2269
    %v2286 = vmul.f32 %v2230, %v2269
    %2288 = vset.pattern.permute.xlu0 0
    %2289 = vperm.xlu0 %2288, %v2095
    %v2290 = vpop.permute.xlu0 %2289
    %2293 = vset.pattern.permute.xlu0 0
    %2294 = vperm.xlu0 %2293, %v2096
    %v2295 = vpop.permute.xlu0 %2294
    %2298 = vset.pattern.permute.xlu0 0
    %2299 = vperm.xlu0 %2298, %v2097
    %v2300 = vpop.permute.xlu0 %2299
    %2303 = vset.pattern.permute.xlu0 0
    %2304 = vperm.xlu0 %2303, %v2098
    %v2305 = vpop.permute.xlu0 %2304
    %2308 = vset.pattern.permute.xlu0 0
    %2309 = vperm.xlu0 %2308, %v2099
    %v2310 = vpop.permute.xlu0 %2309
    %2313 = vset.pattern.permute.xlu0 0
    %2314 = vperm.xlu0 %2313, %v2100
    %v2315 = vpop.permute.xlu0 %2314
    %2318 = vset.pattern.permute.xlu0 0
    %2319 = vperm.xlu0 %2318, %v2101
    %v2320 = vpop.permute.xlu0 %2319
    %2323 = vset.pattern.permute.xlu0 0
    %2324 = vperm.xlu0 %2323, %v2102
    %v2325 = vpop.permute.xlu0 %2324
    %v2327 = vadd.f32 %v2271, %v2290
    %v2328 = vadd.f32 %v2272, %v2290
    %v2329 = vadd.f32 %v2273, %v2295
    %v2330 = vadd.f32 %v2274, %v2295
    %v2331 = vadd.f32 %v2275, %v2300
    %v2332 = vadd.f32 %v2276, %v2300
    %v2333 = vadd.f32 %v2277, %v2305
    %v2334 = vadd.f32 %v2278, %v2305
    %v2335 = vadd.f32 %v2279, %v2310
    %v2336 = vadd.f32 %v2280, %v2310
    %v2337 = vadd.f32 %v2281, %v2315
    %v2338 = vadd.f32 %v2282, %v2315
    %v2339 = vadd.f32 %v2283, %v2320
    %v2340 = vadd.f32 %v2284, %v2320
    %v2341 = vadd.f32 %v2285, %v2325
    %v2342 = vadd.f32 %v2286, %v2325
    %v2343 = vmax.f32 %v2327, 0.0
    %v2344 = vmax.f32 %v2328, 0.0
    %v2345 = vmax.f32 %v2329, 0.0
    %v2346 = vmax.f32 %v2330, 0.0
    %v2347 = vmax.f32 %v2331, 0.0
    %v2348 = vmax.f32 %v2332, 0.0
    %v2349 = vmax.f32 %v2333, 0.0
    %v2350 = vmax.f32 %v2334, 0.0
    %v2351 = vmax.f32 %v2335, 0.0
    %v2352 = vmax.f32 %v2336, 0.0
    %v2353 = vmax.f32 %v2337, 0.0
    %v2354 = vmax.f32 %v2338, 0.0
    %v2355 = vmax.f32 %v2339, 0.0
    %v2356 = vmax.f32 %v2340, 0.0
    %v2357 = vmax.f32 %v2341, 0.0
    %v2358 = vmax.f32 %v2342, 0.0
    %s2359 = scalar_lea.vmem %s2, 192
    %v2360 = vld [vmem:[%s2359] sm:$0xff]
    %v2361 = vld [vmem:[%s2359 + $0x8] sm:$0xff]
    %v2362 = vld [vmem:[%s2359 + $0x10] sm:$0xff]
    %v2363 = vld [vmem:[%s2359 + $0x18] sm:$0xff]
    %v2364 = vld [vmem:[%s2359 + $0x20] sm:$0xff]
    %v2365 = vld [vmem:[%s2359 + $0x28] sm:$0xff]
    %v2366 = vld [vmem:[%s2359 + $0x30] sm:$0xff]
    %v2367 = vld [vmem:[%s2359 + $0x38] sm:$0xff]
    %v2369 = vsel %vm516, %v2360, 0
    %v2372 = vsel %vm516, %v2361, 0
    %v2375 = vsel %vm516, %v2362, 0
    %v2378 = vsel %vm516, %v2363, 0
    %v2381 = vsel %vm516, %v2364, 0
    %v2384 = vsel %vm516, %v2365, 0
    %v2387 = vsel %vm516, %v2366, 0
    %v2390 = vsel %vm516, %v2367, 0
    %2392 = vmatprep.subr.mxu0 0.0
    %2393 = vmatpush1.msra.mxu0 0.0
    %2394 = vmatprep.subr.mxu0 0.0
    %2395 = vmatpush1.msra.mxu0 0.0
    %2396 = vmatprep.subr.mxu0 0.0
    %2397 = vmatpush1.msra.mxu0 0.0
    %2398 = vmatprep.subr.mxu0 0.0
    %2399 = vmatpush1.msra.mxu0 0.0
    %2400 = vmatprep.subr.mxu0 0.0
    %2401 = vmatpush1.msra.mxu0 0.0
    %2402 = vmatprep.subr.mxu0 0.0
    %2403 = vmatpush1.msra.mxu0 0.0
    %2404 = vmatprep.subr.mxu0 0.0
    %2405 = vmatpush1.msra.mxu0 0.0
    %2406 = vmatprep.subr.mxu0 0.0
    %2407 = vmatpush1.msra.mxu0 0.0
    %2408 = vmatprep.subr.mxu0 %v2358
    %2409 = vmatpush1.msra.mxu0 %v2357
    %2410 = vmatprep.subr.mxu0 %v2356
    %2411 = vmatpush1.msra.mxu0 %v2355
    %2412 = vmatprep.subr.mxu0 %v2354
    %2413 = vmatpush1.msra.mxu0 %v2353
    %2414 = vmatprep.subr.mxu0 %v2352
    %2415 = vmatpush1.msra.mxu0 %v2351
    %2416 = vmatprep.subr.mxu0 %v2350
    %2417 = vmatpush1.msra.mxu0 %v2349
    %2418 = vmatprep.subr.mxu0 %v2348
    %2419 = vmatpush1.msra.mxu0 %v2347
    %2420 = vmatprep.subr.mxu0 %v2346
    %2421 = vmatpush1.msra.mxu0 %v2345
    %2422 = vmatprep.subr.mxu0 %v2344
    %2423 = vmatpush1.msra.mxu0 %v2343
    %2424 = vmatprep.subr.mxu0 0.0
    %2425 = vmatpush2.msra.mxu0 0.0
    %2426 = vmatprep.subr.mxu0 0.0
    %2427 = vmatpush2.msra.mxu0 0.0
    %2428 = vmatprep.subr.mxu0 0.0
    %2429 = vmatpush2.msra.mxu0 0.0
    %2430 = vmatprep.subr.mxu0 0.0
    %2431 = vmatpush2.msra.mxu0 0.0
    %2432 = vmatprep.subr.mxu0 0.0
    %2433 = vmatpush2.msra.mxu0 0.0
    %2434 = vmatprep.subr.mxu0 0.0
    %2435 = vmatpush2.msra.mxu0 0.0
    %2436 = vmatprep.subr.mxu0 0.0
    %2437 = vmatpush2.msra.mxu0 0.0
    %2438 = vmatprep.subr.mxu0 0.0
    %2439 = vmatpush2.msra.mxu0 0.0
    %2440 = vmatprep.subr.mxu0 0.0
    %2441 = vmatpush2.msra.mxu0 0.0
    %2442 = vmatprep.subr.mxu0 0.0
    %2443 = vmatpush2.msra.mxu0 0.0
    %2444 = vmatprep.subr.mxu0 0.0
    %2445 = vmatpush2.msra.mxu0 0.0
    %2446 = vmatprep.subr.mxu0 0.0
    %2447 = vmatpush2.msra.mxu0 0.0
    %2448 = vmatprep.subr.mxu0 0.0
    %2449 = vmatpush2.msra.mxu0 0.0
    %2450 = vmatprep.subr.mxu0 0.0
    %2451 = vmatpush2.msra.mxu0 0.0
    %2452 = vmatprep.subr.mxu0 0.0
    %2453 = vmatpush2.msra.mxu0 0.0
    %2454 = vmatprep.subr.mxu0 0.0
    %2455 = vmatpush2.msra.mxu0 0.0
    %2456 = vmatprep.mubr.f32.mxu0 0.0
    %2457 = vmatmul.mubr.f32.gmra.mxu0 %v2369
    %v2458 = vpop.f32.mrf.mxu0
    %v2459 = vadd.f32 0.0, %v2458
    %v2460 = vpop.f32.mrf.mxu0
    %v2461 = vadd.f32 0.0, %v2460
    %2462 = vmatprep.mubr.f32.mxu0 0.0
    %2463 = vmatmul.mubr.f32.gmra.mxu0 %v2372
    %v2464 = vpop.f32.mrf.mxu0
    %v2465 = vadd.f32 0.0, %v2464
    %v2466 = vpop.f32.mrf.mxu0
    %v2467 = vadd.f32 0.0, %v2466
    %2468 = vmatprep.mubr.f32.mxu0 0.0
    %2469 = vmatmul.mubr.f32.gmra.mxu0 %v2375
    %v2470 = vpop.f32.mrf.mxu0
    %v2471 = vadd.f32 0.0, %v2470
    %v2472 = vpop.f32.mrf.mxu0
    %v2473 = vadd.f32 0.0, %v2472
    %2474 = vmatprep.mubr.f32.mxu0 0.0
    %2475 = vmatmul.mubr.f32.gmra.mxu0 %v2378
    %v2476 = vpop.f32.mrf.mxu0
    %v2477 = vadd.f32 0.0, %v2476
    %v2478 = vpop.f32.mrf.mxu0
    %v2479 = vadd.f32 0.0, %v2478
    %2480 = vmatprep.mubr.f32.mxu0 0.0
    %2481 = vmatmul.mubr.f32.gmra.mxu0 %v2381
    %v2482 = vpop.f32.mrf.mxu0
    %v2483 = vadd.f32 0.0, %v2482
    %v2484 = vpop.f32.mrf.mxu0
    %v2485 = vadd.f32 0.0, %v2484
    %2486 = vmatprep.mubr.f32.mxu0 0.0
    %2487 = vmatmul.mubr.f32.gmra.mxu0 %v2384
    %v2488 = vpop.f32.mrf.mxu0
    %v2489 = vadd.f32 0.0, %v2488
    %v2490 = vpop.f32.mrf.mxu0
    %v2491 = vadd.f32 0.0, %v2490
    %2492 = vmatprep.mubr.f32.mxu0 0.0
    %2493 = vmatmul.mubr.f32.gmra.mxu0 %v2387
    %v2494 = vpop.f32.mrf.mxu0
    %v2495 = vadd.f32 0.0, %v2494
    %v2496 = vpop.f32.mrf.mxu0
    %v2497 = vadd.f32 0.0, %v2496
    %2498 = vmatprep.mubr.f32.mxu0 0.0
    %2499 = vmatmul.mubr.f32.gmra.mxu0 %v2390
    %v2500 = vpop.f32.mrf.mxu0
    %v2501 = vadd.f32 0.0, %v2500
    %v2502 = vpop.f32.mrf.mxu0
    %v2503 = vadd.f32 0.0, %v2502
    %2504 = vdwg.mxu0
    %s2505 = scalar_lea.vmem %s5, 320
    %v2506 = vld [vmem:[%s2505] sm:$0xff]
    %v2507 = vld [vmem:[%s2505 + $0x8] sm:$0xff]
    %v2508 = vld [vmem:[%s2505 + $0x10] sm:$0xff]
    %v2509 = vld [vmem:[%s2505 + $0x18] sm:$0xff]
    %v2510 = vld [vmem:[%s2505 + $0x20] sm:$0xff]
    %v2511 = vld [vmem:[%s2505 + $0x28] sm:$0xff]
    %v2512 = vld [vmem:[%s2505 + $0x30] sm:$0xff]
    %v2513 = vld [vmem:[%s2505 + $0x38] sm:$0xff]
    %s2514 = scalar_lea.vmem %s6, 320
    %v2515 = vld [vmem:[%s2514] sm:$0xff]
    %v2516 = vld [vmem:[%s2514 + $0x8] sm:$0xff]
    %v2517 = vld [vmem:[%s2514 + $0x10] sm:$0xff]
    %v2518 = vld [vmem:[%s2514 + $0x18] sm:$0xff]
    %v2519 = vld [vmem:[%s2514 + $0x20] sm:$0xff]
    %v2520 = vld [vmem:[%s2514 + $0x28] sm:$0xff]
    %v2521 = vld [vmem:[%s2514 + $0x30] sm:$0xff]
    %v2522 = vld [vmem:[%s2514 + $0x38] sm:$0xff]
    %v2523 = vadd.f32 %v2459, %v2461
    %2524 = vadd.xlane.f32.xlu0 %v2523
    %v2525 = vpop.xlane.xlu0 %2524
    %v2526 = vadd.f32 %v2465, %v2467
    %2527 = vadd.xlane.f32.xlu0 %v2526
    %v2528 = vpop.xlane.xlu0 %2527
    %v2529 = vadd.f32 %v2471, %v2473
    %2530 = vadd.xlane.f32.xlu0 %v2529
    %v2531 = vpop.xlane.xlu0 %2530
    %v2532 = vadd.f32 %v2477, %v2479
    %2533 = vadd.xlane.f32.xlu0 %v2532
    %v2534 = vpop.xlane.xlu0 %2533
    %v2535 = vadd.f32 %v2483, %v2485
    %2536 = vadd.xlane.f32.xlu0 %v2535
    %v2537 = vpop.xlane.xlu0 %2536
    %v2538 = vadd.f32 %v2489, %v2491
    %2539 = vadd.xlane.f32.xlu0 %v2538
    %v2540 = vpop.xlane.xlu0 %2539
    %v2541 = vadd.f32 %v2495, %v2497
    %2542 = vadd.xlane.f32.xlu0 %v2541
    %v2543 = vpop.xlane.xlu0 %2542
    %v2544 = vadd.f32 %v2501, %v2503
    %2545 = vadd.xlane.f32.xlu0 %v2544
    %v2546 = vpop.xlane.xlu0 %2545
    %v2547 = vmul.f32 %v2525, 0.00390625
    %v2548 = vmul.f32 %v2528, 0.00390625
    %v2549 = vmul.f32 %v2531, 0.00390625
    %v2550 = vmul.f32 %v2534, 0.00390625
    %v2551 = vmul.f32 %v2537, 0.00390625
    %v2552 = vmul.f32 %v2540, 0.00390625
    %v2553 = vmul.f32 %v2543, 0.00390625
    %v2554 = vmul.f32 %v2546, 0.00390625
    %v2555 = vsub.f32 %v2459, %v2547
    %v2556 = vsub.f32 %v2461, %v2547
    %v2557 = vsub.f32 %v2465, %v2548
    %v2558 = vsub.f32 %v2467, %v2548
    %v2559 = vsub.f32 %v2471, %v2549
    %v2560 = vsub.f32 %v2473, %v2549
    %v2561 = vsub.f32 %v2477, %v2550
    %v2562 = vsub.f32 %v2479, %v2550
    %v2563 = vsub.f32 %v2483, %v2551
    %v2564 = vsub.f32 %v2485, %v2551
    %v2565 = vsub.f32 %v2489, %v2552
    %v2566 = vsub.f32 %v2491, %v2552
    %v2567 = vsub.f32 %v2495, %v2553
    %v2568 = vsub.f32 %v2497, %v2553
    %v2569 = vsub.f32 %v2501, %v2554
    %v2570 = vsub.f32 %v2503, %v2554
    %v2571 = vmul.f32 %v2555, %v2555
    %v2572 = vmul.f32 %v2556, %v2556
    %v2573 = vmul.f32 %v2557, %v2557
    %v2574 = vmul.f32 %v2558, %v2558
    %v2575 = vmul.f32 %v2559, %v2559
    %v2576 = vmul.f32 %v2560, %v2560
    %v2577 = vmul.f32 %v2561, %v2561
    %v2578 = vmul.f32 %v2562, %v2562
    %v2579 = vmul.f32 %v2563, %v2563
    %v2580 = vmul.f32 %v2564, %v2564
    %v2581 = vmul.f32 %v2565, %v2565
    %v2582 = vmul.f32 %v2566, %v2566
    %v2583 = vmul.f32 %v2567, %v2567
    %v2584 = vmul.f32 %v2568, %v2568
    %v2585 = vmul.f32 %v2569, %v2569
    %v2586 = vmul.f32 %v2570, %v2570
    %v2587 = vadd.f32 %v2571, %v2572
    %2588 = vadd.xlane.f32.xlu0 %v2587
    %v2589 = vpop.xlane.xlu0 %2588
    %v2590 = vadd.f32 %v2573, %v2574
    %2591 = vadd.xlane.f32.xlu0 %v2590
    %v2592 = vpop.xlane.xlu0 %2591
    %v2593 = vadd.f32 %v2575, %v2576
    %2594 = vadd.xlane.f32.xlu0 %v2593
    %v2595 = vpop.xlane.xlu0 %2594
    %v2596 = vadd.f32 %v2577, %v2578
    %2597 = vadd.xlane.f32.xlu0 %v2596
    %v2598 = vpop.xlane.xlu0 %2597
    %v2599 = vadd.f32 %v2579, %v2580
    %2600 = vadd.xlane.f32.xlu0 %v2599
    %v2601 = vpop.xlane.xlu0 %2600
    %v2602 = vadd.f32 %v2581, %v2582
    %2603 = vadd.xlane.f32.xlu0 %v2602
    %v2604 = vpop.xlane.xlu0 %2603
    %v2605 = vadd.f32 %v2583, %v2584
    %2606 = vadd.xlane.f32.xlu0 %v2605
    %v2607 = vpop.xlane.xlu0 %2606
    %v2608 = vadd.f32 %v2585, %v2586
    %2609 = vadd.xlane.f32.xlu0 %v2608
    %v2610 = vpop.xlane.xlu0 %2609
    %v2611 = vmul.f32 %v2589, 0.00390625
    %v2612 = vmul.f32 %v2592, 0.00390625
    %v2613 = vmul.f32 %v2595, 0.00390625
    %v2614 = vmul.f32 %v2598, 0.00390625
    %v2615 = vmul.f32 %v2601, 0.00390625
    %v2616 = vmul.f32 %v2604, 0.00390625
    %v2617 = vmul.f32 %v2607, 0.00390625
    %v2618 = vmul.f32 %v2610, 0.00390625
    %v2619 = vadd.f32 %v2611, 1e-05
    %v2620 = vadd.f32 %v2612, 1e-05
    %v2621 = vadd.f32 %v2613, 1e-05
    %v2622 = vadd.f32 %v2614, 1e-05
    %v2623 = vadd.f32 %v2615, 1e-05
    %v2624 = vadd.f32 %v2616, 1e-05
    %v2625 = vadd.f32 %v2617, 1e-05
    %v2626 = vadd.f32 %v2618, 1e-05
    %v2627 = vrsqrt.pop %v2619
    %v2628 = vrsqrt.pop %v2620
    %v2629 = vrsqrt.pop %v2621
    %v2630 = vrsqrt.pop %v2622
    %v2631 = vrsqrt.pop %v2623
    %v2632 = vrsqrt.pop %v2624
    %v2633 = vrsqrt.pop %v2625
    %v2634 = vrsqrt.pop %v2626
    %v2635 = vmul.f32 %v2555, %v2627
    %v2636 = vmul.f32 %v2556, %v2627
    %v2637 = vmul.f32 %v2557, %v2628
    %v2638 = vmul.f32 %v2558, %v2628
    %v2639 = vmul.f32 %v2559, %v2629
    %v2640 = vmul.f32 %v2560, %v2629
    %v2641 = vmul.f32 %v2561, %v2630
    %v2642 = vmul.f32 %v2562, %v2630
    %v2643 = vmul.f32 %v2563, %v2631
    %v2644 = vmul.f32 %v2564, %v2631
    %v2645 = vmul.f32 %v2565, %v2632
    %v2646 = vmul.f32 %v2566, %v2632
    %v2647 = vmul.f32 %v2567, %v2633
    %v2648 = vmul.f32 %v2568, %v2633
    %v2649 = vmul.f32 %v2569, %v2634
    %v2650 = vmul.f32 %v2570, %v2634
    %2652 = vset.pattern.permute.xlu0 0
    %2653 = vperm.xlu0 %2652, %v2506
    %v2654 = vpop.permute.xlu0 %2653
    %2657 = vset.pattern.permute.xlu0 0
    %2658 = vperm.xlu0 %2657, %v2507
    %v2659 = vpop.permute.xlu0 %2658
    %2662 = vset.pattern.permute.xlu0 0
    %2663 = vperm.xlu0 %2662, %v2508
    %v2664 = vpop.permute.xlu0 %2663
    %2667 = vset.pattern.permute.xlu0 0
    %2668 = vperm.xlu0 %2667, %v2509
    %v2669 = vpop.permute.xlu0 %2668
    %2672 = vset.pattern.permute.xlu0 0
    %2673 = vperm.xlu0 %2672, %v2510
    %v2674 = vpop.permute.xlu0 %2673
    %2677 = vset.pattern.permute.xlu0 0
    %2678 = vperm.xlu0 %2677, %v2511
    %v2679 = vpop.permute.xlu0 %2678
    %2682 = vset.pattern.permute.xlu0 0
    %2683 = vperm.xlu0 %2682, %v2512
    %v2684 = vpop.permute.xlu0 %2683
    %2687 = vset.pattern.permute.xlu0 0
    %2688 = vperm.xlu0 %2687, %v2513
    %v2689 = vpop.permute.xlu0 %2688
    %v2691 = vmul.f32 %v2635, %v2654
    %v2692 = vmul.f32 %v2636, %v2654
    %v2693 = vmul.f32 %v2637, %v2659
    %v2694 = vmul.f32 %v2638, %v2659
    %v2695 = vmul.f32 %v2639, %v2664
    %v2696 = vmul.f32 %v2640, %v2664
    %v2697 = vmul.f32 %v2641, %v2669
    %v2698 = vmul.f32 %v2642, %v2669
    %v2699 = vmul.f32 %v2643, %v2674
    %v2700 = vmul.f32 %v2644, %v2674
    %v2701 = vmul.f32 %v2645, %v2679
    %v2702 = vmul.f32 %v2646, %v2679
    %v2703 = vmul.f32 %v2647, %v2684
    %v2704 = vmul.f32 %v2648, %v2684
    %v2705 = vmul.f32 %v2649, %v2689
    %v2706 = vmul.f32 %v2650, %v2689
    %2708 = vset.pattern.permute.xlu0 0
    %2709 = vperm.xlu0 %2708, %v2515
    %v2710 = vpop.permute.xlu0 %2709
    %2713 = vset.pattern.permute.xlu0 0
    %2714 = vperm.xlu0 %2713, %v2516
    %v2715 = vpop.permute.xlu0 %2714
    %2718 = vset.pattern.permute.xlu0 0
    %2719 = vperm.xlu0 %2718, %v2517
    %v2720 = vpop.permute.xlu0 %2719
    %2723 = vset.pattern.permute.xlu0 0
    %2724 = vperm.xlu0 %2723, %v2518
    %v2725 = vpop.permute.xlu0 %2724
    %2728 = vset.pattern.permute.xlu0 0
    %2729 = vperm.xlu0 %2728, %v2519
    %v2730 = vpop.permute.xlu0 %2729
    %2733 = vset.pattern.permute.xlu0 0
    %2734 = vperm.xlu0 %2733, %v2520
    %v2735 = vpop.permute.xlu0 %2734
    %2738 = vset.pattern.permute.xlu0 0
    %2739 = vperm.xlu0 %2738, %v2521
    %v2740 = vpop.permute.xlu0 %2739
    %2743 = vset.pattern.permute.xlu0 0
    %2744 = vperm.xlu0 %2743, %v2522
    %v2745 = vpop.permute.xlu0 %2744
    %v2747 = vadd.f32 %v2691, %v2710
    %v2748 = vadd.f32 %v2692, %v2710
    %v2749 = vadd.f32 %v2693, %v2715
    %v2750 = vadd.f32 %v2694, %v2715
    %v2751 = vadd.f32 %v2695, %v2720
    %v2752 = vadd.f32 %v2696, %v2720
    %v2753 = vadd.f32 %v2697, %v2725
    %v2754 = vadd.f32 %v2698, %v2725
    %v2755 = vadd.f32 %v2699, %v2730
    %v2756 = vadd.f32 %v2700, %v2730
    %v2757 = vadd.f32 %v2701, %v2735
    %v2758 = vadd.f32 %v2702, %v2735
    %v2759 = vadd.f32 %v2703, %v2740
    %v2760 = vadd.f32 %v2704, %v2740
    %v2761 = vadd.f32 %v2705, %v2745
    %v2762 = vadd.f32 %v2706, %v2745
    %v2763 = vmax.f32 %v2747, 0.0
    %v2764 = vmax.f32 %v2748, 0.0
    %v2765 = vmax.f32 %v2749, 0.0
    %v2766 = vmax.f32 %v2750, 0.0
    %v2767 = vmax.f32 %v2751, 0.0
    %v2768 = vmax.f32 %v2752, 0.0
    %v2769 = vmax.f32 %v2753, 0.0
    %v2770 = vmax.f32 %v2754, 0.0
    %v2771 = vmax.f32 %v2755, 0.0
    %v2772 = vmax.f32 %v2756, 0.0
    %v2773 = vmax.f32 %v2757, 0.0
    %v2774 = vmax.f32 %v2758, 0.0
    %v2775 = vmax.f32 %v2759, 0.0
    %v2776 = vmax.f32 %v2760, 0.0
    %v2777 = vmax.f32 %v2761, 0.0
    %v2778 = vmax.f32 %v2762, 0.0
    %s2779 = scalar_lea.vmem %s3, 16
    %v2780 = vld [vmem:[%s2779] sm:$0xff]
    %v2781 = vld [vmem:[%s2779 + $0x8] sm:$0xff]
    %s2782 = scalar_lea.vmem %s4, 16
    %v2783 = vld [vmem:[%s2782] sm:$0xff]
    %v2784 = vld [vmem:[%s2782 + $0x8] sm:$0xff]
    %2786 = vset.pattern.permute.xlu0 0
    %2787 = vperm.xlu0 %2786, %v2783
    %v2788 = vpop.permute.xlu0 %2787
    %2791 = vset.pattern.permute.xlu0 0
    %2792 = vperm.xlu0 %2791, %v2784
    %v2793 = vpop.permute.xlu0 %2792
    %v2796 = vsel %vm516, %v2780, 0
    %v2799 = vsel %vm516, %v2781, 0
    %2801 = vmatprep.subr.mxu0 0.0
    %2802 = vmatpush1.msra.mxu0 0.0
    %2803 = vmatprep.subr.mxu0 0.0
    %2804 = vmatpush1.msra.mxu0 0.0
    %2805 = vmatprep.subr.mxu0 0.0
    %2806 = vmatpush1.msra.mxu0 0.0
    %2807 = vmatprep.subr.mxu0 0.0
    %2808 = vmatpush1.msra.mxu0 0.0
    %2809 = vmatprep.subr.mxu0 0.0
    %2810 = vmatpush1.msra.mxu0 0.0
    %2811 = vmatprep.subr.mxu0 0.0
    %2812 = vmatpush1.msra.mxu0 0.0
    %2813 = vmatprep.subr.mxu0 0.0
    %2814 = vmatpush1.msra.mxu0 0.0
    %2815 = vmatprep.subr.mxu0 0.0
    %2816 = vmatpush1.msra.mxu0 0.0
    %2817 = vmatprep.subr.mxu0 %v2778
    %2818 = vmatpush1.msra.mxu0 %v2777
    %2819 = vmatprep.subr.mxu0 %v2776
    %2820 = vmatpush1.msra.mxu0 %v2775
    %2821 = vmatprep.subr.mxu0 %v2774
    %2822 = vmatpush1.msra.mxu0 %v2773
    %2823 = vmatprep.subr.mxu0 %v2772
    %2824 = vmatpush1.msra.mxu0 %v2771
    %2825 = vmatprep.subr.mxu0 %v2770
    %2826 = vmatpush1.msra.mxu0 %v2769
    %2827 = vmatprep.subr.mxu0 %v2768
    %2828 = vmatpush1.msra.mxu0 %v2767
    %2829 = vmatprep.subr.mxu0 %v2766
    %2830 = vmatpush1.msra.mxu0 %v2765
    %2831 = vmatprep.subr.mxu0 %v2764
    %2832 = vmatpush1.msra.mxu0 %v2763
    %2833 = vmatprep.subr.mxu0 0.0
    %2834 = vmatpush2.msra.mxu0 0.0
    %2835 = vmatprep.subr.mxu0 0.0
    %2836 = vmatpush2.msra.mxu0 0.0
    %2837 = vmatprep.subr.mxu0 0.0
    %2838 = vmatpush2.msra.mxu0 0.0
    %2839 = vmatprep.subr.mxu0 0.0
    %2840 = vmatpush2.msra.mxu0 0.0
    %2841 = vmatprep.subr.mxu0 0.0
    %2842 = vmatpush2.msra.mxu0 0.0
    %2843 = vmatprep.subr.mxu0 0.0
    %2844 = vmatpush2.msra.mxu0 0.0
    %2845 = vmatprep.subr.mxu0 0.0
    %2846 = vmatpush2.msra.mxu0 0.0
    %2847 = vmatprep.subr.mxu0 0.0
    %2848 = vmatpush2.msra.mxu0 0.0
    %2849 = vmatprep.subr.mxu0 0.0
    %2850 = vmatpush2.msra.mxu0 0.0
    %2851 = vmatprep.subr.mxu0 0.0
    %2852 = vmatpush2.msra.mxu0 0.0
    %2853 = vmatprep.subr.mxu0 0.0
    %2854 = vmatpush2.msra.mxu0 0.0
    %2855 = vmatprep.subr.mxu0 0.0
    %2856 = vmatpush2.msra.mxu0 0.0
    %2857 = vmatprep.subr.mxu0 0.0
    %2858 = vmatpush2.msra.mxu0 0.0
    %2859 = vmatprep.subr.mxu0 0.0
    %2860 = vmatpush2.msra.mxu0 0.0
    %2861 = vmatprep.subr.mxu0 0.0
    %2862 = vmatpush2.msra.mxu0 0.0
    %2863 = vmatprep.subr.mxu0 0.0
    %2864 = vmatpush2.msra.mxu0 0.0
    %2865 = vmatprep.mubr.f32.mxu0 0.0
    %2866 = vmatmul.mubr.f32.gmra.mxu0 %v2796
    %v2867 = vpop.f32.mrf.mxu0
    %v2868 = vadd.f32 %v2788, %v2867
    %v2869 = vpop.f32.mrf.mxu0
    %v2870 = vadd.f32 %v2788, %v2869
    %2871 = vmatprep.mubr.f32.mxu0 0.0
    %2872 = vmatmul.mubr.f32.gmra.mxu0 %v2799
    %v2873 = vpop.f32.mrf.mxu0
    %v2874 = vadd.f32 %v2793, %v2873
    %v2875 = vpop.f32.mrf.mxu0
    %v2876 = vadd.f32 %v2793, %v2875
    %2877 = vdwg.mxu0
    %v2878 = vtanh.pop %v2868
    %v2879 = vtanh.pop %v2870
    %s2880 = sld [smem:[#allocation2 + $0x2]]
    %v2881 = vstv %s2880
    %v2882 = vmul.f32 %v2878, %v2881
    %v2883 = vmul.f32 %v2879, %v2881
    %s2884 = sld [smem:[#allocation2 + $0x3]]
    %v2885 = vstv %s2884
    %v2886 = vadd.f32 %v2882, %v2885
    %v2887 = vadd.f32 %v2883, %v2885
    %v2888 = vmul.f32 %v2886, 1.442695
    %v2889 = vpow.pop %v2888
    %v2890 = vmul.f32 %v2887, 1.442695
    %v2891 = vpow.pop %v2890
    %v2892 = vmul.f32 %v1613, %v2889
    %v2893 = vmul.f32 %v1615, %v2891
    %v2894 = vadd.f32 %v2892, %v2874
    %v2895 = vadd.f32 %v2893, %v2876
    %v2896 = vrot.slane %v2886, 4
    %v2897 = vadd.f32 %v2886, %v2896
    %v2898 = vrot.slane %v2897, 2
    %v2899 = vadd.f32 %v2897, %v2898
    %v2900 = vrot.slane %v2899, 1
    %v2901 = vadd.f32 %v2899, %v2900
    %v2902 = vrot.slane %v2887, 4
    %v2903 = vadd.f32 %v2887, %v2902
    %v2904 = vrot.slane %v2903, 2
    %v2905 = vadd.f32 %v2903, %v2904
    %v2906 = vrot.slane %v2905, 1
    %v2907 = vadd.f32 %v2905, %v2906
    %v2908 = vadd.f32 %v1507, %v2901
    %v2909 = vadd.f32 %v1508, %v2907
    %2910 = vst [vmem:[#allocation5] sm:$0xff] %v2894
    %2911 = vst [vmem:[#allocation5 + $0x8] sm:$0xff] %v2895
    %v2914 = vcombine.low %v2908, %v2909
    %v2916 = vunpack.c.l.s4 1966171168
    %v2917 = vunpack.c.0.s8 %v2916
    %v2918 = vlaneseq
    %v2919 = vshrl.u32 %v2918, 7
    %v2920 = vsub.s32 %v2917, %v2919
    %v2921 = vrot.slane %v2914, %v2920
    %v2923 = vunpack.c.l.s4 1966171168
    %v2924 = vunpack.c.0.s8 %v2923
    %v2925 = vlaneseq
    %v2926 = vshrl.u32 %v2925, 7
    %v2927 = vsub.s32 %v2924, %v2926
    %v2928 = vrot.slane %v2921, %v2927
    %v2930 = vlaneseq
    %vm2931 = vcmp.ge.s32.totalorder %v2930, 0
    %vm2932 = vcmp.lt.s32.totalorder %v2930, 256
    %vm2933 = vmand %vm2931, %vm2932
    %2934 = vst.msk [vmem:[#allocation6] sm:$0x3] %vm2933, %v2928
    // Predicated region
    $region38: #{tpu_custom_call.1} parent=1 // pred_check
      _
    $region39: #{tpu_custom_call.1} parent=1 // pred_check_branch
      %2936 = sbr.rel (0) target = $region41
    $region40: #{tpu_custom_call.1} parent=1 // pred_region
      %s2938 = ssub.s32 256, 256
      %2939 = vsyncadd [#allocation3], %s2938
      %s2941 = sshll.u32 [#allocation5], 4
      %s2942 = int_to_ptr.vmem [resolvable:$true] %s2941
      %2944 = dma.vmem_to_hbm [thread:$0]  %s2942, 256, %s8, [#allocation3]
    $region41: #{tpu_custom_call.1} parent=1 // pred_fallthru
      _
    // Predicated region
    $region42: #{tpu_custom_call.1} parent=1 // pred_check
      _
    $region43: #{tpu_custom_call.1} parent=1 // pred_check_branch
      %2946 = sbr.rel (0) target = $region45
    $region44: #{tpu_custom_call.1} parent=1 // pred_region
      %s2948 = ssub.s32 32, 32
      %2949 = vsyncadd [#allocation7], %s2948
      %s2951 = sshll.u32 [#allocation6], 4
      %s2952 = int_to_ptr.vmem [resolvable:$true] %s2951
      %2954 = dma.vmem_to_hbm [thread:$0]  %s2952, 32, %s9, [#allocation7]
    $region45: #{tpu_custom_call.1} parent=1 // pred_fallthru
      _
    // Predicated region
    $region46: #{tpu_custom_call.1} parent=1 // pred_check
      _
    $region47: #{tpu_custom_call.1} parent=1 // pred_check_branch
      %2956 = sbr.rel (0) target = $region49
    $region48: #{tpu_custom_call.1} parent=1 // pred_region
      %2957 = dma.done [#allocation3], 256
    $region49: #{tpu_custom_call.1} parent=1 // pred_fallthru
      _
    // Predicated region
    $region50: #{tpu_custom_call.1} parent=1 // pred_check
      _
    $region51: #{tpu_custom_call.1} parent=1 // pred_check_branch
      %2959 = sbr.rel (0) target = $region53
    $region52: #{tpu_custom_call.1} parent=1 // pred_region
      %2960 = dma.done [#allocation7], 32
    $region53: #{tpu_custom_call.1} parent=1 // pred_fallthru
      _
    %2961 = vsyncpa [#allocation3], 1
    %2962 = vsyncpa [#allocation7], 1
    %2963 = vsyncpa [#allocation4], 1

</llo_original>
